<compile_context>
chip_gen: v7x
topology: tpu7x:2x2x1
jax: 0.10.0
libtpu: 0.0.40
codegen_flags: <defaults>
</compile_context>

<pallas_src>
import functools
import math

import jax
import jax.numpy as jnp
from jax import lax
from jax.experimental import pallas as pl
from jax.experimental.pallas import tpu as pltpu


def _bert_attention_kernel(
    x_ref, mask_ref,
    wqkv_ref, bqkv_ref, wo_ref, bo_ref, gamma_ref, beta_ref,
    o_ref,
    q_hm_ref, k_hm_ref, v_hm_ref, ctx_ref,
    *, seq_len, q_tile, hidden, num_heads, head_dim, heads_per_group, ln_eps,
):
    qi = pl.program_id(1)
    n_chunks = seq_len // q_tile
    n_groups = num_heads // heads_per_group

    # ---- fused QKV projection, once per batch element (qi == 0) -------------
    # Chunked over rows so the f32 `proj` temporary stays bounded to (TQ, 3H);
    # Q/K/V are written head-major so the attention matmuls never relayout
    # them again (relayout once per batch, not once per query tile).
    # 1/sqrt(head_dim) is already folded into the Wq / bq slices on the host.
    @pl.when(qi == 0)
    def _():
        for c in range(n_chunks):                     # static, small trip count
            cs = c * q_tile
            xc = x_ref[0, pl.ds(cs, q_tile), :].astype(jnp.bfloat16)   # (TQ, H)
            proj = jnp.dot(xc, wqkv_ref[...],
                           preferred_element_type=jnp.float32)          # (TQ, 3H)
            proj = (proj + bqkv_ref[...]).astype(jnp.bfloat16)
            for h in range(num_heads):                # static per-head scatter
                lo = h * head_dim
                q_hm_ref[h, pl.ds(cs, q_tile), :] = proj[:, lo:lo + head_dim]
                k_hm_ref[h, pl.ds(cs, q_tile), :] = (
                    proj[:, hidden + lo:hidden + lo + head_dim])
                v_hm_ref[h, pl.ds(cs, q_tile), :] = (
                    proj[:, 2 * hidden + lo:2 * hidden + lo + head_dim])

    q_start = pl.multiple_of(qi * q_tile, q_tile)
    mask = mask_ref[...]                              # (1, 1, S) additive

    # ---- attention, tiled over head groups ----------------------------------
    # Per group the f32 temporaries are (g, TQ, S); per-head context is written
    # straight into the lane-dense (TQ, H) bf16 ctx buffer (no big relayout).
    for hg in range(n_groups):                        # static, <= ~8 groups
        h0 = hg * heads_per_group
        q_g = q_hm_ref[h0:h0 + heads_per_group, pl.ds(q_start, q_tile), :]
        k_g = k_hm_ref[h0:h0 + heads_per_group, :, :]
        v_g = v_hm_ref[h0:h0 + heads_per_group, :, :]

        scores = jnp.einsum('gqd,gkd->gqk', q_g, k_g,
                            preferred_element_type=jnp.float32)  # (g, TQ, S)
        scores = scores + mask                                   # broadcast

        m = jnp.max(scores, axis=-1, keepdims=True)
        p = jnp.exp(scores - m)
        inv = pl.reciprocal(jnp.sum(p, axis=-1, keepdims=True), approx=True)
        probs = (p * inv).astype(jnp.bfloat16)
        # TODO(synk): attention-prob dropout skipped (eval mode => identity).
        # TODO(synk): bf16 exp would relieve the EUP on v6e/v7x; kept f32 here.

        ctx = jnp.einsum('gqk,gkd->gqd', probs, v_g,
                         preferred_element_type=jnp.float32)     # (g, TQ, hd)
        for j in range(heads_per_group):
            col = (h0 + j) * head_dim
            ctx_ref[:, col:col + head_dim] = ctx[j].astype(jnp.bfloat16)

    # ---- BertSelfOutput: dense (full-K MXU matmul) + residual + LayerNorm ----
    out = jnp.dot(ctx_ref[...], wo_ref[...],
                  preferred_element_type=jnp.float32) + bo_ref[...]
    res = out + x_ref[0, pl.ds(q_start, q_tile), :]              # f32 residual
    mean = jnp.mean(res, axis=-1, keepdims=True)
    var = jnp.mean(jnp.square(res - mean), axis=-1, keepdims=True)
    y = (res - mean) * lax.rsqrt(var + jnp.float32(ln_eps))
    y = y * gamma_ref[...] + beta_ref[...]

    o_ref[0] = y.astype(o_ref.dtype)                             # lane-dense (TQ, H)


def _default_vmem_limit_bytes():
    # Generation-aware: ~7/8 of physical VMEM (v7x ~56 MiB, v5e/v6e 112 MiB).
    try:
        cap = int(pltpu.get_tpu_info().vmem_capacity_bytes)
    except Exception:
        cap = 64 * 1024 * 1024
    return min((cap * 7) // 8, 112 * 1024 * 1024)


def bert_attention(x, mask, params, *, num_heads, ln_eps=1e-12, q_block=256):
    B, S, H = x.shape
    head_dim = H // num_heads
    TQ = min(q_block, S)
    # TODO(synk): ragged last query tile (e.g. S=384) would need padding/masking.
    assert S % TQ == 0, "seq_len must be divisible by the query tile size"
    NQ = S // TQ

    # Head-group size: ~256 lanes of context per group, dividing num_heads.
    heads_per_group = min(num_heads, max(1, 256 // head_dim))
    while num_heads % heads_per_group:
        heads_per_group -= 1

    # ---- host-side prep: fuse QKV, fold softmax scale into Wq/bq, cast bf16 ----
    scale = 1.0 / math.sqrt(head_dim)
    wqkv = jnp.concatenate(
        [params["wq"] * scale, params["wk"], params["wv"]], axis=1
    ).astype(jnp.bfloat16)                                       # (H, 3H)
    bqkv = jnp.concatenate(
        [params["bq"] * scale, params["bk"], params["bv"]], axis=1
    ).astype(jnp.float32)                                        # (1, 3H)
    wo = params["wo"].astype(jnp.bfloat16)                       # (H, H)
    mask3 = mask.reshape(B, 1, S).astype(jnp.float32)            # (B, 1, S)

    kernel = functools.partial(
        _bert_attention_kernel,
        seq_len=S, q_tile=TQ, hidden=H, num_heads=num_heads,
        head_dim=head_dim, heads_per_group=heads_per_group, ln_eps=ln_eps,
    )

    flops = 2 * B * S * H * (4 * H + 2 * S)
    transcendentals = B * num_heads * S * S
    bytes_accessed = (
        2 * B * S * H * 4 + B * S * 4                 # x in, out, mask (f32)
        + (3 * H * H + H * H) * 2                     # bf16 weights
        + (4 * H + 2 * H) * 4                         # biases, gamma, beta
    )

    def build(single_buffer_consts):
        def const_spec(shape):
            # Constant-index operands: second pipeline buffer buys nothing.
            if single_buffer_consts:
                return pl.BlockSpec(shape, lambda b, qi: tuple(0 for _ in shape),
                                    pipeline_mode=pl.Buffered(1))
            return pl.BlockSpec(shape, lambda b, qi: tuple(0 for _ in shape))

        grid_spec = pltpu.PrefetchScalarGridSpec(
            num_scalar_prefetch=0,
            grid=(B, NQ),
            in_specs=[
                pl.BlockSpec((1, S, H), lambda b, qi: (b, 0, 0)),   # x (K/V + residual)
                pl.BlockSpec((1, 1, S), lambda b, qi: (b, 0, 0)),   # additive mask
                const_spec((H, 3 * H)),                             # fused Wqkv (bf16)
                const_spec((1, 3 * H)),                             # fused bqkv (f32)
                const_spec((H, H)),                                 # Wo (bf16)
                const_spec((1, H)),                                 # bo
                const_spec((1, H)),                                 # gamma
                const_spec((1, H)),                                 # beta
            ],
            out_specs=pl.BlockSpec((1, TQ, H), lambda b, qi: (b, qi, 0)),
            scratch_shapes=[
                pltpu.VMEM((num_heads, S, head_dim), jnp.bfloat16),  # Q head-major
                pltpu.VMEM((num_heads, S, head_dim), jnp.bfloat16),  # K head-major
                pltpu.VMEM((num_heads, S, head_dim), jnp.bfloat16),  # V head-major
                pltpu.VMEM((TQ, H), jnp.bfloat16),                   # lane-dense ctx
            ],
        )
        return pl.pallas_call(
            kernel,
            out_shape=jax.ShapeDtypeStruct((B, S, H), x.dtype),
            grid_spec=grid_spec,
            compiler_params=pltpu.CompilerParams(
                dimension_semantics=("parallel", "arbitrary"),
                vmem_limit_bytes=_default_vmem_limit_bytes(),
            ),
            cost_estimate=pl.CostEstimate(
                flops=flops,
                transcendentals=transcendentals,
                bytes_accessed=bytes_accessed,
            ),
        )

    args = (x, mask3, wqkv, bqkv, wo, params["bo"], params["gamma"], params["beta"])
    try:
        return build(True)(*args)
    except Exception:
        # Fallback if this JAX build rejects pipeline_mode=pl.Buffered(1).
        return build(False)(*args)


def bert_attention_ref(x, mask, params, *, num_heads, ln_eps=1e-12):
    """Pure-JAX f32 reference mirroring the PyTorch forward (eval mode)."""
    B, S, H = x.shape
    hd = H // num_heads
    q = x @ params["wq"] + params["bq"]
    k = x @ params["wk"] + params["bk"]
    v = x @ params["wv"] + params["bv"]

    def split(t):  # (B,S,H) -> (B,nh,S,hd)
        return t.reshape(B, S, num_heads, hd).transpose(0, 2, 1, 3)

    qh, kh, vh = split(q), split(k), split(v)
    scores = jnp.einsum('bhqd,bhkd->bhqk', qh, kh) / math.sqrt(hd)
    scores = scores + mask[:, None, None, :]
    probs = jax.nn.softmax(scores, axis=-1)
    ctx = jnp.einsum('bhqk,bhkd->bhqd', probs, vh)
    ctx = ctx.transpose(0, 2, 1, 3).reshape(B, S, H)
    out = ctx @ params["wo"] + params["bo"]
    res = out + x
    mean = res.mean(-1, keepdims=True)
    var = ((res - mean) ** 2).mean(-1, keepdims=True)
    y = (res - mean) / jnp.sqrt(var + ln_eps)
    return y * params["gamma"] + params["beta"]


def init_params(key, hidden):
    ks = jax.random.split(key, 8)
    scale = 0.02
    return {
        # weights stored as [in, out] (i.e. PyTorch W.T)
        "wq": scale * jax.random.normal(ks[0], (hidden, hidden), jnp.float32),
        "bq": scale * jax.random.normal(ks[1], (1, hidden), jnp.float32),
        "wk": scale * jax.random.normal(ks[2], (hidden, hidden), jnp.float32),
        "bk": scale * jax.random.normal(ks[3], (1, hidden), jnp.float32),
        "wv": scale * jax.random.normal(ks[4], (hidden, hidden), jnp.float32),
        "bv": scale * jax.random.normal(ks[5], (1, hidden), jnp.float32),
        "wo": scale * jax.random.normal(ks[6], (hidden, hidden), jnp.float32),
        "bo": scale * jax.random.normal(ks[7], (1, hidden), jnp.float32),
        "gamma": jnp.ones((1, hidden), jnp.float32),
        "beta": jnp.zeros((1, hidden), jnp.float32),
    }


if __name__ == "__main__":
    B, S, H, NH = 2, 8, 32, 4

    key = jax.random.PRNGKey(0)
    kx, kp, km = jax.random.split(key, 3)

    x = jax.random.normal(kx, (B, S, H), jnp.float32)
    params = init_params(kp, H)

    # Additive attention mask: 0 for visible, -10000 for masked (BERT style).
    visible = jax.random.bernoulli(km, 0.8, (B, S))
    mask = jnp.where(visible, 0.0, -10000.0).astype(jnp.float32)

    out = bert_attention(x, mask, params, num_heads=NH)
    out = jax.block_until_ready(out)

    ref = bert_attention_ref(x, mask, params, num_heads=NH)
    # bf16 matmul inputs + approx reciprocal => relaxed tolerance vs f32 ref.
    assert jnp.allclose(out, ref, rtol=2e-2, atol=2e-2), "mismatch vs reference"

    print("KERNEL_OK")
</pallas_src>

<mosaic_0001>
module attributes {stable_mosaic.version = 11 : i64} {
  func.func @_bert_attention_kernel(%arg0: i32, %arg1: i32, %arg2: memref<1x8x32xf32, #tpu.memory_space<vmem>>, %arg3: memref<1x1x8xf32, #tpu.memory_space<vmem>>, %arg4: memref<32x96xbf16, #tpu.memory_space<vmem>>, %arg5: memref<1x96xf32, #tpu.memory_space<vmem>>, %arg6: memref<32x32xbf16, #tpu.memory_space<vmem>>, %arg7: memref<1x32xf32, #tpu.memory_space<vmem>>, %arg8: memref<1x32xf32, #tpu.memory_space<vmem>>, %arg9: memref<1x32xf32, #tpu.memory_space<vmem>>, %arg10: memref<1x8x32xf32, #tpu.memory_space<vmem>>, %arg11: memref<4x8x8xbf16, #tpu.memory_space<vmem>>, %arg12: memref<4x8x8xbf16, #tpu.memory_space<vmem>>, %arg13: memref<4x8x8xbf16, #tpu.memory_space<vmem>>, %arg14: memref<8x32xbf16, #tpu.memory_space<vmem>>) attributes {dimension_semantics = [#tpu.dimension_semantics<parallel>, #tpu.dimension_semantics<arbitrary>], iteration_bounds = array<i64: 2, 1>, scalar_prefetch = 0 : i64, scratch_operands = 4 : i64, tpu.core_type = #tpu.core_type<tc>, window_params = [{transform_indices = @transform_0, window_bounds = array<i64: 1, 8, 32>}, {transform_indices = @transform_1, window_bounds = array<i64: 1, 1, 8>}, {pipeline_mode = #tpu.pipeline_mode<synchronous>, transform_indices = @transform_2, window_bounds = array<i64: 32, 96>}, {pipeline_mode = #tpu.pipeline_mode<synchronous>, transform_indices = @transform_3, window_bounds = array<i64: 1, 96>}, {pipeline_mode = #tpu.pipeline_mode<synchronous>, transform_indices = @transform_4, window_bounds = array<i64: 32, 32>}, {pipeline_mode = #tpu.pipeline_mode<synchronous>, transform_indices = @transform_5, window_bounds = array<i64: 1, 32>}, {pipeline_mode = #tpu.pipeline_mode<synchronous>, transform_indices = @transform_6, window_bounds = array<i64: 1, 32>}, {pipeline_mode = #tpu.pipeline_mode<synchronous>, transform_indices = @transform_7, window_bounds = array<i64: 1, 32>}, {transform_indices = @transform_8, window_bounds = array<i64: 1, 8, 32>}]} {
    %c0_i32 = arith.constant 0 : i32
    %0 = arith.cmpi eq, %arg1, %c0_i32 : i32
    %1 = arith.extui %0 : i1 to i32
    %c0_i32_0 = arith.constant 0 : i32
    %2 = arith.cmpi ne, %1, %c0_i32_0 : i32
    scf.if %2 {
      %c0_40 = arith.constant 0 : index
      %c0_41 = arith.constant 0 : index
      %c0_42 = arith.constant 0 : index
      %78 = vector.load %arg2[%c0_40, %c0_41, %c0_42] : memref<1x8x32xf32, #tpu.memory_space<vmem>>, vector<1x8x32xf32>
      %79 = vector.shape_cast %78 : vector<1x8x32xf32> to vector<8x32xf32>
      %80 = arith.truncf %79 : vector<8x32xf32> to vector<8x32xbf16>
      %c0_43 = arith.constant 0 : index
      %c0_44 = arith.constant 0 : index
      %81 = vector.load %arg4[%c0_43, %c0_44] : memref<32x96xbf16, #tpu.memory_space<vmem>>, vector<32x96xbf16>
      %cst_45 = arith.constant dense<0.000000e+00> : vector<8x96xf32>
      %82 = tpu.matmul %80, %81, %cst_45 {dimension_numbers = #tpu.dot_dimension_numbers<[1], [0], [0], [1], [0, 0, 1, 1], [], []>} : vector<8x32xbf16>, vector<32x96xbf16>, vector<8x96xf32> -> vector<8x96xf32>
      %c0_46 = arith.constant 0 : index
      %c0_47 = arith.constant 0 : index
      %83 = vector.load %arg5[%c0_46, %c0_47] : memref<1x96xf32, #tpu.memory_space<vmem>>, vector<1x96xf32>
      %84 = vector.broadcast %83 : vector<1x96xf32> to vector<8x96xf32>
      %85 = arith.addf %82, %84 : vector<8x96xf32>
      %86 = arith.truncf %85 : vector<8x96xf32> to vector<8x96xbf16>
      %87 = vector.extract_strided_slice %86 {offsets = [0, 0], sizes = [8, 8], strides = [1, 1]} : vector<8x96xbf16> to vector<8x8xbf16>
      %c0_48 = arith.constant 0 : index
      %c0_49 = arith.constant 0 : index
      %c0_50 = arith.constant 0 : index
      %88 = vector.load %arg11[%c0_48, %c0_49, %c0_50] : memref<4x8x8xbf16, #tpu.memory_space<vmem>>, vector<1x8x8xbf16>
      %89 = vector.shape_cast %88 : vector<1x8x8xbf16> to vector<8x8xbf16>
      %90 = vector.shape_cast %87 : vector<8x8xbf16> to vector<1x8x8xbf16>
      tpu.vector_store %arg11[%c0_48, %c0_49, %c0_50], %90 {strides = array<i32>} : memref<4x8x8xbf16, #tpu.memory_space<vmem>>, vector<1x8x8xbf16>,
      %91 = vector.extract_strided_slice %86 {offsets = [0, 32], sizes = [8, 8], strides = [1, 1]} : vector<8x96xbf16> to vector<8x8xbf16>
      %c0_51 = arith.constant 0 : index
      %c0_52 = arith.constant 0 : index
      %c0_53 = arith.constant 0 : index
      %92 = vector.load %arg12[%c0_51, %c0_52, %c0_53] : memref<4x8x8xbf16, #tpu.memory_space<vmem>>, vector<1x8x8xbf16>
      %93 = vector.shape_cast %92 : vector<1x8x8xbf16> to vector<8x8xbf16>
      %94 = vector.shape_cast %91 : vector<8x8xbf16> to vector<1x8x8xbf16>
      tpu.vector_store %arg12[%c0_51, %c0_52, %c0_53], %94 {strides = array<i32>} : memref<4x8x8xbf16, #tpu.memory_space<vmem>>, vector<1x8x8xbf16>,
      %95 = vector.extract_strided_slice %86 {offsets = [0, 64], sizes = [8, 8], strides = [1, 1]} : vector<8x96xbf16> to vector<8x8xbf16>
      %c0_54 = arith.constant 0 : index
      %c0_55 = arith.constant 0 : index
      %c0_56 = arith.constant 0 : index
      %96 = vector.load %arg13[%c0_54, %c0_55, %c0_56] : memref<4x8x8xbf16, #tpu.memory_space<vmem>>, vector<1x8x8xbf16>
      %97 = vector.shape_cast %96 : vector<1x8x8xbf16> to vector<8x8xbf16>
      %98 = vector.shape_cast %95 : vector<8x8xbf16> to vector<1x8x8xbf16>
      tpu.vector_store %arg13[%c0_54, %c0_55, %c0_56], %98 {strides = array<i32>} : memref<4x8x8xbf16, #tpu.memory_space<vmem>>, vector<1x8x8xbf16>,
      %99 = vector.extract_strided_slice %86 {offsets = [0, 8], sizes = [8, 8], strides = [1, 1]} : vector<8x96xbf16> to vector<8x8xbf16>
      %c1 = arith.constant 1 : index
      %c0_57 = arith.constant 0 : index
      %c0_58 = arith.constant 0 : index
      %100 = vector.load %arg11[%c1, %c0_57, %c0_58] : memref<4x8x8xbf16, #tpu.memory_space<vmem>>, vector<1x8x8xbf16>
      %101 = vector.shape_cast %100 : vector<1x8x8xbf16> to vector<8x8xbf16>
      %102 = vector.shape_cast %99 : vector<8x8xbf16> to vector<1x8x8xbf16>
      tpu.vector_store %arg11[%c1, %c0_57, %c0_58], %102 {strides = array<i32>} : memref<4x8x8xbf16, #tpu.memory_space<vmem>>, vector<1x8x8xbf16>,
      %103 = vector.extract_strided_slice %86 {offsets = [0, 40], sizes = [8, 8], strides = [1, 1]} : vector<8x96xbf16> to vector<8x8xbf16>
      %c1_59 = arith.constant 1 : index
      %c0_60 = arith.constant 0 : index
      %c0_61 = arith.constant 0 : index
      %104 = vector.load %arg12[%c1_59, %c0_60, %c0_61] : memref<4x8x8xbf16, #tpu.memory_space<vmem>>, vector<1x8x8xbf16>
      %105 = vector.shape_cast %104 : vector<1x8x8xbf16> to vector<8x8xbf16>
      %106 = vector.shape_cast %103 : vector<8x8xbf16> to vector<1x8x8xbf16>
      tpu.vector_store %arg12[%c1_59, %c0_60, %c0_61], %106 {strides = array<i32>} : memref<4x8x8xbf16, #tpu.memory_space<vmem>>, vector<1x8x8xbf16>,
      %107 = vector.extract_strided_slice %86 {offsets = [0, 72], sizes = [8, 8], strides = [1, 1]} : vector<8x96xbf16> to vector<8x8xbf16>
      %c1_62 = arith.constant 1 : index
      %c0_63 = arith.constant 0 : index
      %c0_64 = arith.constant 0 : index
      %108 = vector.load %arg13[%c1_62, %c0_63, %c0_64] : memref<4x8x8xbf16, #tpu.memory_space<vmem>>, vector<1x8x8xbf16>
      %109 = vector.shape_cast %108 : vector<1x8x8xbf16> to vector<8x8xbf16>
      %110 = vector.shape_cast %107 : vector<8x8xbf16> to vector<1x8x8xbf16>
      tpu.vector_store %arg13[%c1_62, %c0_63, %c0_64], %110 {strides = array<i32>} : memref<4x8x8xbf16, #tpu.memory_space<vmem>>, vector<1x8x8xbf16>,
      %111 = vector.extract_strided_slice %86 {offsets = [0, 16], sizes = [8, 8], strides = [1, 1]} : vector<8x96xbf16> to vector<8x8xbf16>
      %c2 = arith.constant 2 : index
      %c0_65 = arith.constant 0 : index
      %c0_66 = arith.constant 0 : index
      %112 = vector.load %arg11[%c2, %c0_65, %c0_66] : memref<4x8x8xbf16, #tpu.memory_space<vmem>>, vector<1x8x8xbf16>
      %113 = vector.shape_cast %112 : vector<1x8x8xbf16> to vector<8x8xbf16>
      %114 = vector.shape_cast %111 : vector<8x8xbf16> to vector<1x8x8xbf16>
      tpu.vector_store %arg11[%c2, %c0_65, %c0_66], %114 {strides = array<i32>} : memref<4x8x8xbf16, #tpu.memory_space<vmem>>, vector<1x8x8xbf16>,
      %115 = vector.extract_strided_slice %86 {offsets = [0, 48], sizes = [8, 8], strides = [1, 1]} : vector<8x96xbf16> to vector<8x8xbf16>
      %c2_67 = arith.constant 2 : index
      %c0_68 = arith.constant 0 : index
      %c0_69 = arith.constant 0 : index
      %116 = vector.load %arg12[%c2_67, %c0_68, %c0_69] : memref<4x8x8xbf16, #tpu.memory_space<vmem>>, vector<1x8x8xbf16>
      %117 = vector.shape_cast %116 : vector<1x8x8xbf16> to vector<8x8xbf16>
      %118 = vector.shape_cast %115 : vector<8x8xbf16> to vector<1x8x8xbf16>
      tpu.vector_store %arg12[%c2_67, %c0_68, %c0_69], %118 {strides = array<i32>} : memref<4x8x8xbf16, #tpu.memory_space<vmem>>, vector<1x8x8xbf16>,
      %119 = vector.extract_strided_slice %86 {offsets = [0, 80], sizes = [8, 8], strides = [1, 1]} : vector<8x96xbf16> to vector<8x8xbf16>
      %c2_70 = arith.constant 2 : index
      %c0_71 = arith.constant 0 : index
      %c0_72 = arith.constant 0 : index
      %120 = vector.load %arg13[%c2_70, %c0_71, %c0_72] : memref<4x8x8xbf16, #tpu.memory_space<vmem>>, vector<1x8x8xbf16>
      %121 = vector.shape_cast %120 : vector<1x8x8xbf16> to vector<8x8xbf16>
      %122 = vector.shape_cast %119 : vector<8x8xbf16> to vector<1x8x8xbf16>
      tpu.vector_store %arg13[%c2_70, %c0_71, %c0_72], %122 {strides = array<i32>} : memref<4x8x8xbf16, #tpu.memory_space<vmem>>, vector<1x8x8xbf16>,
      %123 = vector.extract_strided_slice %86 {offsets = [0, 24], sizes = [8, 8], strides = [1, 1]} : vector<8x96xbf16> to vector<8x8xbf16>
      %c3 = arith.constant 3 : index
      %c0_73 = arith.constant 0 : index
      %c0_74 = arith.constant 0 : index
      %124 = vector.load %arg11[%c3, %c0_73, %c0_74] : memref<4x8x8xbf16, #tpu.memory_space<vmem>>, vector<1x8x8xbf16>
      %125 = vector.shape_cast %124 : vector<1x8x8xbf16> to vector<8x8xbf16>
      %126 = vector.shape_cast %123 : vector<8x8xbf16> to vector<1x8x8xbf16>
      tpu.vector_store %arg11[%c3, %c0_73, %c0_74], %126 {strides = array<i32>} : memref<4x8x8xbf16, #tpu.memory_space<vmem>>, vector<1x8x8xbf16>,
      %127 = vector.extract_strided_slice %86 {offsets = [0, 56], sizes = [8, 8], strides = [1, 1]} : vector<8x96xbf16> to vector<8x8xbf16>
      %c3_75 = arith.constant 3 : index
      %c0_76 = arith.constant 0 : index
      %c0_77 = arith.constant 0 : index
      %128 = vector.load %arg12[%c3_75, %c0_76, %c0_77] : memref<4x8x8xbf16, #tpu.memory_space<vmem>>, vector<1x8x8xbf16>
      %129 = vector.shape_cast %128 : vector<1x8x8xbf16> to vector<8x8xbf16>
      %130 = vector.shape_cast %127 : vector<8x8xbf16> to vector<1x8x8xbf16>
      tpu.vector_store %arg12[%c3_75, %c0_76, %c0_77], %130 {strides = array<i32>} : memref<4x8x8xbf16, #tpu.memory_space<vmem>>, vector<1x8x8xbf16>,
      %131 = vector.extract_strided_slice %86 {offsets = [0, 88], sizes = [8, 8], strides = [1, 1]} : vector<8x96xbf16> to vector<8x8xbf16>
      %c3_78 = arith.constant 3 : index
      %c0_79 = arith.constant 0 : index
      %c0_80 = arith.constant 0 : index
      %132 = vector.load %arg13[%c3_78, %c0_79, %c0_80] : memref<4x8x8xbf16, #tpu.memory_space<vmem>>, vector<1x8x8xbf16>
      %133 = vector.shape_cast %132 : vector<1x8x8xbf16> to vector<8x8xbf16>
      %134 = vector.shape_cast %131 : vector<8x8xbf16> to vector<1x8x8xbf16>
      tpu.vector_store %arg13[%c3_78, %c0_79, %c0_80], %134 {strides = array<i32>} : memref<4x8x8xbf16, #tpu.memory_space<vmem>>, vector<1x8x8xbf16>,
    } else {
    }
    %c8_i32 = arith.constant 8 : i32
    %3 = arith.muli %arg1, %c8_i32 : i32
    %4 = tpu.assume_multiple %3, 8 : i32
    %c0 = arith.constant 0 : index
    %c0_1 = arith.constant 0 : index
    %c0_2 = arith.constant 0 : index
    %5 = vector.load %arg3[%c0, %c0_1, %c0_2] : memref<1x1x8xf32, #tpu.memory_space<vmem>>, vector<1x1x8xf32>
    %c0_3 = arith.constant 0 : index
    %6 = arith.index_cast %4 : i32 to index
    %c0_4 = arith.constant 0 : index
    %7 = vector.load %arg11[%c0_3, %6, %c0_4] : memref<4x8x8xbf16, #tpu.memory_space<vmem>>, vector<4x8x8xbf16>
    %c0_5 = arith.constant 0 : index
    %c0_6 = arith.constant 0 : index
    %c0_7 = arith.constant 0 : index
    %8 = vector.load %arg12[%c0_5, %c0_6, %c0_7] : memref<4x8x8xbf16, #tpu.memory_space<vmem>>, vector<4x8x8xbf16>
    %c0_8 = arith.constant 0 : index
    %c0_9 = arith.constant 0 : index
    %c0_10 = arith.constant 0 : index
    %9 = vector.load %arg13[%c0_8, %c0_9, %c0_10] : memref<4x8x8xbf16, #tpu.memory_space<vmem>>, vector<4x8x8xbf16>
    "tpu.trace_start"() <{level = 10 : i32, message = "gqd,gkd->gqk"}> : () -> ()
    %cst = arith.constant dense<0.000000e+00> : vector<4x8x8xf32>
    %10 = tpu.matmul %7, %8, %cst {dimension_numbers = #tpu.dot_dimension_numbers<[2], [2], [1], [1], [0, 0, 0, 1, 1, 1], [0], [0]>} : vector<4x8x8xbf16>, vector<4x8x8xbf16>, vector<4x8x8xf32> -> vector<4x8x8xf32>
    "tpu.trace_stop"() : () -> ()
    %11 = vector.broadcast %5 : vector<1x1x8xf32> to vector<4x8x8xf32>
    %12 = arith.addf %10, %11 : vector<4x8x8xf32>
    %cst_11 = arith.constant dense<0xFF800000> : vector<4x8xf32>
    %13 = vector.multi_reduction <maximumf>, %12, %cst_11 [2] : vector<4x8x8xf32> to vector<4x8xf32>
    %14 = vector.shape_cast %13 : vector<4x8xf32> to vector<4x8x1xf32>
    %15 = vector.broadcast %14 : vector<4x8x1xf32> to vector<4x8x8xf32>
    %16 = arith.subf %12, %15 : vector<4x8x8xf32>
    %17 = math.exp %16 : vector<4x8x8xf32>
    %cst_12 = arith.constant dense<0.000000e+00> : vector<4x8xf32>
    %18 = vector.multi_reduction <add>, %17, %cst_12 [2] : vector<4x8x8xf32> to vector<4x8xf32>
    %19 = vector.shape_cast %18 : vector<4x8xf32> to vector<4x8x1xf32>
    %20 = tpu.reciprocal %19 {approx = true} : vector<4x8x1xf32> -> vector<4x8x1xf32>
    %21 = vector.broadcast %20 : vector<4x8x1xf32> to vector<4x8x8xf32>
    %22 = arith.mulf %17, %21 : vector<4x8x8xf32>
    %23 = arith.truncf %22 : vector<4x8x8xf32> to vector<4x8x8xbf16>
    "tpu.trace_start"() <{level = 10 : i32, message = "gqk,gkd->gqd"}> : () -> ()
    %cst_13 = arith.constant dense<0.000000e+00> : vector<4x8x8xf32>
    %24 = tpu.matmul %23, %9, %cst_13 {dimension_numbers = #tpu.dot_dimension_numbers<[2], [1], [1], [2], [0, 0, 0, 1, 1, 2], [0], [0]>} : vector<4x8x8xbf16>, vector<4x8x8xbf16>, vector<4x8x8xf32> -> vector<4x8x8xf32>
    "tpu.trace_stop"() : () -> ()
    %25 = vector.extract_strided_slice %24 {offsets = [0, 0, 0], sizes = [1, 8, 8], strides = [1, 1, 1]} : vector<4x8x8xf32> to vector<1x8x8xf32>
    %26 = vector.shape_cast %25 : vector<1x8x8xf32> to vector<8x8xf32>
    %27 = arith.truncf %26 : vector<8x8xf32> to vector<8x8xbf16>
    %c0_14 = arith.constant 0 : index
    %c0_15 = arith.constant 0 : index
    %28 = vector.load %arg14[%c0_14, %c0_15] : memref<8x32xbf16, #tpu.memory_space<vmem>>, vector<8x8xbf16>
    tpu.vector_store %arg14[%c0_14, %c0_15], %27 {strides = array<i32>} : memref<8x32xbf16, #tpu.memory_space<vmem>>, vector<8x8xbf16>,
    %29 = vector.extract_strided_slice %24 {offsets = [1, 0, 0], sizes = [1, 8, 8], strides = [1, 1, 1]} : vector<4x8x8xf32> to vector<1x8x8xf32>
    %30 = vector.shape_cast %29 : vector<1x8x8xf32> to vector<8x8xf32>
    %31 = arith.truncf %30 : vector<8x8xf32> to vector<8x8xbf16>
    %c0_16 = arith.constant 0 : index
    %c8 = arith.constant 8 : index
    %32 = vector.load %arg14[%c0_16, %c8] : memref<8x32xbf16, #tpu.memory_space<vmem>>, vector<8x8xbf16>
    tpu.vector_store %arg14[%c0_16, %c8], %31 {strides = array<i32>} : memref<8x32xbf16, #tpu.memory_space<vmem>>, vector<8x8xbf16>,
    %33 = vector.extract_strided_slice %24 {offsets = [2, 0, 0], sizes = [1, 8, 8], strides = [1, 1, 1]} : vector<4x8x8xf32> to vector<1x8x8xf32>
    %34 = vector.shape_cast %33 : vector<1x8x8xf32> to vector<8x8xf32>
    %35 = arith.truncf %34 : vector<8x8xf32> to vector<8x8xbf16>
    %c0_17 = arith.constant 0 : index
    %c16 = arith.constant 16 : index
    %36 = vector.load %arg14[%c0_17, %c16] : memref<8x32xbf16, #tpu.memory_space<vmem>>, vector<8x8xbf16>
    tpu.vector_store %arg14[%c0_17, %c16], %35 {strides = array<i32>} : memref<8x32xbf16, #tpu.memory_space<vmem>>, vector<8x8xbf16>,
    %37 = vector.extract_strided_slice %24 {offsets = [3, 0, 0], sizes = [1, 8, 8], strides = [1, 1, 1]} : vector<4x8x8xf32> to vector<1x8x8xf32>
    %38 = vector.shape_cast %37 : vector<1x8x8xf32> to vector<8x8xf32>
    %39 = arith.truncf %38 : vector<8x8xf32> to vector<8x8xbf16>
    %c0_18 = arith.constant 0 : index
    %c24 = arith.constant 24 : index
    %40 = vector.load %arg14[%c0_18, %c24] : memref<8x32xbf16, #tpu.memory_space<vmem>>, vector<8x8xbf16>
    tpu.vector_store %arg14[%c0_18, %c24], %39 {strides = array<i32>} : memref<8x32xbf16, #tpu.memory_space<vmem>>, vector<8x8xbf16>,
    %c0_19 = arith.constant 0 : index
    %c0_20 = arith.constant 0 : index
    %41 = vector.load %arg14[%c0_19, %c0_20] : memref<8x32xbf16, #tpu.memory_space<vmem>>, vector<8x32xbf16>
    %c0_21 = arith.constant 0 : index
    %c0_22 = arith.constant 0 : index
    %42 = vector.load %arg6[%c0_21, %c0_22] : memref<32x32xbf16, #tpu.memory_space<vmem>>, vector<32x32xbf16>
    %cst_23 = arith.constant dense<0.000000e+00> : vector<8x32xf32>
    %43 = tpu.matmul %41, %42, %cst_23 {dimension_numbers = #tpu.dot_dimension_numbers<[1], [0], [0], [1], [0, 0, 1, 1], [], []>} : vector<8x32xbf16>, vector<32x32xbf16>, vector<8x32xf32> -> vector<8x32xf32>
    %c0_24 = arith.constant 0 : index
    %c0_25 = arith.constant 0 : index
    %44 = vector.load %arg7[%c0_24, %c0_25] : memref<1x32xf32, #tpu.memory_space<vmem>>, vector<1x32xf32>
    %45 = vector.broadcast %44 : vector<1x32xf32> to vector<8x32xf32>
    %46 = arith.addf %43, %45 : vector<8x32xf32>
    %c0_26 = arith.constant 0 : index
    %47 = arith.index_cast %4 : i32 to index
    %c0_27 = arith.constant 0 : index
    %48 = vector.load %arg2[%c0_26, %47, %c0_27] : memref<1x8x32xf32, #tpu.memory_space<vmem>>, vector<1x8x32xf32>
    %49 = vector.shape_cast %48 : vector<1x8x32xf32> to vector<8x32xf32>
    %50 = arith.addf %46, %49 : vector<8x32xf32>
    %cst_28 = arith.constant dense<0.000000e+00> : vector<8xf32>
    %51 = vector.multi_reduction <add>, %50, %cst_28 [1] : vector<8x32xf32> to vector<8xf32>
    %52 = vector.shape_cast %51 : vector<8xf32> to vector<8x1xf32>
    %cst_29 = arith.constant 3.200000e+01 : f32
    %53 = vector.broadcast %cst_29 : f32 to vector<8x1xf32>
    %54 = arith.divf %52, %53 : vector<8x1xf32>
    %55 = vector.broadcast %54 : vector<8x1xf32> to vector<8x32xf32>
    %56 = arith.subf %50, %55 : vector<8x32xf32>
    %57 = arith.mulf %56, %56 : vector<8x32xf32>
    %cst_30 = arith.constant dense<0.000000e+00> : vector<8xf32>
    %58 = vector.multi_reduction <add>, %57, %cst_30 [1] : vector<8x32xf32> to vector<8xf32>
    %59 = vector.shape_cast %58 : vector<8xf32> to vector<8x1xf32>
    %cst_31 = arith.constant 3.200000e+01 : f32
    %60 = vector.broadcast %cst_31 : f32 to vector<8x1xf32>
    %61 = arith.divf %59, %60 : vector<8x1xf32>
    %62 = vector.broadcast %54 : vector<8x1xf32> to vector<8x32xf32>
    %63 = arith.subf %50, %62 : vector<8x32xf32>
    %cst_32 = arith.constant 9.99999996E-13 : f32
    %64 = vector.broadcast %cst_32 : f32 to vector<8x1xf32>
    %65 = arith.addf %61, %64 : vector<8x1xf32>
    %66 = math.rsqrt %65 : vector<8x1xf32>
    %67 = vector.broadcast %66 : vector<8x1xf32> to vector<8x32xf32>
    %68 = arith.mulf %63, %67 : vector<8x32xf32>
    %c0_33 = arith.constant 0 : index
    %c0_34 = arith.constant 0 : index
    %69 = vector.load %arg8[%c0_33, %c0_34] : memref<1x32xf32, #tpu.memory_space<vmem>>, vector<1x32xf32>
    %70 = vector.broadcast %69 : vector<1x32xf32> to vector<8x32xf32>
    %71 = arith.mulf %68, %70 : vector<8x32xf32>
    %c0_35 = arith.constant 0 : index
    %c0_36 = arith.constant 0 : index
    %72 = vector.load %arg9[%c0_35, %c0_36] : memref<1x32xf32, #tpu.memory_space<vmem>>, vector<1x32xf32>
    %73 = vector.broadcast %72 : vector<1x32xf32> to vector<8x32xf32>
    %74 = arith.addf %71, %73 : vector<8x32xf32>
    %c0_37 = arith.constant 0 : index
    %c0_38 = arith.constant 0 : index
    %c0_39 = arith.constant 0 : index
    %75 = vector.load %arg10[%c0_37, %c0_38, %c0_39] : memref<1x8x32xf32, #tpu.memory_space<vmem>>, vector<1x8x32xf32>
    %76 = vector.shape_cast %75 : vector<1x8x32xf32> to vector<8x32xf32>
    %77 = vector.shape_cast %74 : vector<8x32xf32> to vector<1x8x32xf32>
    tpu.vector_store %arg10[%c0_37, %c0_38, %c0_39], %77 {strides = array<i32>} : memref<1x8x32xf32, #tpu.memory_space<vmem>>, vector<1x8x32xf32>,
    return
  }
  func.func @transform_0(%arg0: i32, %arg1: i32) -> (i32, i32, i32) {
    %c0_i32 = arith.constant 0 : i32
    %c0_i32_0 = arith.constant 0 : i32
    %c0_i32_1 = arith.constant 0 : i32
    return %arg0, %c0_i32, %c0_i32_0 : i32, i32, i32
  }
  func.func @transform_1(%arg0: i32, %arg1: i32) -> (i32, i32, i32) {
    %c0_i32 = arith.constant 0 : i32
    %c0_i32_0 = arith.constant 0 : i32
    %c0_i32_1 = arith.constant 0 : i32
    return %arg0, %c0_i32, %c0_i32_0 : i32, i32, i32
  }
  func.func @transform_2(%arg0: i32, %arg1: i32) -> (i32, i32) {
    %c0_i32 = arith.constant 0 : i32
    %c0_i32_0 = arith.constant 0 : i32
    %c0_i32_1 = arith.constant 0 : i32
    return %c0_i32, %c0_i32_0 : i32, i32
  }
  func.func @transform_3(%arg0: i32, %arg1: i32) -> (i32, i32) {
    %c0_i32 = arith.constant 0 : i32
    %c0_i32_0 = arith.constant 0 : i32
    %c0_i32_1 = arith.constant 0 : i32
    return %c0_i32, %c0_i32_0 : i32, i32
  }
  func.func @transform_4(%arg0: i32, %arg1: i32) -> (i32, i32) {
    %c0_i32 = arith.constant 0 : i32
    %c0_i32_0 = arith.constant 0 : i32
    %c0_i32_1 = arith.constant 0 : i32
    return %c0_i32, %c0_i32_0 : i32, i32
  }
  func.func @transform_5(%arg0: i32, %arg1: i32) -> (i32, i32) {
    %c0_i32 = arith.constant 0 : i32
    %c0_i32_0 = arith.constant 0 : i32
    %c0_i32_1 = arith.constant 0 : i32
    return %c0_i32, %c0_i32_0 : i32, i32
  }
  func.func @transform_6(%arg0: i32, %arg1: i32) -> (i32, i32) {
    %c0_i32 = arith.constant 0 : i32
    %c0_i32_0 = arith.constant 0 : i32
    %c0_i32_1 = arith.constant 0 : i32
    return %c0_i32, %c0_i32_0 : i32, i32
  }
  func.func @transform_7(%arg0: i32, %arg1: i32) -> (i32, i32) {
    %c0_i32 = arith.constant 0 : i32
    %c0_i32_0 = arith.constant 0 : i32
    %c0_i32_1 = arith.constant 0 : i32
    return %c0_i32, %c0_i32_0 : i32, i32
  }
  func.func @transform_8(%arg0: i32, %arg1: i32) -> (i32, i32, i32) {
    %c0_i32 = arith.constant 0 : i32
    %c0_i32_0 = arith.constant 0 : i32
    return %arg0, %arg1, %c0_i32 : i32, i32, i32
  }
}

module attributes {stable_mosaic.version = 11 : i64} {
  func.func @_bert_attention_kernel(%arg0: i32, %arg1: i32, %arg2: memref<1x8x32xf32, #tpu.memory_space<vmem>>, %arg3: memref<1x1x8xf32, #tpu.memory_space<vmem>>, %arg4: memref<32x96xbf16, #tpu.memory_space<vmem>>, %arg5: memref<1x96xf32, #tpu.memory_space<vmem>>, %arg6: memref<32x32xbf16, #tpu.memory_space<vmem>>, %arg7: memref<1x32xf32, #tpu.memory_space<vmem>>, %arg8: memref<1x32xf32, #tpu.memory_space<vmem>>, %arg9: memref<1x32xf32, #tpu.memory_space<vmem>>, %arg10: memref<1x8x32xf32, #tpu.memory_space<vmem>>, %arg11: memref<4x8x8xbf16, #tpu.memory_space<vmem>>, %arg12: memref<4x8x8xbf16, #tpu.memory_space<vmem>>, %arg13: memref<4x8x8xbf16, #tpu.memory_space<vmem>>, %arg14: memref<8x32xbf16, #tpu.memory_space<vmem>>) attributes {dimension_semantics = [#tpu.dimension_semantics<parallel>, #tpu.dimension_semantics<arbitrary>], iteration_bounds = array<i64: 2, 1>, scalar_prefetch = 0 : i64, scratch_operands = 4 : i64, tpu.core_type = #tpu.core_type<tc>, window_params = [{transform_indices = @transform_0, window_bounds = array<i64: 1, 8, 32>}, {transform_indices = @transform_1, window_bounds = array<i64: 1, 1, 8>}, {pipeline_mode = #tpu.pipeline_mode<synchronous>, transform_indices = @transform_2, window_bounds = array<i64: 32, 96>}, {pipeline_mode = #tpu.pipeline_mode<synchronous>, transform_indices = @transform_3, window_bounds = array<i64: 1, 96>}, {pipeline_mode = #tpu.pipeline_mode<synchronous>, transform_indices = @transform_4, window_bounds = array<i64: 32, 32>}, {pipeline_mode = #tpu.pipeline_mode<synchronous>, transform_indices = @transform_5, window_bounds = array<i64: 1, 32>}, {pipeline_mode = #tpu.pipeline_mode<synchronous>, transform_indices = @transform_6, window_bounds = array<i64: 1, 32>}, {pipeline_mode = #tpu.pipeline_mode<synchronous>, transform_indices = @transform_7, window_bounds = array<i64: 1, 32>}, {transform_indices = @transform_8, window_bounds = array<i64: 1, 8, 32>}]} {
    %c0_i32 = arith.constant 0 : i32
    %0 = arith.cmpi eq, %arg1, %c0_i32 : i32
    %1 = arith.extui %0 : i1 to i32
    %c0_i32_0 = arith.constant 0 : i32
    %2 = arith.cmpi ne, %1, %c0_i32_0 : i32
    scf.if %2 {
      %c0_40 = arith.constant 0 : index
      %c0_41 = arith.constant 0 : index
      %c0_42 = arith.constant 0 : index
      %78 = vector.load %arg2[%c0_40, %c0_41, %c0_42] : memref<1x8x32xf32, #tpu.memory_space<vmem>>, vector<1x8x32xf32>
      %79 = vector.shape_cast %78 : vector<1x8x32xf32> to vector<8x32xf32>
      %80 = arith.truncf %79 : vector<8x32xf32> to vector<8x32xbf16>
      %c0_43 = arith.constant 0 : index
      %c0_44 = arith.constant 0 : index
      %81 = vector.load %arg4[%c0_43, %c0_44] : memref<32x96xbf16, #tpu.memory_space<vmem>>, vector<32x96xbf16>
      %cst_45 = arith.constant dense<0.000000e+00> : vector<8x96xf32>
      %82 = tpu.matmul %80, %81, %cst_45 {dimension_numbers = #tpu.dot_dimension_numbers<[1], [0], [0], [1], [0, 0, 1, 1], [], []>} : vector<8x32xbf16>, vector<32x96xbf16>, vector<8x96xf32> -> vector<8x96xf32>
      %c0_46 = arith.constant 0 : index
      %c0_47 = arith.constant 0 : index
      %83 = vector.load %arg5[%c0_46, %c0_47] : memref<1x96xf32, #tpu.memory_space<vmem>>, vector<1x96xf32>
      %84 = vector.broadcast %83 : vector<1x96xf32> to vector<8x96xf32>
      %85 = arith.addf %82, %84 : vector<8x96xf32>
      %86 = arith.truncf %85 : vector<8x96xf32> to vector<8x96xbf16>
      %87 = vector.extract_strided_slice %86 {offsets = [0, 0], sizes = [8, 8], strides = [1, 1]} : vector<8x96xbf16> to vector<8x8xbf16>
      %c0_48 = arith.constant 0 : index
      %c0_49 = arith.constant 0 : index
      %c0_50 = arith.constant 0 : index
      %88 = vector.load %arg11[%c0_48, %c0_49, %c0_50] : memref<4x8x8xbf16, #tpu.memory_space<vmem>>, vector<1x8x8xbf16>
      %89 = vector.shape_cast %88 : vector<1x8x8xbf16> to vector<8x8xbf16>
      %90 = vector.shape_cast %87 : vector<8x8xbf16> to vector<1x8x8xbf16>
      tpu.vector_store %arg11[%c0_48, %c0_49, %c0_50], %90 {strides = array<i32>} : memref<4x8x8xbf16, #tpu.memory_space<vmem>>, vector<1x8x8xbf16>,
      %91 = vector.extract_strided_slice %86 {offsets = [0, 32], sizes = [8, 8], strides = [1, 1]} : vector<8x96xbf16> to vector<8x8xbf16>
      %c0_51 = arith.constant 0 : index
      %c0_52 = arith.constant 0 : index
      %c0_53 = arith.constant 0 : index
      %92 = vector.load %arg12[%c0_51, %c0_52, %c0_53] : memref<4x8x8xbf16, #tpu.memory_space<vmem>>, vector<1x8x8xbf16>
      %93 = vector.shape_cast %92 : vector<1x8x8xbf16> to vector<8x8xbf16>
      %94 = vector.shape_cast %91 : vector<8x8xbf16> to vector<1x8x8xbf16>
      tpu.vector_store %arg12[%c0_51, %c0_52, %c0_53], %94 {strides = array<i32>} : memref<4x8x8xbf16, #tpu.memory_space<vmem>>, vector<1x8x8xbf16>,
      %95 = vector.extract_strided_slice %86 {offsets = [0, 64], sizes = [8, 8], strides = [1, 1]} : vector<8x96xbf16> to vector<8x8xbf16>
      %c0_54 = arith.constant 0 : index
      %c0_55 = arith.constant 0 : index
      %c0_56 = arith.constant 0 : index
      %96 = vector.load %arg13[%c0_54, %c0_55, %c0_56] : memref<4x8x8xbf16, #tpu.memory_space<vmem>>, vector<1x8x8xbf16>
      %97 = vector.shape_cast %96 : vector<1x8x8xbf16> to vector<8x8xbf16>
      %98 = vector.shape_cast %95 : vector<8x8xbf16> to vector<1x8x8xbf16>
      tpu.vector_store %arg13[%c0_54, %c0_55, %c0_56], %98 {strides = array<i32>} : memref<4x8x8xbf16, #tpu.memory_space<vmem>>, vector<1x8x8xbf16>,
      %99 = vector.extract_strided_slice %86 {offsets = [0, 8], sizes = [8, 8], strides = [1, 1]} : vector<8x96xbf16> to vector<8x8xbf16>
      %c1 = arith.constant 1 : index
      %c0_57 = arith.constant 0 : index
      %c0_58 = arith.constant 0 : index
      %100 = vector.load %arg11[%c1, %c0_57, %c0_58] : memref<4x8x8xbf16, #tpu.memory_space<vmem>>, vector<1x8x8xbf16>
      %101 = vector.shape_cast %100 : vector<1x8x8xbf16> to vector<8x8xbf16>
      %102 = vector.shape_cast %99 : vector<8x8xbf16> to vector<1x8x8xbf16>
      tpu.vector_store %arg11[%c1, %c0_57, %c0_58], %102 {strides = array<i32>} : memref<4x8x8xbf16, #tpu.memory_space<vmem>>, vector<1x8x8xbf16>,
      %103 = vector.extract_strided_slice %86 {offsets = [0, 40], sizes = [8, 8], strides = [1, 1]} : vector<8x96xbf16> to vector<8x8xbf16>
      %c1_59 = arith.constant 1 : index
      %c0_60 = arith.constant 0 : index
      %c0_61 = arith.constant 0 : index
      %104 = vector.load %arg12[%c1_59, %c0_60, %c0_61] : memref<4x8x8xbf16, #tpu.memory_space<vmem>>, vector<1x8x8xbf16>
      %105 = vector.shape_cast %104 : vector<1x8x8xbf16> to vector<8x8xbf16>
      %106 = vector.shape_cast %103 : vector<8x8xbf16> to vector<1x8x8xbf16>
      tpu.vector_store %arg12[%c1_59, %c0_60, %c0_61], %106 {strides = array<i32>} : memref<4x8x8xbf16, #tpu.memory_space<vmem>>, vector<1x8x8xbf16>,
      %107 = vector.extract_strided_slice %86 {offsets = [0, 72], sizes = [8, 8], strides = [1, 1]} : vector<8x96xbf16> to vector<8x8xbf16>
      %c1_62 = arith.constant 1 : index
      %c0_63 = arith.constant 0 : index
      %c0_64 = arith.constant 0 : index
      %108 = vector.load %arg13[%c1_62, %c0_63, %c0_64] : memref<4x8x8xbf16, #tpu.memory_space<vmem>>, vector<1x8x8xbf16>
      %109 = vector.shape_cast %108 : vector<1x8x8xbf16> to vector<8x8xbf16>
      %110 = vector.shape_cast %107 : vector<8x8xbf16> to vector<1x8x8xbf16>
      tpu.vector_store %arg13[%c1_62, %c0_63, %c0_64], %110 {strides = array<i32>} : memref<4x8x8xbf16, #tpu.memory_space<vmem>>, vector<1x8x8xbf16>,
      %111 = vector.extract_strided_slice %86 {offsets = [0, 16], sizes = [8, 8], strides = [1, 1]} : vector<8x96xbf16> to vector<8x8xbf16>
      %c2 = arith.constant 2 : index
      %c0_65 = arith.constant 0 : index
      %c0_66 = arith.constant 0 : index
      %112 = vector.load %arg11[%c2, %c0_65, %c0_66] : memref<4x8x8xbf16, #tpu.memory_space<vmem>>, vector<1x8x8xbf16>
      %113 = vector.shape_cast %112 : vector<1x8x8xbf16> to vector<8x8xbf16>
      %114 = vector.shape_cast %111 : vector<8x8xbf16> to vector<1x8x8xbf16>
      tpu.vector_store %arg11[%c2, %c0_65, %c0_66], %114 {strides = array<i32>} : memref<4x8x8xbf16, #tpu.memory_space<vmem>>, vector<1x8x8xbf16>,
      %115 = vector.extract_strided_slice %86 {offsets = [0, 48], sizes = [8, 8], strides = [1, 1]} : vector<8x96xbf16> to vector<8x8xbf16>
      %c2_67 = arith.constant 2 : index
      %c0_68 = arith.constant 0 : index
      %c0_69 = arith.constant 0 : index
      %116 = vector.load %arg12[%c2_67, %c0_68, %c0_69] : memref<4x8x8xbf16, #tpu.memory_space<vmem>>, vector<1x8x8xbf16>
      %117 = vector.shape_cast %116 : vector<1x8x8xbf16> to vector<8x8xbf16>
      %118 = vector.shape_cast %115 : vector<8x8xbf16> to vector<1x8x8xbf16>
      tpu.vector_store %arg12[%c2_67, %c0_68, %c0_69], %118 {strides = array<i32>} : memref<4x8x8xbf16, #tpu.memory_space<vmem>>, vector<1x8x8xbf16>,
      %119 = vector.extract_strided_slice %86 {offsets = [0, 80], sizes = [8, 8], strides = [1, 1]} : vector<8x96xbf16> to vector<8x8xbf16>
      %c2_70 = arith.constant 2 : index
      %c0_71 = arith.constant 0 : index
      %c0_72 = arith.constant 0 : index
      %120 = vector.load %arg13[%c2_70, %c0_71, %c0_72] : memref<4x8x8xbf16, #tpu.memory_space<vmem>>, vector<1x8x8xbf16>
      %121 = vector.shape_cast %120 : vector<1x8x8xbf16> to vector<8x8xbf16>
      %122 = vector.shape_cast %119 : vector<8x8xbf16> to vector<1x8x8xbf16>
      tpu.vector_store %arg13[%c2_70, %c0_71, %c0_72], %122 {strides = array<i32>} : memref<4x8x8xbf16, #tpu.memory_space<vmem>>, vector<1x8x8xbf16>,
      %123 = vector.extract_strided_slice %86 {offsets = [0, 24], sizes = [8, 8], strides = [1, 1]} : vector<8x96xbf16> to vector<8x8xbf16>
      %c3 = arith.constant 3 : index
      %c0_73 = arith.constant 0 : index
      %c0_74 = arith.constant 0 : index
      %124 = vector.load %arg11[%c3, %c0_73, %c0_74] : memref<4x8x8xbf16, #tpu.memory_space<vmem>>, vector<1x8x8xbf16>
      %125 = vector.shape_cast %124 : vector<1x8x8xbf16> to vector<8x8xbf16>
      %126 = vector.shape_cast %123 : vector<8x8xbf16> to vector<1x8x8xbf16>
      tpu.vector_store %arg11[%c3, %c0_73, %c0_74], %126 {strides = array<i32>} : memref<4x8x8xbf16, #tpu.memory_space<vmem>>, vector<1x8x8xbf16>,
      %127 = vector.extract_strided_slice %86 {offsets = [0, 56], sizes = [8, 8], strides = [1, 1]} : vector<8x96xbf16> to vector<8x8xbf16>
      %c3_75 = arith.constant 3 : index
      %c0_76 = arith.constant 0 : index
      %c0_77 = arith.constant 0 : index
      %128 = vector.load %arg12[%c3_75, %c0_76, %c0_77] : memref<4x8x8xbf16, #tpu.memory_space<vmem>>, vector<1x8x8xbf16>
      %129 = vector.shape_cast %128 : vector<1x8x8xbf16> to vector<8x8xbf16>
      %130 = vector.shape_cast %127 : vector<8x8xbf16> to vector<1x8x8xbf16>
      tpu.vector_store %arg12[%c3_75, %c0_76, %c0_77], %130 {strides = array<i32>} : memref<4x8x8xbf16, #tpu.memory_space<vmem>>, vector<1x8x8xbf16>,
      %131 = vector.extract_strided_slice %86 {offsets = [0, 88], sizes = [8, 8], strides = [1, 1]} : vector<8x96xbf16> to vector<8x8xbf16>
      %c3_78 = arith.constant 3 : index
      %c0_79 = arith.constant 0 : index
      %c0_80 = arith.constant 0 : index
      %132 = vector.load %arg13[%c3_78, %c0_79, %c0_80] : memref<4x8x8xbf16, #tpu.memory_space<vmem>>, vector<1x8x8xbf16>
      %133 = vector.shape_cast %132 : vector<1x8x8xbf16> to vector<8x8xbf16>
      %134 = vector.shape_cast %131 : vector<8x8xbf16> to vector<1x8x8xbf16>
      tpu.vector_store %arg13[%c3_78, %c0_79, %c0_80], %134 {strides = array<i32>} : memref<4x8x8xbf16, #tpu.memory_space<vmem>>, vector<1x8x8xbf16>,
    } else {
    }
    %c8_i32 = arith.constant 8 : i32
    %3 = arith.muli %arg1, %c8_i32 : i32
    %4 = tpu.assume_multiple %3, 8 : i32
    %c0 = arith.constant 0 : index
    %c0_1 = arith.constant 0 : index
    %c0_2 = arith.constant 0 : index
    %5 = vector.load %arg3[%c0, %c0_1, %c0_2] : memref<1x1x8xf32, #tpu.memory_space<vmem>>, vector<1x1x8xf32>
    %c0_3 = arith.constant 0 : index
    %6 = arith.index_cast %4 : i32 to index
    %c0_4 = arith.constant 0 : index
    %7 = vector.load %arg11[%c0_3, %6, %c0_4] : memref<4x8x8xbf16, #tpu.memory_space<vmem>>, vector<4x8x8xbf16>
    %c0_5 = arith.constant 0 : index
    %c0_6 = arith.constant 0 : index
    %c0_7 = arith.constant 0 : index
    %8 = vector.load %arg12[%c0_5, %c0_6, %c0_7] : memref<4x8x8xbf16, #tpu.memory_space<vmem>>, vector<4x8x8xbf16>
    %c0_8 = arith.constant 0 : index
    %c0_9 = arith.constant 0 : index
    %c0_10 = arith.constant 0 : index
    %9 = vector.load %arg13[%c0_8, %c0_9, %c0_10] : memref<4x8x8xbf16, #tpu.memory_space<vmem>>, vector<4x8x8xbf16>
    "tpu.trace_start"() <{level = 10 : i32, message = "gqd,gkd->gqk"}> : () -> ()
    %cst = arith.constant dense<0.000000e+00> : vector<4x8x8xf32>
    %10 = tpu.matmul %7, %8, %cst {dimension_numbers = #tpu.dot_dimension_numbers<[2], [2], [1], [1], [0, 0, 0, 1, 1, 1], [0], [0]>} : vector<4x8x8xbf16>, vector<4x8x8xbf16>, vector<4x8x8xf32> -> vector<4x8x8xf32>
    "tpu.trace_stop"() : () -> ()
    %11 = vector.broadcast %5 : vector<1x1x8xf32> to vector<4x8x8xf32>
    %12 = arith.addf %10, %11 : vector<4x8x8xf32>
    %cst_11 = arith.constant dense<0xFF800000> : vector<4x8xf32>
    %13 = vector.multi_reduction <maximumf>, %12, %cst_11 [2] : vector<4x8x8xf32> to vector<4x8xf32>
    %14 = vector.shape_cast %13 : vector<4x8xf32> to vector<4x8x1xf32>
    %15 = vector.broadcast %14 : vector<4x8x1xf32> to vector<4x8x8xf32>
    %16 = arith.subf %12, %15 : vector<4x8x8xf32>
    %17 = math.exp %16 : vector<4x8x8xf32>
    %cst_12 = arith.constant dense<0.000000e+00> : vector<4x8xf32>
    %18 = vector.multi_reduction <add>, %17, %cst_12 [2] : vector<4x8x8xf32> to vector<4x8xf32>
    %19 = vector.shape_cast %18 : vector<4x8xf32> to vector<4x8x1xf32>
    %20 = tpu.reciprocal %19 {approx = true} : vector<4x8x1xf32> -> vector<4x8x1xf32>
    %21 = vector.broadcast %20 : vector<4x8x1xf32> to vector<4x8x8xf32>
    %22 = arith.mulf %17, %21 : vector<4x8x8xf32>
    %23 = arith.truncf %22 : vector<4x8x8xf32> to vector<4x8x8xbf16>
    "tpu.trace_start"() <{level = 10 : i32, message = "gqk,gkd->gqd"}> : () -> ()
    %cst_13 = arith.constant dense<0.000000e+00> : vector<4x8x8xf32>
    %24 = tpu.matmul %23, %9, %cst_13 {dimension_numbers = #tpu.dot_dimension_numbers<[2], [1], [1], [2], [0, 0, 0, 1, 1, 2], [0], [0]>} : vector<4x8x8xbf16>, vector<4x8x8xbf16>, vector<4x8x8xf32> -> vector<4x8x8xf32>
    "tpu.trace_stop"() : () -> ()
    %25 = vector.extract_strided_slice %24 {offsets = [0, 0, 0], sizes = [1, 8, 8], strides = [1, 1, 1]} : vector<4x8x8xf32> to vector<1x8x8xf32>
    %26 = vector.shape_cast %25 : vector<1x8x8xf32> to vector<8x8xf32>
    %27 = arith.truncf %26 : vector<8x8xf32> to vector<8x8xbf16>
    %c0_14 = arith.constant 0 : index
    %c0_15 = arith.constant 0 : index
    %28 = vector.load %arg14[%c0_14, %c0_15] : memref<8x32xbf16, #tpu.memory_space<vmem>>, vector<8x8xbf16>
    tpu.vector_store %arg14[%c0_14, %c0_15], %27 {strides = array<i32>} : memref<8x32xbf16, #tpu.memory_space<vmem>>, vector<8x8xbf16>,
    %29 = vector.extract_strided_slice %24 {offsets = [1, 0, 0], sizes = [1, 8, 8], strides = [1, 1, 1]} : vector<4x8x8xf32> to vector<1x8x8xf32>
    %30 = vector.shape_cast %29 : vector<1x8x8xf32> to vector<8x8xf32>
    %31 = arith.truncf %30 : vector<8x8xf32> to vector<8x8xbf16>
    %c0_16 = arith.constant 0 : index
    %c8 = arith.constant 8 : index
    %32 = vector.load %arg14[%c0_16, %c8] : memref<8x32xbf16, #tpu.memory_space<vmem>>, vector<8x8xbf16>
    tpu.vector_store %arg14[%c0_16, %c8], %31 {strides = array<i32>} : memref<8x32xbf16, #tpu.memory_space<vmem>>, vector<8x8xbf16>,
    %33 = vector.extract_strided_slice %24 {offsets = [2, 0, 0], sizes = [1, 8, 8], strides = [1, 1, 1]} : vector<4x8x8xf32> to vector<1x8x8xf32>
    %34 = vector.shape_cast %33 : vector<1x8x8xf32> to vector<8x8xf32>
    %35 = arith.truncf %34 : vector<8x8xf32> to vector<8x8xbf16>
    %c0_17 = arith.constant 0 : index
    %c16 = arith.constant 16 : index
    %36 = vector.load %arg14[%c0_17, %c16] : memref<8x32xbf16, #tpu.memory_space<vmem>>, vector<8x8xbf16>
    tpu.vector_store %arg14[%c0_17, %c16], %35 {strides = array<i32>} : memref<8x32xbf16, #tpu.memory_space<vmem>>, vector<8x8xbf16>,
    %37 = vector.extract_strided_slice %24 {offsets = [3, 0, 0], sizes = [1, 8, 8], strides = [1, 1, 1]} : vector<4x8x8xf32> to vector<1x8x8xf32>
    %38 = vector.shape_cast %37 : vector<1x8x8xf32> to vector<8x8xf32>
    %39 = arith.truncf %38 : vector<8x8xf32> to vector<8x8xbf16>
    %c0_18 = arith.constant 0 : index
    %c24 = arith.constant 24 : index
    %40 = vector.load %arg14[%c0_18, %c24] : memref<8x32xbf16, #tpu.memory_space<vmem>>, vector<8x8xbf16>
    tpu.vector_store %arg14[%c0_18, %c24], %39 {strides = array<i32>} : memref<8x32xbf16, #tpu.memory_space<vmem>>, vector<8x8xbf16>,
    %c0_19 = arith.constant 0 : index
    %c0_20 = arith.constant 0 : index
    %41 = vector.load %arg14[%c0_19, %c0_20] : memref<8x32xbf16, #tpu.memory_space<vmem>>, vector<8x32xbf16>
    %c0_21 = arith.constant 0 : index
    %c0_22 = arith.constant 0 : index
    %42 = vector.load %arg6[%c0_21, %c0_22] : memref<32x32xbf16, #tpu.memory_space<vmem>>, vector<32x32xbf16>
    %cst_23 = arith.constant dense<0.000000e+00> : vector<8x32xf32>
    %43 = tpu.matmul %41, %42, %cst_23 {dimension_numbers = #tpu.dot_dimension_numbers<[1], [0], [0], [1], [0, 0, 1, 1], [], []>} : vector<8x32xbf16>, vector<32x32xbf16>, vector<8x32xf32> -> vector<8x32xf32>
    %c0_24 = arith.constant 0 : index
    %c0_25 = arith.constant 0 : index
    %44 = vector.load %arg7[%c0_24, %c0_25] : memref<1x32xf32, #tpu.memory_space<vmem>>, vector<1x32xf32>
    %45 = vector.broadcast %44 : vector<1x32xf32> to vector<8x32xf32>
    %46 = arith.addf %43, %45 : vector<8x32xf32>
    %c0_26 = arith.constant 0 : index
    %47 = arith.index_cast %4 : i32 to index
    %c0_27 = arith.constant 0 : index
    %48 = vector.load %arg2[%c0_26, %47, %c0_27] : memref<1x8x32xf32, #tpu.memory_space<vmem>>, vector<1x8x32xf32>
    %49 = vector.shape_cast %48 : vector<1x8x32xf32> to vector<8x32xf32>
    %50 = arith.addf %46, %49 : vector<8x32xf32>
    %cst_28 = arith.constant dense<0.000000e+00> : vector<8xf32>
    %51 = vector.multi_reduction <add>, %50, %cst_28 [1] : vector<8x32xf32> to vector<8xf32>
    %52 = vector.shape_cast %51 : vector<8xf32> to vector<8x1xf32>
    %cst_29 = arith.constant 3.200000e+01 : f32
    %53 = vector.broadcast %cst_29 : f32 to vector<8x1xf32>
    %54 = arith.divf %52, %53 : vector<8x1xf32>
    %55 = vector.broadcast %54 : vector<8x1xf32> to vector<8x32xf32>
    %56 = arith.subf %50, %55 : vector<8x32xf32>
    %57 = arith.mulf %56, %56 : vector<8x32xf32>
    %cst_30 = arith.constant dense<0.000000e+00> : vector<8xf32>
    %58 = vector.multi_reduction <add>, %57, %cst_30 [1] : vector<8x32xf32> to vector<8xf32>
    %59 = vector.shape_cast %58 : vector<8xf32> to vector<8x1xf32>
    %cst_31 = arith.constant 3.200000e+01 : f32
    %60 = vector.broadcast %cst_31 : f32 to vector<8x1xf32>
    %61 = arith.divf %59, %60 : vector<8x1xf32>
    %62 = vector.broadcast %54 : vector<8x1xf32> to vector<8x32xf32>
    %63 = arith.subf %50, %62 : vector<8x32xf32>
    %cst_32 = arith.constant 9.99999996E-13 : f32
    %64 = vector.broadcast %cst_32 : f32 to vector<8x1xf32>
    %65 = arith.addf %61, %64 : vector<8x1xf32>
    %66 = math.rsqrt %65 : vector<8x1xf32>
    %67 = vector.broadcast %66 : vector<8x1xf32> to vector<8x32xf32>
    %68 = arith.mulf %63, %67 : vector<8x32xf32>
    %c0_33 = arith.constant 0 : index
    %c0_34 = arith.constant 0 : index
    %69 = vector.load %arg8[%c0_33, %c0_34] : memref<1x32xf32, #tpu.memory_space<vmem>>, vector<1x32xf32>
    %70 = vector.broadcast %69 : vector<1x32xf32> to vector<8x32xf32>
    %71 = arith.mulf %68, %70 : vector<8x32xf32>
    %c0_35 = arith.constant 0 : index
    %c0_36 = arith.constant 0 : index
    %72 = vector.load %arg9[%c0_35, %c0_36] : memref<1x32xf32, #tpu.memory_space<vmem>>, vector<1x32xf32>
    %73 = vector.broadcast %72 : vector<1x32xf32> to vector<8x32xf32>
    %74 = arith.addf %71, %73 : vector<8x32xf32>
    %c0_37 = arith.constant 0 : index
    %c0_38 = arith.constant 0 : index
    %c0_39 = arith.constant 0 : index
    %75 = vector.load %arg10[%c0_37, %c0_38, %c0_39] : memref<1x8x32xf32, #tpu.memory_space<vmem>>, vector<1x8x32xf32>
    %76 = vector.shape_cast %75 : vector<1x8x32xf32> to vector<8x32xf32>
    %77 = vector.shape_cast %74 : vector<8x32xf32> to vector<1x8x32xf32>
    tpu.vector_store %arg10[%c0_37, %c0_38, %c0_39], %77 {strides = array<i32>} : memref<1x8x32xf32, #tpu.memory_space<vmem>>, vector<1x8x32xf32>,
    return
  }
  func.func @transform_0(%arg0: i32, %arg1: i32) -> (i32, i32, i32) {
    %c0_i32 = arith.constant 0 : i32
    %c0_i32_0 = arith.constant 0 : i32
    %c0_i32_1 = arith.constant 0 : i32
    return %arg0, %c0_i32, %c0_i32_0 : i32, i32, i32
  }
  func.func @transform_1(%arg0: i32, %arg1: i32) -> (i32, i32, i32) {
    %c0_i32 = arith.constant 0 : i32
    %c0_i32_0 = arith.constant 0 : i32
    %c0_i32_1 = arith.constant 0 : i32
    return %arg0, %c0_i32, %c0_i32_0 : i32, i32, i32
  }
  func.func @transform_2(%arg0: i32, %arg1: i32) -> (i32, i32) {
    %c0_i32 = arith.constant 0 : i32
    %c0_i32_0 = arith.constant 0 : i32
    %c0_i32_1 = arith.constant 0 : i32
    return %c0_i32, %c0_i32_0 : i32, i32
  }
  func.func @transform_3(%arg0: i32, %arg1: i32) -> (i32, i32) {
    %c0_i32 = arith.constant 0 : i32
    %c0_i32_0 = arith.constant 0 : i32
    %c0_i32_1 = arith.constant 0 : i32
    return %c0_i32, %c0_i32_0 : i32, i32
  }
  func.func @transform_4(%arg0: i32, %arg1: i32) -> (i32, i32) {
    %c0_i32 = arith.constant 0 : i32
    %c0_i32_0 = arith.constant 0 : i32
    %c0_i32_1 = arith.constant 0 : i32
    return %c0_i32, %c0_i32_0 : i32, i32
  }
  func.func @transform_5(%arg0: i32, %arg1: i32) -> (i32, i32) {
    %c0_i32 = arith.constant 0 : i32
    %c0_i32_0 = arith.constant 0 : i32
    %c0_i32_1 = arith.constant 0 : i32
    return %c0_i32, %c0_i32_0 : i32, i32
  }
  func.func @transform_6(%arg0: i32, %arg1: i32) -> (i32, i32) {
    %c0_i32 = arith.constant 0 : i32
    %c0_i32_0 = arith.constant 0 : i32
    %c0_i32_1 = arith.constant 0 : i32
    return %c0_i32, %c0_i32_0 : i32, i32
  }
  func.func @transform_7(%arg0: i32, %arg1: i32) -> (i32, i32) {
    %c0_i32 = arith.constant 0 : i32
    %c0_i32_0 = arith.constant 0 : i32
    %c0_i32_1 = arith.constant 0 : i32
    return %c0_i32, %c0_i32_0 : i32, i32
  }
  func.func @transform_8(%arg0: i32, %arg1: i32) -> (i32, i32, i32) {
    %c0_i32 = arith.constant 0 : i32
    %c0_i32_0 = arith.constant 0 : i32
    return %arg0, %arg1, %c0_i32 : i32, i32, i32
  }
}

</mosaic_0001>

<llo_original>
// kernel: tpu_custom_call.1
$region0: #{tpu_custom_call.1}
  #allocation0 [shape = 'u32[]', space=smem, size = 0x4, offset = 0x4, fixed_abs, tag = 'smem constant byte address 0x4 - core index']
  #allocation1 [shape = 'u32[144,128]{1,0:T(1,128)}', space=vmem, size = 0x12000, scoped, tag = 'internal scratch']
  #allocation2 [shape = 'bf16[4,8,8]{2,1,0:T(8,128)(2,1)}', space=vmem, size = 0x2000, scoped, tag = 'scratch operand']
  #allocation3 [shape = 'bf16[4,8,8]{2,1,0:T(8,128)(2,1)}', space=vmem, size = 0x2000, scoped, tag = 'scratch operand']
  #allocation4 [shape = 'bf16[4,8,8]{2,1,0:T(8,128)(2,1)}', space=vmem, size = 0x2000, scoped, tag = 'scratch operand']
  #allocation5 [shape = 'bf16[8,32]{1,0:T(8,128)(2,1)}', space=vmem, size = 0x800, scoped, tag = 'scratch operand']
  %s0 = inlined_call_operand.hbm [shape: f32[2,8,32], index: 0, kind: input, shape index: {}]
  %s1 = inlined_call_operand.vmem [shape: f32[2,1,8], index: 1, kind: input, shape index: {}]
  %s2 = inlined_call_operand.hbm [shape: bf16[32,96], index: 2, kind: input, shape index: {}]
  %s3 = inlined_call_operand.vmem [shape: f32[1,96], index: 3, kind: input, shape index: {}]
  %s4 = inlined_call_operand.hbm [shape: bf16[32,32], index: 4, kind: input, shape index: {}]
  %s5 = inlined_call_operand.vmem [shape: f32[1,32], index: 5, kind: input, shape index: {}]
  %s6 = inlined_call_operand.vmem [shape: f32[1,32], index: 6, kind: input, shape index: {}]
  %s7 = inlined_call_operand.vmem [shape: f32[1,32], index: 7, kind: input, shape index: {}]
  %s8 = inlined_call_operand.hbm [shape: f32[2,8,32], index: 8, kind: output, shape index: {}]
  %s9 = sld [smem:[#allocation0]]
  $region81: #{tpu_custom_call.1} parent=0
    _
  %s11 = ssub.s32 1, %s9
  %s12 = scalar_select 0, %s11, %s9
  $region1: #{tpu_custom_call.1} parent=0
    #allocation6 [shape = 'u8[8192]{0}', space=vmem, size = 0x2000, scoped, tag = 'input window, operand 0']
    #allocation7 [shape = 's32[2]{0}', space=sflag, size = 0x8, scoped, tag = 'scoped memory for tpu_custom_call.1']
    #allocation8 [shape = 's32[2]{0}', space=sflag, size = 0x8, scoped, tag = 'scoped memory for tpu_custom_call.1']
    #allocation9 [shape = 'u8[8192]{0}', space=vmem, size = 0x2000, scoped, tag = 'input window, operand 2, single buffered']
    #allocation10 [shape = 's32[1]{0}', space=sflag, size = 0x4, scoped, tag = 'scoped memory for tpu_custom_call.1']
    #allocation11 [shape = 'u8[8192]{0}', space=vmem, size = 0x2000, scoped, tag = 'input window, operand 4, single buffered']
    #allocation12 [shape = 'u8[8192]{0}', space=vmem, size = 0x2000, scoped, tag = 'output window, operand 0']
    %13 = vsyncpa [#allocation7], 0
    %s14 = scalar_lea.sflag [#allocation7], 1
    %15 = vsyncpa %s14, 0
    %16 = vsyncpa [#allocation10], 0
    %17 = vsyncpa [#allocation8], 0
    %s18 = scalar_lea.sflag [#allocation8], 1
    %19 = vsyncpa %s18, 0
    loop: start=0, step=1, limit=4
    $region2: #{tpu_custom_call.1} parent=1 // loop_pre_header
      _
    $region3: #{tpu_custom_call.1} parent=1 // loop_header
      %s21 = sphi 0, %s25
      %p22 = scmp.ge.s32.totalorder %s21, 4
      %s28 = sphi 0, %s40
      %s29 = sphi 0, %s36
      %s30 = sphi 0, %s28
      %s31 = sphi 0, %s29
      %s32 = sphi 0, %s30
      %s33 = sphi 0, %s31
      %s43 = sphi 0, %s45
      %s46 = sphi 0, %s43
      %s47 = sphi 0, %s46
      %s63 = sphi 0, %s47
      %s69 = sphi 0, %s71
      %s72 = sphi 0, %s69
      %s73 = sphi 0, %s72
      %s89 = sphi 0, %s73
      %s93 = sphi 0, %s93
      %s95 = sphi 0, %s93
      %s96 = sphi 0, %s95
      %s110 = sphi 0, %s96
      %s114 = sphi 0, %s114
      %s116 = sphi 0, %s114
      %s117 = sphi 0, %s116
      %s131 = sphi 0, %s117
      %s135 = sphi 0, %s135
      %s137 = sphi 0, %s135
      %s138 = sphi 0, %s137
      %s152 = sphi 0, %s138
      %s156 = sphi 0, %s156
      %s158 = sphi 0, %s156
      %s159 = sphi 0, %s158
      %s173 = sphi 0, %s159
      %s177 = sphi 0, %s177
      %s179 = sphi 0, %s177
      %s180 = sphi 0, %s179
      %s194 = sphi 0, %s180
      %s198 = sphi 0, %s198
      %s200 = sphi 0, %s198
      %s201 = sphi 0, %s200
      %s215 = sphi 0, %s201
      %s223 = sphi 0, %s225
      %s226 = sphi 0, %s223
      %s227 = sphi 0, %s226
      %s243 = sphi 0, %s227
    $region4: #{tpu_custom_call.1} parent=1 // loop_header_branch
      %24 = sbr.rel (%p22) target = $region8
    $region5: #{tpu_custom_call.1} parent=1 // loop_body
      %s26 = ssub.s32 %s21, 1
      %s27 = ssub.s32 %s21, 2
      %s34 = sadd.s32 1, %s29
      %p35 = scmp.ge.s32.totalorder %s34, 1
      %s36 = scalar_select %p35, 0, %s34
      %s37 = sadd.s32 1, %s28
      %s38 = scalar_select %p35, %s37, %s28
      %p39 = scmp.ge.s32.totalorder %s38, 2
      %s40 = scalar_select %p39, 0, %s38
      %s41 = ssub.s32 %s28, %s40
      %p42 = scmp.eq.s32.totalorder %s41, 0
      %s44 = sadd.s32 %s43, 1
      %s45 = scalar_select %p42, %s43, %s44
      %p48 = pneg %p42
      %p49 = scmp.eq.s32.totalorder %s21, 1
      %p50 = por %p48, %p49
      %p51 = scmp.ne.s32.totalorder %s43, %s46
      %p52 = scmp.eq.s32.totalorder %s21, 0
      %p53 = por %p51, %p52
      %p54 = scmp.ne.s32.totalorder %s43, %s46
      %p55 = scmp.eq.s32.totalorder %s26, 1
      %p56 = por %p54, %p55
      %p57 = scmp.ne.s32.totalorder %s46, %s47
      %p58 = scmp.eq.s32.totalorder %s26, 0
      %p59 = por %p57, %p58
      %p60 = scmp.ne.s32.totalorder %s46, %s47
      %p61 = scmp.eq.s32.totalorder %s27, 1
      %p62 = por %p60, %p61
      %p64 = scmp.ne.s32.totalorder %s47, %s63
      %p65 = scmp.eq.s32.totalorder %s27, 0
      %p66 = por %p64, %p65
      %s67 = ssub.s32 %s28, %s40
      %p68 = scmp.eq.s32.totalorder %s67, 0
      %s70 = sadd.s32 %s69, 1
      %s71 = scalar_select %p68, %s69, %s70
      %p74 = pneg %p68
      %p75 = scmp.eq.s32.totalorder %s21, 1
      %p76 = por %p74, %p75
      %p77 = scmp.ne.s32.totalorder %s69, %s72
      %p78 = scmp.eq.s32.totalorder %s21, 0
      %p79 = por %p77, %p78
      %p80 = scmp.ne.s32.totalorder %s69, %s72
      %p81 = scmp.eq.s32.totalorder %s26, 1
      %p82 = por %p80, %p81
      %p83 = scmp.ne.s32.totalorder %s72, %s73
      %p84 = scmp.eq.s32.totalorder %s26, 0
      %p85 = por %p83, %p84
      %p86 = scmp.ne.s32.totalorder %s72, %s73
      %p87 = scmp.eq.s32.totalorder %s27, 1
      %p88 = por %p86, %p87
      %p90 = scmp.ne.s32.totalorder %s73, %s89
      %p91 = scmp.eq.s32.totalorder %s27, 0
      %p92 = por %p90, %p91
      %s94 = sadd.s32 %s93, 1
      %p97 = scmp.eq.s32.totalorder %s21, 1
      %p98 = scmp.ne.s32.totalorder %s93, %s95
      %p99 = scmp.eq.s32.totalorder %s21, 0
      %p100 = por %p98, %p99
      %p101 = scmp.ne.s32.totalorder %s93, %s95
      %p102 = scmp.eq.s32.totalorder %s26, 1
      %p103 = por %p101, %p102
      %p104 = scmp.ne.s32.totalorder %s95, %s96
      %p105 = scmp.eq.s32.totalorder %s26, 0
      %p106 = por %p104, %p105
      %p107 = scmp.ne.s32.totalorder %s95, %s96
      %p108 = scmp.eq.s32.totalorder %s27, 1
      %p109 = por %p107, %p108
      %p111 = scmp.ne.s32.totalorder %s96, %s110
      %p112 = scmp.eq.s32.totalorder %s27, 0
      %p113 = por %p111, %p112
      %s115 = sadd.s32 %s114, 1
      %p118 = scmp.eq.s32.totalorder %s21, 1
      %p119 = scmp.ne.s32.totalorder %s114, %s116
      %p120 = scmp.eq.s32.totalorder %s21, 0
      %p121 = por %p119, %p120
      %p122 = scmp.ne.s32.totalorder %s114, %s116
      %p123 = scmp.eq.s32.totalorder %s26, 1
      %p124 = por %p122, %p123
      %p125 = scmp.ne.s32.totalorder %s116, %s117
      %p126 = scmp.eq.s32.totalorder %s26, 0
      %p127 = por %p125, %p126
      %p128 = scmp.ne.s32.totalorder %s116, %s117
      %p129 = scmp.eq.s32.totalorder %s27, 1
      %p130 = por %p128, %p129
      %p132 = scmp.ne.s32.totalorder %s117, %s131
      %p133 = scmp.eq.s32.totalorder %s27, 0
      %p134 = por %p132, %p133
      %s136 = sadd.s32 %s135, 1
      %p139 = scmp.eq.s32.totalorder %s21, 1
      %p140 = scmp.ne.s32.totalorder %s135, %s137
      %p141 = scmp.eq.s32.totalorder %s21, 0
      %p142 = por %p140, %p141
      %p143 = scmp.ne.s32.totalorder %s135, %s137
      %p144 = scmp.eq.s32.totalorder %s26, 1
      %p145 = por %p143, %p144
      %p146 = scmp.ne.s32.totalorder %s137, %s138
      %p147 = scmp.eq.s32.totalorder %s26, 0
      %p148 = por %p146, %p147
      %p149 = scmp.ne.s32.totalorder %s137, %s138
      %p150 = scmp.eq.s32.totalorder %s27, 1
      %p151 = por %p149, %p150
      %p153 = scmp.ne.s32.totalorder %s138, %s152
      %p154 = scmp.eq.s32.totalorder %s27, 0
      %p155 = por %p153, %p154
      %s157 = sadd.s32 %s156, 1
      %p160 = scmp.eq.s32.totalorder %s21, 1
      %p161 = scmp.ne.s32.totalorder %s156, %s158
      %p162 = scmp.eq.s32.totalorder %s21, 0
      %p163 = por %p161, %p162
      %p164 = scmp.ne.s32.totalorder %s156, %s158
      %p165 = scmp.eq.s32.totalorder %s26, 1
      %p166 = por %p164, %p165
      %p167 = scmp.ne.s32.totalorder %s158, %s159
      %p168 = scmp.eq.s32.totalorder %s26, 0
      %p169 = por %p167, %p168
      %p170 = scmp.ne.s32.totalorder %s158, %s159
      %p171 = scmp.eq.s32.totalorder %s27, 1
      %p172 = por %p170, %p171
      %p174 = scmp.ne.s32.totalorder %s159, %s173
      %p175 = scmp.eq.s32.totalorder %s27, 0
      %p176 = por %p174, %p175
      %s178 = sadd.s32 %s177, 1
      %p181 = scmp.eq.s32.totalorder %s21, 1
      %p182 = scmp.ne.s32.totalorder %s177, %s179
      %p183 = scmp.eq.s32.totalorder %s21, 0
      %p184 = por %p182, %p183
      %p185 = scmp.ne.s32.totalorder %s177, %s179
      %p186 = scmp.eq.s32.totalorder %s26, 1
      %p187 = por %p185, %p186
      %p188 = scmp.ne.s32.totalorder %s179, %s180
      %p189 = scmp.eq.s32.totalorder %s26, 0
      %p190 = por %p188, %p189
      %p191 = scmp.ne.s32.totalorder %s179, %s180
      %p192 = scmp.eq.s32.totalorder %s27, 1
      %p193 = por %p191, %p192
      %p195 = scmp.ne.s32.totalorder %s180, %s194
      %p196 = scmp.eq.s32.totalorder %s27, 0
      %p197 = por %p195, %p196
      %s199 = sadd.s32 %s198, 1
      %p202 = scmp.eq.s32.totalorder %s21, 1
      %p203 = scmp.ne.s32.totalorder %s198, %s200
      %p204 = scmp.eq.s32.totalorder %s21, 0
      %p205 = por %p203, %p204
      %p206 = scmp.ne.s32.totalorder %s198, %s200
      %p207 = scmp.eq.s32.totalorder %s26, 1
      %p208 = por %p206, %p207
      %p209 = scmp.ne.s32.totalorder %s200, %s201
      %p210 = scmp.eq.s32.totalorder %s26, 0
      %p211 = por %p209, %p210
      %p212 = scmp.ne.s32.totalorder %s200, %s201
      %p213 = scmp.eq.s32.totalorder %s27, 1
      %p214 = por %p212, %p213
      %p216 = scmp.ne.s32.totalorder %s201, %s215
      %p217 = scmp.eq.s32.totalorder %s27, 0
      %p218 = por %p216, %p217
      %s219 = ssub.s32 %s28, %s40
      %s220 = ssub.s32 %s29, %s36
      %s221 = sor.u32 %s219, %s220
      %p222 = scmp.eq.s32.totalorder %s221, 0
      %s224 = sadd.s32 %s223, 1
      %s225 = scalar_select %p222, %s223, %s224
      %p228 = pneg %p222
      %p229 = scmp.eq.s32.totalorder %s21, 1
      %p230 = por %p228, %p229
      %p231 = scmp.ne.s32.totalorder %s223, %s226
      %p232 = scmp.eq.s32.totalorder %s21, 0
      %p233 = por %p231, %p232
      %p234 = scmp.ne.s32.totalorder %s223, %s226
      %p235 = scmp.eq.s32.totalorder %s26, 1
      %p236 = por %p234, %p235
      %p237 = scmp.ne.s32.totalorder %s226, %s227
      %p238 = scmp.eq.s32.totalorder %s26, 0
      %p239 = por %p237, %p238
      %p240 = scmp.ne.s32.totalorder %s226, %s227
      %p241 = scmp.eq.s32.totalorder %s27, 1
      %p242 = por %p240, %p241
      %p244 = scmp.ne.s32.totalorder %s227, %s243
      %p245 = scmp.eq.s32.totalorder %s27, 0
      %p246 = por %p244, %p245
      %p247 = scmp.le.s32.totalorder 1, %s21
      %p248 = scmp.lt.s32.totalorder %s21, 3
      %p249 = pnand %p247, %p248
      %p250 = pneg %p249
      // Predicated region
      $region9: #{tpu_custom_call.1} parent=5 // pred_check
        _
      $region10: #{tpu_custom_call.1} parent=5 // pred_check_branch
        %252 = sbr.rel (%p249) target = $region12
      $region11: #{tpu_custom_call.1} parent=5 // pred_region
        %s253 = ssub.s32 %s21, 1
        // Predicated region
        $region13: #{tpu_custom_call.1} parent=11 // pred_check
          %p254 = pneg %p106
        $region14: #{tpu_custom_call.1} parent=11 // pred_check_branch
          %256 = sbr.rel (%p254) target = $region16
        $region15: #{tpu_custom_call.1} parent=11 // pred_region
          %s258 = ssub.s32 256, 256
          %259 = vsyncadd [#allocation10], %s258
          %s260 = sshll.u32 [#allocation9], 4
          %s261 = int_to_ptr.vmem [resolvable:$true] %s260
          %266 = dma.hbm_to_vmem [thread:$0]  %s2, 256, %s261, [#allocation10], 64, 64, 4
        $region16: #{tpu_custom_call.1} parent=11 // pred_fallthru
          _
        // Predicated region
        $region17: #{tpu_custom_call.1} parent=11 // pred_check
          %p267 = pneg %p127
        $region18: #{tpu_custom_call.1} parent=11 // pred_check_branch
          %269 = sbr.rel (%p267) target = $region20
        $region19: #{tpu_custom_call.1} parent=11 // pred_region
          _
        $region20: #{tpu_custom_call.1} parent=11 // pred_fallthru
          _
        // Predicated region
        $region21: #{tpu_custom_call.1} parent=11 // pred_check
          %p270 = pneg %p148
        $region22: #{tpu_custom_call.1} parent=11 // pred_check_branch
          %272 = sbr.rel (%p270) target = $region24
        $region23: #{tpu_custom_call.1} parent=11 // pred_region
          %s274 = ssub.s32 256, 256
          %275 = vsyncadd [#allocation10], %s274
          %s276 = sshll.u32 [#allocation11], 4
          %s277 = int_to_ptr.vmem [resolvable:$true] %s276
          %282 = dma.hbm_to_vmem [thread:$0]  %s4, 256, %s277, [#allocation10], 64, 64, 4
        $region24: #{tpu_custom_call.1} parent=11 // pred_fallthru
          _
        // Predicated region
        $region25: #{tpu_custom_call.1} parent=11 // pred_check
          %p283 = pneg %p169
        $region26: #{tpu_custom_call.1} parent=11 // pred_check_branch
          %285 = sbr.rel (%p283) target = $region28
        $region27: #{tpu_custom_call.1} parent=11 // pred_region
          _
        $region28: #{tpu_custom_call.1} parent=11 // pred_fallthru
          _
        // Predicated region
        $region29: #{tpu_custom_call.1} parent=11 // pred_check
          %p286 = pneg %p190
        $region30: #{tpu_custom_call.1} parent=11 // pred_check_branch
          %288 = sbr.rel (%p286) target = $region32
        $region31: #{tpu_custom_call.1} parent=11 // pred_region
          _
        $region32: #{tpu_custom_call.1} parent=11 // pred_fallthru
          _
        // Predicated region
        $region33: #{tpu_custom_call.1} parent=11 // pred_check
          %p289 = pneg %p211
        $region34: #{tpu_custom_call.1} parent=11 // pred_check_branch
          %291 = sbr.rel (%p289) target = $region36
        $region35: #{tpu_custom_call.1} parent=11 // pred_region
          _
        $region36: #{tpu_custom_call.1} parent=11 // pred_fallthru
          _
      $region12: #{tpu_custom_call.1} parent=5 // pred_fallthru
        _
      %p292 = scmp.lt.s32.totalorder %s21, 2
      // Predicated region
      $region37: #{tpu_custom_call.1} parent=5 // pred_check
        %p293 = pneg %p292
      $region38: #{tpu_custom_call.1} parent=5 // pred_check_branch
        %295 = sbr.rel (%p293) target = $region40
      $region39: #{tpu_custom_call.1} parent=5 // pred_region
        // Predicated region
        $region41: #{tpu_custom_call.1} parent=39 // pred_check
          %p296 = pneg %p53
        $region42: #{tpu_custom_call.1} parent=39 // pred_check_branch
          %298 = sbr.rel (%p296) target = $region44
        $region43: #{tpu_custom_call.1} parent=39 // pred_region
          %s299 = sand.u32 %s43, 1
          %s300 = scalar_lea.sflag [#allocation7], %s299
          %s301 = sand.u32 %s43, 1
          %s302 = smul.addr %s301, 8
          %s303 = scalar_lea.vmem [#allocation6], %s302
          %s305 = ssub.s32 128, 128
          %306 = vsyncadd %s300, %s305
          %s307 = smul.addr %s28, 128
          %s308 = scalar_lea.hbm %s0, %s307
          %s310 = sshll.u32 %s303, 4
          %s311 = int_to_ptr.vmem [resolvable:$true] %s310
          %313 = dma.hbm_to_vmem [thread:$0]  %s308, 128, %s311, %s300
        $region44: #{tpu_custom_call.1} parent=39 // pred_fallthru
          _
        // Predicated region
        $region45: #{tpu_custom_call.1} parent=39 // pred_check
          %p314 = pneg %p79
        $region46: #{tpu_custom_call.1} parent=39 // pred_check_branch
          %316 = sbr.rel (%p314) target = $region48
        $region47: #{tpu_custom_call.1} parent=39 // pred_region
          %p317 = scmp.lt.s32.totalorder %s28, 1
          %s318 = scalar_select %p317, %s28, 1
          %s319 = scalar_lea.vmem %s1, %s318
        $region48: #{tpu_custom_call.1} parent=39 // pred_fallthru
          _
      $region40: #{tpu_custom_call.1} parent=5 // pred_fallthru
        _
      %p320 = scmp.le.s32.totalorder 1, %s21
      %p321 = scmp.lt.s32.totalorder %s21, 3
      %p322 = pnand %p320, %p321
      %p323 = pneg %p322
      // Predicated region
      $region49: #{tpu_custom_call.1} parent=5 // pred_check
        _
      $region50: #{tpu_custom_call.1} parent=5 // pred_check_branch
        %325 = sbr.rel (%p322) target = $region52
      $region51: #{tpu_custom_call.1} parent=5 // pred_region
        %s326 = ssub.s32 %s21, 1
        %s327 = sand.u32 %s46, 1
        %s328 = scalar_lea.sflag [#allocation7], %s327
        %s329 = sand.u32 %s46, 1
        %s330 = smul.addr %s329, 8
        %s331 = scalar_lea.vmem [#allocation6], %s330
        // Predicated region
        $region53: #{tpu_custom_call.1} parent=51 // pred_check
          %p332 = pneg %p59
        $region54: #{tpu_custom_call.1} parent=51 // pred_check_branch
          %334 = sbr.rel (%p332) target = $region56
        $region55: #{tpu_custom_call.1} parent=51 // pred_region
          %335 = dma.done %s328, 128
        $region56: #{tpu_custom_call.1} parent=51 // pred_fallthru
          _
        // Predicated region
        $region57: #{tpu_custom_call.1} parent=51 // pred_check
          %p336 = pneg %p106
        $region58: #{tpu_custom_call.1} parent=51 // pred_check_branch
          %338 = sbr.rel (%p336) target = $region60
        $region59: #{tpu_custom_call.1} parent=51 // pred_region
          %339 = dma.done [#allocation10], 256
        $region60: #{tpu_custom_call.1} parent=51 // pred_fallthru
          _
        // Predicated region
        $region61: #{tpu_custom_call.1} parent=51 // pred_check
          %p340 = pneg %p148
        $region62: #{tpu_custom_call.1} parent=51 // pred_check_branch
          %342 = sbr.rel (%p340) target = $region64
        $region63: #{tpu_custom_call.1} parent=51 // pred_region
          %343 = dma.done [#allocation10], 256
        $region64: #{tpu_custom_call.1} parent=51 // pred_fallthru
          _
        %s344 = sand.u32 %s46, 1
        %s345 = scalar_lea.sflag [#allocation7], %s344
        %s346 = sand.u32 %s46, 1
        %s347 = smul.addr %s346, 8
        %s348 = scalar_lea.vmem [#allocation6], %s347
        %p349 = pneg %p59
        %p350 = pneg %p56
        %p351 = scmp.lt.s32.totalorder %s30, 1
        %s352 = scalar_select %p351, %s30, 1
        %s353 = scalar_lea.vmem %s1, %s352
        %p354 = pneg %p85
        %p355 = pneg %p82
        %p356 = pneg %p106
        %p357 = pneg %p103
        %p358 = pneg %p127
        %p359 = pneg %p124
        %p360 = pneg %p148
        %p361 = pneg %p145
        %p362 = pneg %p169
        %p363 = pneg %p166
        %p364 = pneg %p190
        %p365 = pneg %p187
        %p366 = pneg %p211
        %p367 = pneg %p208
        %p368 = pneg %p239
        %p369 = pneg %p236
        %s370 = sand.u32 %s226, 1
        %s371 = scalar_lea.sflag [#allocation8], %s370
        %s372 = sand.u32 %s226, 1
        %s373 = smul.addr %s372, 8
        %s374 = scalar_lea.vmem [#allocation12], %s373
        %p375 = scmp.lt.s32.totalorder %s30, 1
        %s376 = scalar_select %p375, %s30, 1
        %s377 = scalar_lea.vmem %s1, %s376
        %p379 = scmp.eq.s32.totalorder %s31, 0
        // Predicated region
        $region65: #{tpu_custom_call.1} parent=51 // pred_check
          %p380 = pneg %p379
        $region66: #{tpu_custom_call.1} parent=51 // pred_check_branch
          %382 = sbr.rel (%p380) target = $region68
        $region67: #{tpu_custom_call.1} parent=51 // pred_region
          %v383 = vld [vmem:[%s331] sm:$0xff]
          %v384 = vpack.c.bf16 %v383, %v383
          %v385 = vld [vmem:[#allocation9] sm:$0xf]
          %v386 = vld [vmem:[#allocation9 + $0x4] sm:$0xf]
          %v387 = vld [vmem:[#allocation9 + $0x8] sm:$0xf]
          %v388 = vld [vmem:[#allocation9 + $0xc] sm:$0xf]
          %v389 = vld [vmem:[%s3] sm:$0x1]
          %v391 = vlaneseq
          %v392 = vshrl.u32 %v391, 7
          %v393 = vsub.s32 0, %v392
          %v394 = vrot.slane %v389, %v393
          %v400 = vunpack.c.l.b16 %v385
          %v401 = vunpack.c.l.b16 %v386
          %v402 = vunpack.c.l.b16 %v387
          %v403 = vunpack.c.l.b16 %v388
          %v404 = vpack.c.b16 %v401, %v400
          %v405 = vpack.c.b16 %v403, %v402
          %vm408 = vcmask 261120
          %v410 = vsel %vm408, %v384, 0
          %412 = vmatprep.subr.bf16.mxu0 0
          %413 = vmatpush1.bf16.msra.mxu0 %v404
          %414 = vmatprep.subr.bf16.mxu0 0
          %415 = vmatpush1.bf16.msra.mxu0 %v405
          %416 = vmatprep.subr.bf16.mxu0 0
          %417 = vmatpush1.bf16.msra.mxu0 0
          %418 = vmatprep.subr.bf16.mxu0 0
          %419 = vmatpush1.bf16.msra.mxu0 0
          %420 = vmatprep.subr.bf16.mxu0 0
          %421 = vmatpush1.bf16.msra.mxu0 0
          %422 = vmatprep.subr.bf16.mxu0 0
          %423 = vmatpush1.bf16.msra.mxu0 0
          %424 = vmatprep.subr.bf16.mxu0 0
          %425 = vmatpush1.bf16.msra.mxu0 0
          %426 = vmatprep.subr.bf16.mxu0 0
          %427 = vmatpush1.bf16.msra.mxu0 0
          %428 = vmatprep.subr.bf16.mxu0 0
          %429 = vmatpush1.bf16.msra.mxu0 0
          %430 = vmatprep.subr.bf16.mxu0 0
          %431 = vmatpush1.bf16.msra.mxu0 0
          %432 = vmatprep.subr.bf16.mxu0 0
          %433 = vmatpush1.bf16.msra.mxu0 0
          %434 = vmatprep.subr.bf16.mxu0 0
          %435 = vmatpush1.bf16.msra.mxu0 0
          %436 = vmatprep.subr.bf16.mxu0 0
          %437 = vmatpush1.bf16.msra.mxu0 0
          %438 = vmatprep.subr.bf16.mxu0 0
          %439 = vmatpush1.bf16.msra.mxu0 0
          %440 = vmatprep.subr.bf16.mxu0 0
          %441 = vmatpush1.bf16.msra.mxu0 0
          %442 = vmatprep.subr.bf16.mxu0 0
          %443 = vmatpush1.bf16.msra.mxu0 0
          %444 = vmatprep.mubr.bf16.mxu0 0
          %445 = vmatmul.mubr.bf16.gmra.mrb[0].mxu0 %v410
          %v446 = vpop.f32.mrb[0].mxu0
          %v447 = vadd.f32 %v394, %v446
          %v448 = vpop.f32.mrb[0].mxu0
          %v449 = vpop.f32.mrb[0].mxu0
          %v450 = vpop.f32.mrb[0].mxu0
          %451 = vdwg.mxu0
          %v452 = vpack.c.bf16 %v447, %v447
          %vm453 = vcmask 60416
          %454 = vst.msk [vmem:[#allocation2] sm:$0xf] %vm453, %v452
          %v456 = vunpack.c.l.b16 %v452
          %v457 = vpack.c.b16 %v456, %v456
          %458 = vrot.lane.b32.xlu0 %v457, 96
          %v459 = vpop.permute.xlu0 %458
          %461 = vst.msk [vmem:[#allocation3] sm:$0xf] %vm453, %v459
          %462 = vrot.lane.b32.xlu0 %v457, 64
          %v463 = vpop.permute.xlu0 %462
          %465 = vst.msk [vmem:[#allocation4] sm:$0xf] %vm453, %v463
          %466 = vrot.lane.b32.xlu0 %v457, 120
          %v467 = vpop.permute.xlu0 %466
          %s469 = scalar_lea.vmem [#allocation2], 4
          %470 = vst.msk [vmem:[%s469] sm:$0xf] %vm453, %v467
          %471 = vrot.lane.b32.xlu0 %v457, 88
          %v472 = vpop.permute.xlu0 %471
          %s474 = scalar_lea.vmem [#allocation3], 4
          %475 = vst.msk [vmem:[%s474] sm:$0xf] %vm453, %v472
          %476 = vrot.lane.b32.xlu0 %v457, 56
          %v477 = vpop.permute.xlu0 %476
          %s479 = scalar_lea.vmem [#allocation4], 4
          %480 = vst.msk [vmem:[%s479] sm:$0xf] %vm453, %v477
          %481 = vrot.lane.b32.xlu0 %v457, 112
          %v482 = vpop.permute.xlu0 %481
          %s484 = scalar_lea.vmem [#allocation2], 8
          %485 = vst.msk [vmem:[%s484] sm:$0xf] %vm453, %v482
          %486 = vrot.lane.b32.xlu0 %v457, 80
          %v487 = vpop.permute.xlu0 %486
          %s489 = scalar_lea.vmem [#allocation3], 8
          %490 = vst.msk [vmem:[%s489] sm:$0xf] %vm453, %v487
          %491 = vrot.lane.b32.xlu0 %v457, 48
          %v492 = vpop.permute.xlu0 %491
          %s494 = scalar_lea.vmem [#allocation4], 8
          %495 = vst.msk [vmem:[%s494] sm:$0xf] %vm453, %v492
          %496 = vrot.lane.b32.xlu0 %v457, 104
          %v497 = vpop.permute.xlu0 %496
          %s499 = scalar_lea.vmem [#allocation2], 12
          %500 = vst.msk [vmem:[%s499] sm:$0xf] %vm453, %v497
          %501 = vrot.lane.b32.xlu0 %v457, 72
          %v502 = vpop.permute.xlu0 %501
          %s504 = scalar_lea.vmem [#allocation3], 12
          %505 = vst.msk [vmem:[%s504] sm:$0xf] %vm453, %v502
          %506 = vrot.lane.b32.xlu0 %v457, 40
          %v507 = vpop.permute.xlu0 %506
          %s509 = scalar_lea.vmem [#allocation4], 12
          %510 = vst.msk [vmem:[%s509] sm:$0xf] %vm453, %v507
        $region68: #{tpu_custom_call.1} parent=51 // pred_fallthru
          _
        %s511 = smul.u32 %s31, 8
        %v512 = vld [vmem:[%s377] sm:$0x1]
        %s513 = sshra.s32 %s511, 3
        %s514 = sand.u32 %s511, 7
        %s515 = smul.addr %s513, 4
        %s516 = scalar_lea.vmem [#allocation2], %s515
        %v517 = vld [vmem:[%s516] sm:$0xf]
        %v518 = vld [vmem:[%s516 + $0x4] sm:$0xf]
        %v519 = vld [vmem:[%s516 + $0x8] sm:$0xf]
        %v520 = vld [vmem:[%s516 + $0xc] sm:$0xf]
        %v521 = vld [vmem:[#allocation3] sm:$0xf]
        %v522 = vld [vmem:[#allocation3 + $0x4] sm:$0xf]
        %v523 = vld [vmem:[#allocation3 + $0x8] sm:$0xf]
        %v524 = vld [vmem:[#allocation3 + $0xc] sm:$0xf]
        %v525 = vld [vmem:[#allocation4] sm:$0xf]
        %v526 = vld [vmem:[#allocation4 + $0x4] sm:$0xf]
        %v527 = vld [vmem:[#allocation4 + $0x8] sm:$0xf]
        %v528 = vld [vmem:[#allocation4 + $0xc] sm:$0xf]
        %v530 = vlaneseq
        %v531 = vshrl.u32 %v530, 7
        %v532 = vsub.s32 0, %v531
        %v533 = vrot.slane %v512, %v532
        %vm535 = vcmask 64512
        %v537 = vsel %vm535, %v517, 0
        %v540 = vsel %vm535, %v521, 0
        %542 = vmatprep.subr.bf16.mxu0 0
        %543 = vmatpush1.bf16.xpose.msra.mxu0 %v540
        %544 = vmatprep.subr.bf16.mxu0 0
        %545 = vmatpush1.bf16.xpose.msra.mxu0 0
        %546 = vmatprep.subr.bf16.mxu0 0
        %547 = vmatpush1.bf16.xpose.msra.mxu0 0
        %548 = vmatprep.subr.bf16.mxu0 0
        %549 = vmatpush1.bf16.xpose.msra.mxu0 0
        %550 = vmatprep.subr.bf16.mxu0 0
        %551 = vmatpush1.bf16.xpose.msra.mxu0 0
        %552 = vmatprep.subr.bf16.mxu0 0
        %553 = vmatpush1.bf16.xpose.msra.mxu0 0
        %554 = vmatprep.subr.bf16.mxu0 0
        %555 = vmatpush1.bf16.xpose.msra.mxu0 0
        %556 = vmatprep.subr.bf16.mxu0 0
        %557 = vmatpush1.bf16.xpose.msra.mxu0 0
        %558 = vmatprep.subr.bf16.mxu0 0
        %559 = vmatpush1.bf16.xpose.msra.mxu0 0
        %560 = vmatprep.subr.bf16.mxu0 0
        %561 = vmatpush1.bf16.xpose.msra.mxu0 0
        %562 = vmatprep.subr.bf16.mxu0 0
        %563 = vmatpush1.bf16.xpose.msra.mxu0 0
        %564 = vmatprep.subr.bf16.mxu0 0
        %565 = vmatpush1.bf16.xpose.msra.mxu0 0
        %566 = vmatprep.subr.bf16.mxu0 0
        %567 = vmatpush1.bf16.xpose.msra.mxu0 0
        %568 = vmatprep.subr.bf16.mxu0 0
        %569 = vmatpush1.bf16.xpose.msra.mxu0 0
        %570 = vmatprep.subr.bf16.mxu0 0
        %571 = vmatpush1.bf16.xpose.msra.mxu0 0
        %572 = vmatprep.subr.bf16.mxu0 0
        %573 = vmatpush1.bf16.xpose.msra.mxu0 0
        %574 = vmatprep.mubr.bf16.mxu0 0
        %575 = vmatmul.mubr.bf16.gmra.mrb[0].mxu0 %v537
        %v576 = vpop.f32.mrb[0].mxu0
        %v577 = vadd.f32 %v533, %v576
        %v578 = vpop.f32.mrb[0].mxu0
        %v579 = vpop.f32.mrb[0].mxu0
        %v580 = vpop.f32.mrb[0].mxu0
        %581 = vdwg.mxu0
        %v583 = vsel %vm535, %v518, 0
        %v586 = vsel %vm535, %v522, 0
        %588 = vmatprep.subr.bf16.mxu0 0
        %589 = vmatpush1.bf16.xpose.msra.mxu0 %v586
        %590 = vmatprep.subr.bf16.mxu0 0
        %591 = vmatpush1.bf16.xpose.msra.mxu0 0
        %592 = vmatprep.subr.bf16.mxu0 0
        %593 = vmatpush1.bf16.xpose.msra.mxu0 0
        %594 = vmatprep.subr.bf16.mxu0 0
        %595 = vmatpush1.bf16.xpose.msra.mxu0 0
        %596 = vmatprep.subr.bf16.mxu0 0
        %597 = vmatpush1.bf16.xpose.msra.mxu0 0
        %598 = vmatprep.subr.bf16.mxu0 0
        %599 = vmatpush1.bf16.xpose.msra.mxu0 0
        %600 = vmatprep.subr.bf16.mxu0 0
        %601 = vmatpush1.bf16.xpose.msra.mxu0 0
        %602 = vmatprep.subr.bf16.mxu0 0
        %603 = vmatpush1.bf16.xpose.msra.mxu0 0
        %604 = vmatprep.subr.bf16.mxu0 0
        %605 = vmatpush1.bf16.xpose.msra.mxu0 0
        %606 = vmatprep.subr.bf16.mxu0 0
        %607 = vmatpush1.bf16.xpose.msra.mxu0 0
        %608 = vmatprep.subr.bf16.mxu0 0
        %609 = vmatpush1.bf16.xpose.msra.mxu0 0
        %610 = vmatprep.subr.bf16.mxu0 0
        %611 = vmatpush1.bf16.xpose.msra.mxu0 0
        %612 = vmatprep.subr.bf16.mxu0 0
        %613 = vmatpush1.bf16.xpose.msra.mxu0 0
        %614 = vmatprep.subr.bf16.mxu0 0
        %615 = vmatpush1.bf16.xpose.msra.mxu0 0
        %616 = vmatprep.subr.bf16.mxu0 0
        %617 = vmatpush1.bf16.xpose.msra.mxu0 0
        %618 = vmatprep.subr.bf16.mxu0 0
        %619 = vmatpush1.bf16.xpose.msra.mxu0 0
        %620 = vmatprep.mubr.bf16.mxu0 0
        %621 = vmatmul.mubr.bf16.gmra.mrb[0].mxu0 %v583
        %v622 = vpop.f32.mrb[0].mxu0
        %v623 = vadd.f32 %v533, %v622
        %v624 = vpop.f32.mrb[0].mxu0
        %v625 = vpop.f32.mrb[0].mxu0
        %v626 = vpop.f32.mrb[0].mxu0
        %627 = vdwg.mxu0
        %v629 = vsel %vm535, %v519, 0
        %v632 = vsel %vm535, %v523, 0
        %634 = vmatprep.subr.bf16.mxu0 0
        %635 = vmatpush1.bf16.xpose.msra.mxu0 %v632
        %636 = vmatprep.subr.bf16.mxu0 0
        %637 = vmatpush1.bf16.xpose.msra.mxu0 0
        %638 = vmatprep.subr.bf16.mxu0 0
        %639 = vmatpush1.bf16.xpose.msra.mxu0 0
        %640 = vmatprep.subr.bf16.mxu0 0
        %641 = vmatpush1.bf16.xpose.msra.mxu0 0
        %642 = vmatprep.subr.bf16.mxu0 0
        %643 = vmatpush1.bf16.xpose.msra.mxu0 0
        %644 = vmatprep.subr.bf16.mxu0 0
        %645 = vmatpush1.bf16.xpose.msra.mxu0 0
        %646 = vmatprep.subr.bf16.mxu0 0
        %647 = vmatpush1.bf16.xpose.msra.mxu0 0
        %648 = vmatprep.subr.bf16.mxu0 0
        %649 = vmatpush1.bf16.xpose.msra.mxu0 0
        %650 = vmatprep.subr.bf16.mxu0 0
        %651 = vmatpush1.bf16.xpose.msra.mxu0 0
        %652 = vmatprep.subr.bf16.mxu0 0
        %653 = vmatpush1.bf16.xpose.msra.mxu0 0
        %654 = vmatprep.subr.bf16.mxu0 0
        %655 = vmatpush1.bf16.xpose.msra.mxu0 0
        %656 = vmatprep.subr.bf16.mxu0 0
        %657 = vmatpush1.bf16.xpose.msra.mxu0 0
        %658 = vmatprep.subr.bf16.mxu0 0
        %659 = vmatpush1.bf16.xpose.msra.mxu0 0
        %660 = vmatprep.subr.bf16.mxu0 0
        %661 = vmatpush1.bf16.xpose.msra.mxu0 0
        %662 = vmatprep.subr.bf16.mxu0 0
        %663 = vmatpush1.bf16.xpose.msra.mxu0 0
        %664 = vmatprep.subr.bf16.mxu0 0
        %665 = vmatpush1.bf16.xpose.msra.mxu0 0
        %666 = vmatprep.mubr.bf16.mxu0 0
        %667 = vmatmul.mubr.bf16.gmra.mrb[0].mxu0 %v629
        %v668 = vpop.f32.mrb[0].mxu0
        %v669 = vadd.f32 %v533, %v668
        %v670 = vpop.f32.mrb[0].mxu0
        %v671 = vpop.f32.mrb[0].mxu0
        %v672 = vpop.f32.mrb[0].mxu0
        %673 = vdwg.mxu0
        %v675 = vsel %vm535, %v520, 0
        %v678 = vsel %vm535, %v524, 0
        %680 = vmatprep.subr.bf16.mxu0 0
        %681 = vmatpush1.bf16.xpose.msra.mxu0 %v678
        %682 = vmatprep.subr.bf16.mxu0 0
        %683 = vmatpush1.bf16.xpose.msra.mxu0 0
        %684 = vmatprep.subr.bf16.mxu0 0
        %685 = vmatpush1.bf16.xpose.msra.mxu0 0
        %686 = vmatprep.subr.bf16.mxu0 0
        %687 = vmatpush1.bf16.xpose.msra.mxu0 0
        %688 = vmatprep.subr.bf16.mxu0 0
        %689 = vmatpush1.bf16.xpose.msra.mxu0 0
        %690 = vmatprep.subr.bf16.mxu0 0
        %691 = vmatpush1.bf16.xpose.msra.mxu0 0
        %692 = vmatprep.subr.bf16.mxu0 0
        %693 = vmatpush1.bf16.xpose.msra.mxu0 0
        %694 = vmatprep.subr.bf16.mxu0 0
        %695 = vmatpush1.bf16.xpose.msra.mxu0 0
        %696 = vmatprep.subr.bf16.mxu0 0
        %697 = vmatpush1.bf16.xpose.msra.mxu0 0
        %698 = vmatprep.subr.bf16.mxu0 0
        %699 = vmatpush1.bf16.xpose.msra.mxu0 0
        %700 = vmatprep.subr.bf16.mxu0 0
        %701 = vmatpush1.bf16.xpose.msra.mxu0 0
        %702 = vmatprep.subr.bf16.mxu0 0
        %703 = vmatpush1.bf16.xpose.msra.mxu0 0
        %704 = vmatprep.subr.bf16.mxu0 0
        %705 = vmatpush1.bf16.xpose.msra.mxu0 0
        %706 = vmatprep.subr.bf16.mxu0 0
        %707 = vmatpush1.bf16.xpose.msra.mxu0 0
        %708 = vmatprep.subr.bf16.mxu0 0
        %709 = vmatpush1.bf16.xpose.msra.mxu0 0
        %710 = vmatprep.subr.bf16.mxu0 0
        %711 = vmatpush1.bf16.xpose.msra.mxu0 0
        %712 = vmatprep.mubr.bf16.mxu0 0
        %713 = vmatmul.mubr.bf16.gmra.mrb[0].mxu0 %v675
        %v714 = vpop.f32.mrb[0].mxu0
        %v715 = vadd.f32 %v533, %v714
        %v716 = vpop.f32.mrb[0].mxu0
        %v717 = vpop.f32.mrb[0].mxu0
        %v718 = vpop.f32.mrb[0].mxu0
        %719 = vdwg.mxu0
        %v720 = vsel %vm535, %v577, -inf
        %721 = vmax.xlane.f32.xlu0 %v720
        %v722 = vpop.xlane.xlu0 %721
        %v723 = vsel %vm535, %v623, -inf
        %724 = vmax.xlane.f32.xlu0 %v723
        %v725 = vpop.xlane.xlu0 %724
        %v726 = vsel %vm535, %v669, -inf
        %727 = vmax.xlane.f32.xlu0 %v726
        %v728 = vpop.xlane.xlu0 %727
        %v729 = vsel %vm535, %v715, -inf
        %730 = vmax.xlane.f32.xlu0 %v729
        %v731 = vpop.xlane.xlu0 %730
        %v732 = vsub.f32 %v577, %v722
        %v733 = vsub.f32 %v623, %v725
        %v734 = vsub.f32 %v669, %v728
        %v735 = vsub.f32 %v715, %v731
        %v736 = vmul.f32 %v732, 1.442695
        %v737 = vpow.pop %v736
        %v738 = vmul.f32 %v733, 1.442695
        %v739 = vpow.pop %v738
        %v740 = vmul.f32 %v734, 1.442695
        %v741 = vpow.pop %v740
        %v742 = vmul.f32 %v735, 1.442695
        %v743 = vpow.pop %v742
        %v744 = vsel %vm535, %v737, 0.0
        %745 = vadd.xlane.f32.xlu0 %v744
        %v746 = vpop.xlane.xlu0 %745
        %v747 = vsel %vm535, %v739, 0.0
        %748 = vadd.xlane.f32.xlu0 %v747
        %v749 = vpop.xlane.xlu0 %748
        %v750 = vsel %vm535, %v741, 0.0
        %751 = vadd.xlane.f32.xlu0 %v750
        %v752 = vpop.xlane.xlu0 %751
        %v753 = vsel %vm535, %v743, 0.0
        %754 = vadd.xlane.f32.xlu0 %v753
        %v755 = vpop.xlane.xlu0 %754
        %v756 = vrcp.pop %v746
        %v757 = vrcp.pop %v749
        %v758 = vrcp.pop %v752
        %v759 = vrcp.pop %v755
        %v760 = vmul.f32 %v737, %v756
        %v761 = vmul.f32 %v739, %v757
        %v762 = vmul.f32 %v741, %v758
        %v763 = vmul.f32 %v743, %v759
        %v764 = vpack.c.bf16 %v760, %v760
        %v765 = vpack.c.bf16 %v761, %v761
        %v766 = vpack.c.bf16 %v762, %v762
        %v767 = vpack.c.bf16 %v763, %v763
        %v769 = vsel %vm535, %v764, 0
        %vm771 = vcmask 1043456
        %v773 = vsel %vm771, %v525, 0
        %775 = vmatprep.subr.bf16.mxu0 0
        %776 = vmatpush1.bf16.msra.mxu0 %v773
        %777 = vmatprep.subr.bf16.mxu0 0
        %778 = vmatpush1.bf16.msra.mxu0 0
        %779 = vmatprep.subr.bf16.mxu0 0
        %780 = vmatpush1.bf16.msra.mxu0 0
        %781 = vmatprep.subr.bf16.mxu0 0
        %782 = vmatpush1.bf16.msra.mxu0 0
        %783 = vmatprep.subr.bf16.mxu0 0
        %784 = vmatpush1.bf16.msra.mxu0 0
        %785 = vmatprep.subr.bf16.mxu0 0
        %786 = vmatpush1.bf16.msra.mxu0 0
        %787 = vmatprep.subr.bf16.mxu0 0
        %788 = vmatpush1.bf16.msra.mxu0 0
        %789 = vmatprep.subr.bf16.mxu0 0
        %790 = vmatpush1.bf16.msra.mxu0 0
        %791 = vmatprep.subr.bf16.mxu0 0
        %792 = vmatpush1.bf16.msra.mxu0 0
        %793 = vmatprep.subr.bf16.mxu0 0
        %794 = vmatpush1.bf16.msra.mxu0 0
        %795 = vmatprep.subr.bf16.mxu0 0
        %796 = vmatpush1.bf16.msra.mxu0 0
        %797 = vmatprep.subr.bf16.mxu0 0
        %798 = vmatpush1.bf16.msra.mxu0 0
        %799 = vmatprep.subr.bf16.mxu0 0
        %800 = vmatpush1.bf16.msra.mxu0 0
        %801 = vmatprep.subr.bf16.mxu0 0
        %802 = vmatpush1.bf16.msra.mxu0 0
        %803 = vmatprep.subr.bf16.mxu0 0
        %804 = vmatpush1.bf16.msra.mxu0 0
        %805 = vmatprep.subr.bf16.mxu0 0
        %806 = vmatpush1.bf16.msra.mxu0 0
        %807 = vmatprep.mubr.bf16.mxu0 0
        %808 = vmatmul.mubr.bf16.gmra.mrb[0].mxu0 %v769
        %v809 = vpop.f32.mrb[0].mxu0
        %v810 = vadd.f32 0.0, %v809
        %v811 = vpop.f32.mrb[0].mxu0
        %v812 = vpop.f32.mrb[0].mxu0
        %v813 = vpop.f32.mrb[0].mxu0
        %814 = vdwg.mxu0
        %v816 = vsel %vm535, %v765, 0
        %v819 = vsel %vm771, %v526, 0
        %821 = vmatprep.subr.bf16.mxu0 0
        %822 = vmatpush1.bf16.msra.mxu0 %v819
        %823 = vmatprep.subr.bf16.mxu0 0
        %824 = vmatpush1.bf16.msra.mxu0 0
        %825 = vmatprep.subr.bf16.mxu0 0
        %826 = vmatpush1.bf16.msra.mxu0 0
        %827 = vmatprep.subr.bf16.mxu0 0
        %828 = vmatpush1.bf16.msra.mxu0 0
        %829 = vmatprep.subr.bf16.mxu0 0
        %830 = vmatpush1.bf16.msra.mxu0 0
        %831 = vmatprep.subr.bf16.mxu0 0
        %832 = vmatpush1.bf16.msra.mxu0 0
        %833 = vmatprep.subr.bf16.mxu0 0
        %834 = vmatpush1.bf16.msra.mxu0 0
        %835 = vmatprep.subr.bf16.mxu0 0
        %836 = vmatpush1.bf16.msra.mxu0 0
        %837 = vmatprep.subr.bf16.mxu0 0
        %838 = vmatpush1.bf16.msra.mxu0 0
        %839 = vmatprep.subr.bf16.mxu0 0
        %840 = vmatpush1.bf16.msra.mxu0 0
        %841 = vmatprep.subr.bf16.mxu0 0
        %842 = vmatpush1.bf16.msra.mxu0 0
        %843 = vmatprep.subr.bf16.mxu0 0
        %844 = vmatpush1.bf16.msra.mxu0 0
        %845 = vmatprep.subr.bf16.mxu0 0
        %846 = vmatpush1.bf16.msra.mxu0 0
        %847 = vmatprep.subr.bf16.mxu0 0
        %848 = vmatpush1.bf16.msra.mxu0 0
        %849 = vmatprep.subr.bf16.mxu0 0
        %850 = vmatpush1.bf16.msra.mxu0 0
        %851 = vmatprep.subr.bf16.mxu0 0
        %852 = vmatpush1.bf16.msra.mxu0 0
        %853 = vmatprep.mubr.bf16.mxu0 0
        %854 = vmatmul.mubr.bf16.gmra.mrb[0].mxu0 %v816
        %v855 = vpop.f32.mrb[0].mxu0
        %v856 = vadd.f32 0.0, %v855
        %v857 = vpop.f32.mrb[0].mxu0
        %v858 = vpop.f32.mrb[0].mxu0
        %v859 = vpop.f32.mrb[0].mxu0
        %860 = vdwg.mxu0
        %v862 = vsel %vm535, %v766, 0
        %v865 = vsel %vm771, %v527, 0
        %867 = vmatprep.subr.bf16.mxu0 0
        %868 = vmatpush1.bf16.msra.mxu0 %v865
        %869 = vmatprep.subr.bf16.mxu0 0
        %870 = vmatpush1.bf16.msra.mxu0 0
        %871 = vmatprep.subr.bf16.mxu0 0
        %872 = vmatpush1.bf16.msra.mxu0 0
        %873 = vmatprep.subr.bf16.mxu0 0
        %874 = vmatpush1.bf16.msra.mxu0 0
        %875 = vmatprep.subr.bf16.mxu0 0
        %876 = vmatpush1.bf16.msra.mxu0 0
        %877 = vmatprep.subr.bf16.mxu0 0
        %878 = vmatpush1.bf16.msra.mxu0 0
        %879 = vmatprep.subr.bf16.mxu0 0
        %880 = vmatpush1.bf16.msra.mxu0 0
        %881 = vmatprep.subr.bf16.mxu0 0
        %882 = vmatpush1.bf16.msra.mxu0 0
        %883 = vmatprep.subr.bf16.mxu0 0
        %884 = vmatpush1.bf16.msra.mxu0 0
        %885 = vmatprep.subr.bf16.mxu0 0
        %886 = vmatpush1.bf16.msra.mxu0 0
        %887 = vmatprep.subr.bf16.mxu0 0
        %888 = vmatpush1.bf16.msra.mxu0 0
        %889 = vmatprep.subr.bf16.mxu0 0
        %890 = vmatpush1.bf16.msra.mxu0 0
        %891 = vmatprep.subr.bf16.mxu0 0
        %892 = vmatpush1.bf16.msra.mxu0 0
        %893 = vmatprep.subr.bf16.mxu0 0
        %894 = vmatpush1.bf16.msra.mxu0 0
        %895 = vmatprep.subr.bf16.mxu0 0
        %896 = vmatpush1.bf16.msra.mxu0 0
        %897 = vmatprep.subr.bf16.mxu0 0
        %898 = vmatpush1.bf16.msra.mxu0 0
        %899 = vmatprep.mubr.bf16.mxu0 0
        %900 = vmatmul.mubr.bf16.gmra.mrb[0].mxu0 %v862
        %v901 = vpop.f32.mrb[0].mxu0
        %v902 = vadd.f32 0.0, %v901
        %v903 = vpop.f32.mrb[0].mxu0
        %v904 = vpop.f32.mrb[0].mxu0
        %v905 = vpop.f32.mrb[0].mxu0
        %906 = vdwg.mxu0
        %v908 = vsel %vm535, %v767, 0
        %v911 = vsel %vm771, %v528, 0
        %913 = vmatprep.subr.bf16.mxu0 0
        %914 = vmatpush1.bf16.msra.mxu0 %v911
        %915 = vmatprep.subr.bf16.mxu0 0
        %916 = vmatpush1.bf16.msra.mxu0 0
        %917 = vmatprep.subr.bf16.mxu0 0
        %918 = vmatpush1.bf16.msra.mxu0 0
        %919 = vmatprep.subr.bf16.mxu0 0
        %920 = vmatpush1.bf16.msra.mxu0 0
        %921 = vmatprep.subr.bf16.mxu0 0
        %922 = vmatpush1.bf16.msra.mxu0 0
        %923 = vmatprep.subr.bf16.mxu0 0
        %924 = vmatpush1.bf16.msra.mxu0 0
        %925 = vmatprep.subr.bf16.mxu0 0
        %926 = vmatpush1.bf16.msra.mxu0 0
        %927 = vmatprep.subr.bf16.mxu0 0
        %928 = vmatpush1.bf16.msra.mxu0 0
        %929 = vmatprep.subr.bf16.mxu0 0
        %930 = vmatpush1.bf16.msra.mxu0 0
        %931 = vmatprep.subr.bf16.mxu0 0
        %932 = vmatpush1.bf16.msra.mxu0 0
        %933 = vmatprep.subr.bf16.mxu0 0
        %934 = vmatpush1.bf16.msra.mxu0 0
        %935 = vmatprep.subr.bf16.mxu0 0
        %936 = vmatpush1.bf16.msra.mxu0 0
        %937 = vmatprep.subr.bf16.mxu0 0
        %938 = vmatpush1.bf16.msra.mxu0 0
        %939 = vmatprep.subr.bf16.mxu0 0
        %940 = vmatpush1.bf16.msra.mxu0 0
        %941 = vmatprep.subr.bf16.mxu0 0
        %942 = vmatpush1.bf16.msra.mxu0 0
        %943 = vmatprep.subr.bf16.mxu0 0
        %944 = vmatpush1.bf16.msra.mxu0 0
        %945 = vmatprep.mubr.bf16.mxu0 0
        %946 = vmatmul.mubr.bf16.gmra.mrb[0].mxu0 %v908
        %v947 = vpop.f32.mrb[0].mxu0
        %v948 = vadd.f32 0.0, %v947
        %v949 = vpop.f32.mrb[0].mxu0
        %v950 = vpop.f32.mrb[0].mxu0
        %v951 = vpop.f32.mrb[0].mxu0
        %952 = vdwg.mxu0
        %v953 = vpack.c.bf16 %v810, %v810
        %vm954 = vcmask 60416
        %955 = vst.msk [vmem:[#allocation5] sm:$0xf] %vm954, %v953
        %v956 = vpack.c.bf16 %v856, %v856
        %v958 = vunpack.c.l.b16 %v956
        %v959 = vpack.c.b16 %v958, %v958
        %960 = vrot.lane.b32.xlu0 %v959, 8
        %v961 = vpop.permute.xlu0 %960
        %vm963 = vcmask 126016
        %964 = vst.msk [vmem:[#allocation5] sm:$0xf] %vm963, %v961
        %v965 = vpack.c.bf16 %v902, %v902
        %v967 = vunpack.c.l.b16 %v965
        %v968 = vpack.c.b16 %v967, %v967
        %969 = vrot.lane.b32.xlu0 %v968, 16
        %v970 = vpop.permute.xlu0 %969
        %vm972 = vcmask 191616
        %973 = vst.msk [vmem:[#allocation5] sm:$0xf] %vm972, %v970
        %v974 = vpack.c.bf16 %v948, %v948
        %v976 = vunpack.c.l.b16 %v974
        %v977 = vpack.c.b16 %v976, %v976
        %978 = vrot.lane.b32.xlu0 %v977, 24
        %v979 = vpop.permute.xlu0 %978
        %vm981 = vcmask 257216
        %982 = vst.msk [vmem:[#allocation5] sm:$0xf] %vm981, %v979
        %v983 = vld [vmem:[#allocation5] sm:$0xf]
        %v984 = vld [vmem:[#allocation11] sm:$0xf]
        %v985 = vld [vmem:[#allocation11 + $0x4] sm:$0xf]
        %v986 = vld [vmem:[#allocation11 + $0x8] sm:$0xf]
        %v987 = vld [vmem:[#allocation11 + $0xc] sm:$0xf]
        %v988 = vld [vmem:[%s5] sm:$0x1]
        %v990 = vlaneseq
        %v991 = vshrl.u32 %v990, 7
        %v992 = vsub.s32 0, %v991
        %v993 = vrot.slane %v988, %v992
        %v999 = vunpack.c.l.b16 %v984
        %v1000 = vunpack.c.l.b16 %v985
        %v1001 = vunpack.c.l.b16 %v986
        %v1002 = vunpack.c.l.b16 %v987
        %v1003 = vpack.c.b16 %v1000, %v999
        %v1004 = vpack.c.b16 %v1002, %v1001
        %vm1007 = vcmask 261120
        %v1009 = vsel %vm1007, %v983, 0
        %1011 = vmatprep.subr.bf16.mxu0 0
        %1012 = vmatpush1.bf16.msra.mxu0 %v1003
        %1013 = vmatprep.subr.bf16.mxu0 0
        %1014 = vmatpush1.bf16.msra.mxu0 %v1004
        %1015 = vmatprep.subr.bf16.mxu0 0
        %1016 = vmatpush1.bf16.msra.mxu0 0
        %1017 = vmatprep.subr.bf16.mxu0 0
        %1018 = vmatpush1.bf16.msra.mxu0 0
        %1019 = vmatprep.subr.bf16.mxu0 0
        %1020 = vmatpush1.bf16.msra.mxu0 0
        %1021 = vmatprep.subr.bf16.mxu0 0
        %1022 = vmatpush1.bf16.msra.mxu0 0
        %1023 = vmatprep.subr.bf16.mxu0 0
        %1024 = vmatpush1.bf16.msra.mxu0 0
        %1025 = vmatprep.subr.bf16.mxu0 0
        %1026 = vmatpush1.bf16.msra.mxu0 0
        %1027 = vmatprep.subr.bf16.mxu0 0
        %1028 = vmatpush1.bf16.msra.mxu0 0
        %1029 = vmatprep.subr.bf16.mxu0 0
        %1030 = vmatpush1.bf16.msra.mxu0 0
        %1031 = vmatprep.subr.bf16.mxu0 0
        %1032 = vmatpush1.bf16.msra.mxu0 0
        %1033 = vmatprep.subr.bf16.mxu0 0
        %1034 = vmatpush1.bf16.msra.mxu0 0
        %1035 = vmatprep.subr.bf16.mxu0 0
        %1036 = vmatpush1.bf16.msra.mxu0 0
        %1037 = vmatprep.subr.bf16.mxu0 0
        %1038 = vmatpush1.bf16.msra.mxu0 0
        %1039 = vmatprep.subr.bf16.mxu0 0
        %1040 = vmatpush1.bf16.msra.mxu0 0
        %1041 = vmatprep.subr.bf16.mxu0 0
        %1042 = vmatpush1.bf16.msra.mxu0 0
        %1043 = vmatprep.mubr.bf16.mxu0 0
        %1044 = vmatmul.mubr.bf16.gmra.mrb[0].mxu0 %v1009
        %v1045 = vpop.f32.mrb[0].mxu0
        %v1046 = vadd.f32 %v993, %v1045
        %v1047 = vpop.f32.mrb[0].mxu0
        %v1048 = vpop.f32.mrb[0].mxu0
        %v1049 = vpop.f32.mrb[0].mxu0
        %1050 = vdwg.mxu0
        %s1051 = scalar_lea.vmem %s331, %s511 [#allocation6]
        %v1052 = vld [vmem:[%s1051] sm:$0xff]
        %v1053 = vadd.f32 %v1046, %v1052
        %v1054 = vsel %vm1007, %v1053, 0.0
        %1055 = vadd.xlane.f32.xlu0 %v1054
        %v1056 = vpop.xlane.xlu0 %1055
        %v1057 = vrcp.pop 32.0
        %v1058 = vmul.f32 %v1056, %v1057
        %v1059 = vsub.f32 %v1053, %v1058
        %v1060 = vmul.f32 %v1059, %v1059
        %v1061 = vsel %vm1007, %v1060, 0.0
        %1062 = vadd.xlane.f32.xlu0 %v1061
        %v1063 = vpop.xlane.xlu0 %1062
        %v1064 = vmul.f32 %v1063, %v1057
        %v1065 = vadd.f32 %v1064, 1e-12
        %v1066 = vrsqrt.pop %v1065
        %v1067 = vmul.f32 %v1059, %v1066
        %v1068 = vld [vmem:[%s6] sm:$0x1]
        %v1070 = vlaneseq
        %v1071 = vshrl.u32 %v1070, 7
        %v1072 = vsub.s32 0, %v1071
        %v1073 = vrot.slane %v1068, %v1072
        %v1075 = vmul.f32 %v1067, %v1073
        %v1076 = vld [vmem:[%s7] sm:$0x1]
        %v1078 = vlaneseq
        %v1079 = vshrl.u32 %v1078, 7
        %v1080 = vsub.s32 0, %v1079
        %v1081 = vrot.slane %v1076, %v1080
        %v1083 = vadd.f32 %v1075, %v1081
        %1084 = vst.msk [vmem:[%s374] sm:$0xff] %vm1007, %v1083
        %s1085 = sand.u32 %s226, 1
        %s1086 = scalar_lea.sflag [#allocation8], %s1085
        %s1087 = sand.u32 %s226, 1
        %s1088 = smul.addr %s1087, 8
        %s1089 = scalar_lea.vmem [#allocation12], %s1088
        // Predicated region
        $region69: #{tpu_custom_call.1} parent=51 // pred_check
          %p1090 = pneg %p236
        $region70: #{tpu_custom_call.1} parent=51 // pred_check_branch
          %1092 = sbr.rel (%p1090) target = $region72
        $region71: #{tpu_custom_call.1} parent=51 // pred_region
          %s1094 = ssub.s32 128, 128
          %1095 = vsyncadd %s1086, %s1094
          %s1096 = sadd.s32 %s31, %s30
          %s1097 = smul.addr %s1096, 128
          %s1098 = scalar_lea.hbm %s8, %s1097
          %s1100 = sshll.u32 %s1089, 4
          %s1101 = int_to_ptr.vmem [resolvable:$true] %s1100
          %1103 = dma.vmem_to_hbm [thread:$0]  %s1101, 128, %s1098, %s1086
        $region72: #{tpu_custom_call.1} parent=51 // pred_fallthru
          _
      $region52: #{tpu_custom_call.1} parent=5 // pred_fallthru
        _
      %p1104 = scmp.le.s32.totalorder 2, %s21
      // Predicated region
      $region73: #{tpu_custom_call.1} parent=5 // pred_check
        %p1105 = pneg %p1104
      $region74: #{tpu_custom_call.1} parent=5 // pred_check_branch
        %1107 = sbr.rel (%p1105) target = $region76
      $region75: #{tpu_custom_call.1} parent=5 // pred_region
        %s1108 = ssub.s32 %s21, 2
        // Predicated region
        $region77: #{tpu_custom_call.1} parent=75 // pred_check
          %p1109 = pneg %p242
        $region78: #{tpu_custom_call.1} parent=75 // pred_check_branch
          %1111 = sbr.rel (%p1109) target = $region80
        $region79: #{tpu_custom_call.1} parent=75 // pred_region
          %s1112 = sand.u32 %s227, 1
          %s1113 = scalar_lea.sflag [#allocation8], %s1112
          %s1114 = sand.u32 %s227, 1
          %s1115 = smul.addr %s1114, 8
          %s1116 = scalar_lea.vmem [#allocation12], %s1115
          %1117 = dma.done %s1113, 128
        $region80: #{tpu_custom_call.1} parent=75 // pred_fallthru
          _
      $region76: #{tpu_custom_call.1} parent=5 // pred_fallthru
        _
    $region6: #{tpu_custom_call.1} parent=1 // loop_footer
      %s25 = sadd.s32 1, %s21
    $region7: #{tpu_custom_call.1} parent=1 // loop_footer_branch
      %20 = sbr.rel target = $region3
    $region8: #{tpu_custom_call.1} parent=1 // loop_exit
      _
    %1118 = vsyncpa [#allocation7], 1
    %s1119 = scalar_lea.sflag [#allocation7], 1
    %1120 = vsyncpa %s1119, 1
    %1121 = vsyncpa [#allocation10], 1
    %1122 = vsyncpa [#allocation8], 1
    %s1123 = scalar_lea.sflag [#allocation8], 1
    %1124 = vsyncpa %s1123, 1

// kernel: tpu_custom_call.1
$region0: #{tpu_custom_call.1}
  #allocation0 [shape = 'u32[]', space=smem, size = 0x4, offset = 0x4, fixed_abs, tag = 'smem constant byte address 0x4 - core index']
  #allocation1 [shape = 'u32[144,128]{1,0:T(1,128)}', space=vmem, size = 0x12000, scoped, tag = 'internal scratch']
  #allocation2 [shape = 'bf16[4,8,8]{2,1,0:T(8,128)(2,1)}', space=vmem, size = 0x2000, scoped, tag = 'scratch operand']
  #allocation3 [shape = 'bf16[4,8,8]{2,1,0:T(8,128)(2,1)}', space=vmem, size = 0x2000, scoped, tag = 'scratch operand']
  #allocation4 [shape = 'bf16[4,8,8]{2,1,0:T(8,128)(2,1)}', space=vmem, size = 0x2000, scoped, tag = 'scratch operand']
  #allocation5 [shape = 'bf16[8,32]{1,0:T(8,128)(2,1)}', space=vmem, size = 0x800, scoped, tag = 'scratch operand']
  %s0 = inlined_call_operand.hbm [shape: f32[2,8,32], index: 0, kind: input, shape index: {}]
  %s1 = inlined_call_operand.vmem [shape: f32[2,1,8], index: 1, kind: input, shape index: {}]
  %s2 = inlined_call_operand.hbm [shape: bf16[32,96], index: 2, kind: input, shape index: {}]
  %s3 = inlined_call_operand.vmem [shape: f32[1,96], index: 3, kind: input, shape index: {}]
  %s4 = inlined_call_operand.hbm [shape: bf16[32,32], index: 4, kind: input, shape index: {}]
  %s5 = inlined_call_operand.vmem [shape: f32[1,32], index: 5, kind: input, shape index: {}]
  %s6 = inlined_call_operand.vmem [shape: f32[1,32], index: 6, kind: input, shape index: {}]
  %s7 = inlined_call_operand.vmem [shape: f32[1,32], index: 7, kind: input, shape index: {}]
  %s8 = inlined_call_operand.hbm [shape: f32[2,8,32], index: 8, kind: output, shape index: {}]
  %s9 = sld [smem:[#allocation0]]
  $region81: #{tpu_custom_call.1} parent=0
    _
  %s11 = ssub.s32 1, %s9
  %s12 = scalar_select 0, %s11, %s9
  $region1: #{tpu_custom_call.1} parent=0
    #allocation6 [shape = 'u8[8192]{0}', space=vmem, size = 0x2000, scoped, tag = 'input window, operand 0']
    #allocation7 [shape = 's32[2]{0}', space=sflag, size = 0x8, scoped, tag = 'scoped memory for tpu_custom_call.1']
    #allocation8 [shape = 's32[2]{0}', space=sflag, size = 0x8, scoped, tag = 'scoped memory for tpu_custom_call.1']
    #allocation9 [shape = 'u8[8192]{0}', space=vmem, size = 0x2000, scoped, tag = 'input window, operand 2, single buffered']
    #allocation10 [shape = 's32[1]{0}', space=sflag, size = 0x4, scoped, tag = 'scoped memory for tpu_custom_call.1']
    #allocation11 [shape = 'u8[8192]{0}', space=vmem, size = 0x2000, scoped, tag = 'input window, operand 4, single buffered']
    #allocation12 [shape = 'u8[8192]{0}', space=vmem, size = 0x2000, scoped, tag = 'output window, operand 0']
    %13 = vsyncpa [#allocation7], 0
    %s14 = scalar_lea.sflag [#allocation7], 1
    %15 = vsyncpa %s14, 0
    %16 = vsyncpa [#allocation10], 0
    %17 = vsyncpa [#allocation8], 0
    %s18 = scalar_lea.sflag [#allocation8], 1
    %19 = vsyncpa %s18, 0
    loop: start=0, step=1, limit=4
    $region2: #{tpu_custom_call.1} parent=1 // loop_pre_header
      _
    $region3: #{tpu_custom_call.1} parent=1 // loop_header
      %s21 = sphi 0, %s25
      %p22 = scmp.ge.s32.totalorder %s21, 4
      %s28 = sphi 0, %s40
      %s29 = sphi 0, %s36
      %s30 = sphi 0, %s28
      %s31 = sphi 0, %s29
      %s32 = sphi 0, %s30
      %s33 = sphi 0, %s31
      %s43 = sphi 0, %s45
      %s46 = sphi 0, %s43
      %s47 = sphi 0, %s46
      %s63 = sphi 0, %s47
      %s69 = sphi 0, %s71
      %s72 = sphi 0, %s69
      %s73 = sphi 0, %s72
      %s89 = sphi 0, %s73
      %s93 = sphi 0, %s93
      %s95 = sphi 0, %s93
      %s96 = sphi 0, %s95
      %s110 = sphi 0, %s96
      %s114 = sphi 0, %s114
      %s116 = sphi 0, %s114
      %s117 = sphi 0, %s116
      %s131 = sphi 0, %s117
      %s135 = sphi 0, %s135
      %s137 = sphi 0, %s135
      %s138 = sphi 0, %s137
      %s152 = sphi 0, %s138
      %s156 = sphi 0, %s156
      %s158 = sphi 0, %s156
      %s159 = sphi 0, %s158
      %s173 = sphi 0, %s159
      %s177 = sphi 0, %s177
      %s179 = sphi 0, %s177
      %s180 = sphi 0, %s179
      %s194 = sphi 0, %s180
      %s198 = sphi 0, %s198
      %s200 = sphi 0, %s198
      %s201 = sphi 0, %s200
      %s215 = sphi 0, %s201
      %s223 = sphi 0, %s225
      %s226 = sphi 0, %s223
      %s227 = sphi 0, %s226
      %s243 = sphi 0, %s227
    $region4: #{tpu_custom_call.1} parent=1 // loop_header_branch
      %24 = sbr.rel (%p22) target = $region8
    $region5: #{tpu_custom_call.1} parent=1 // loop_body
      %s26 = ssub.s32 %s21, 1
      %s27 = ssub.s32 %s21, 2
      %s34 = sadd.s32 1, %s29
      %p35 = scmp.ge.s32.totalorder %s34, 1
      %s36 = scalar_select %p35, 0, %s34
      %s37 = sadd.s32 1, %s28
      %s38 = scalar_select %p35, %s37, %s28
      %p39 = scmp.ge.s32.totalorder %s38, 2
      %s40 = scalar_select %p39, 0, %s38
      %s41 = ssub.s32 %s28, %s40
      %p42 = scmp.eq.s32.totalorder %s41, 0
      %s44 = sadd.s32 %s43, 1
      %s45 = scalar_select %p42, %s43, %s44
      %p48 = pneg %p42
      %p49 = scmp.eq.s32.totalorder %s21, 1
      %p50 = por %p48, %p49
      %p51 = scmp.ne.s32.totalorder %s43, %s46
      %p52 = scmp.eq.s32.totalorder %s21, 0
      %p53 = por %p51, %p52
      %p54 = scmp.ne.s32.totalorder %s43, %s46
      %p55 = scmp.eq.s32.totalorder %s26, 1
      %p56 = por %p54, %p55
      %p57 = scmp.ne.s32.totalorder %s46, %s47
      %p58 = scmp.eq.s32.totalorder %s26, 0
      %p59 = por %p57, %p58
      %p60 = scmp.ne.s32.totalorder %s46, %s47
      %p61 = scmp.eq.s32.totalorder %s27, 1
      %p62 = por %p60, %p61
      %p64 = scmp.ne.s32.totalorder %s47, %s63
      %p65 = scmp.eq.s32.totalorder %s27, 0
      %p66 = por %p64, %p65
      %s67 = ssub.s32 %s28, %s40
      %p68 = scmp.eq.s32.totalorder %s67, 0
      %s70 = sadd.s32 %s69, 1
      %s71 = scalar_select %p68, %s69, %s70
      %p74 = pneg %p68
      %p75 = scmp.eq.s32.totalorder %s21, 1
      %p76 = por %p74, %p75
      %p77 = scmp.ne.s32.totalorder %s69, %s72
      %p78 = scmp.eq.s32.totalorder %s21, 0
      %p79 = por %p77, %p78
      %p80 = scmp.ne.s32.totalorder %s69, %s72
      %p81 = scmp.eq.s32.totalorder %s26, 1
      %p82 = por %p80, %p81
      %p83 = scmp.ne.s32.totalorder %s72, %s73
      %p84 = scmp.eq.s32.totalorder %s26, 0
      %p85 = por %p83, %p84
      %p86 = scmp.ne.s32.totalorder %s72, %s73
      %p87 = scmp.eq.s32.totalorder %s27, 1
      %p88 = por %p86, %p87
      %p90 = scmp.ne.s32.totalorder %s73, %s89
      %p91 = scmp.eq.s32.totalorder %s27, 0
      %p92 = por %p90, %p91
      %s94 = sadd.s32 %s93, 1
      %p97 = scmp.eq.s32.totalorder %s21, 1
      %p98 = scmp.ne.s32.totalorder %s93, %s95
      %p99 = scmp.eq.s32.totalorder %s21, 0
      %p100 = por %p98, %p99
      %p101 = scmp.ne.s32.totalorder %s93, %s95
      %p102 = scmp.eq.s32.totalorder %s26, 1
      %p103 = por %p101, %p102
      %p104 = scmp.ne.s32.totalorder %s95, %s96
      %p105 = scmp.eq.s32.totalorder %s26, 0
      %p106 = por %p104, %p105
      %p107 = scmp.ne.s32.totalorder %s95, %s96
      %p108 = scmp.eq.s32.totalorder %s27, 1
      %p109 = por %p107, %p108
      %p111 = scmp.ne.s32.totalorder %s96, %s110
      %p112 = scmp.eq.s32.totalorder %s27, 0
      %p113 = por %p111, %p112
      %s115 = sadd.s32 %s114, 1
      %p118 = scmp.eq.s32.totalorder %s21, 1
      %p119 = scmp.ne.s32.totalorder %s114, %s116
      %p120 = scmp.eq.s32.totalorder %s21, 0
      %p121 = por %p119, %p120
      %p122 = scmp.ne.s32.totalorder %s114, %s116
      %p123 = scmp.eq.s32.totalorder %s26, 1
      %p124 = por %p122, %p123
      %p125 = scmp.ne.s32.totalorder %s116, %s117
      %p126 = scmp.eq.s32.totalorder %s26, 0
      %p127 = por %p125, %p126
      %p128 = scmp.ne.s32.totalorder %s116, %s117
      %p129 = scmp.eq.s32.totalorder %s27, 1
      %p130 = por %p128, %p129
      %p132 = scmp.ne.s32.totalorder %s117, %s131
      %p133 = scmp.eq.s32.totalorder %s27, 0
      %p134 = por %p132, %p133
      %s136 = sadd.s32 %s135, 1
      %p139 = scmp.eq.s32.totalorder %s21, 1
      %p140 = scmp.ne.s32.totalorder %s135, %s137
      %p141 = scmp.eq.s32.totalorder %s21, 0
      %p142 = por %p140, %p141
      %p143 = scmp.ne.s32.totalorder %s135, %s137
      %p144 = scmp.eq.s32.totalorder %s26, 1
      %p145 = por %p143, %p144
      %p146 = scmp.ne.s32.totalorder %s137, %s138
      %p147 = scmp.eq.s32.totalorder %s26, 0
      %p148 = por %p146, %p147
      %p149 = scmp.ne.s32.totalorder %s137, %s138
      %p150 = scmp.eq.s32.totalorder %s27, 1
      %p151 = por %p149, %p150
      %p153 = scmp.ne.s32.totalorder %s138, %s152
      %p154 = scmp.eq.s32.totalorder %s27, 0
      %p155 = por %p153, %p154
      %s157 = sadd.s32 %s156, 1
      %p160 = scmp.eq.s32.totalorder %s21, 1
      %p161 = scmp.ne.s32.totalorder %s156, %s158
      %p162 = scmp.eq.s32.totalorder %s21, 0
      %p163 = por %p161, %p162
      %p164 = scmp.ne.s32.totalorder %s156, %s158
      %p165 = scmp.eq.s32.totalorder %s26, 1
      %p166 = por %p164, %p165
      %p167 = scmp.ne.s32.totalorder %s158, %s159
      %p168 = scmp.eq.s32.totalorder %s26, 0
      %p169 = por %p167, %p168
      %p170 = scmp.ne.s32.totalorder %s158, %s159
      %p171 = scmp.eq.s32.totalorder %s27, 1
      %p172 = por %p170, %p171
      %p174 = scmp.ne.s32.totalorder %s159, %s173
      %p175 = scmp.eq.s32.totalorder %s27, 0
      %p176 = por %p174, %p175
      %s178 = sadd.s32 %s177, 1
      %p181 = scmp.eq.s32.totalorder %s21, 1
      %p182 = scmp.ne.s32.totalorder %s177, %s179
      %p183 = scmp.eq.s32.totalorder %s21, 0
      %p184 = por %p182, %p183
      %p185 = scmp.ne.s32.totalorder %s177, %s179
      %p186 = scmp.eq.s32.totalorder %s26, 1
      %p187 = por %p185, %p186
      %p188 = scmp.ne.s32.totalorder %s179, %s180
      %p189 = scmp.eq.s32.totalorder %s26, 0
      %p190 = por %p188, %p189
      %p191 = scmp.ne.s32.totalorder %s179, %s180
      %p192 = scmp.eq.s32.totalorder %s27, 1
      %p193 = por %p191, %p192
      %p195 = scmp.ne.s32.totalorder %s180, %s194
      %p196 = scmp.eq.s32.totalorder %s27, 0
      %p197 = por %p195, %p196
      %s199 = sadd.s32 %s198, 1
      %p202 = scmp.eq.s32.totalorder %s21, 1
      %p203 = scmp.ne.s32.totalorder %s198, %s200
      %p204 = scmp.eq.s32.totalorder %s21, 0
      %p205 = por %p203, %p204
      %p206 = scmp.ne.s32.totalorder %s198, %s200
      %p207 = scmp.eq.s32.totalorder %s26, 1
      %p208 = por %p206, %p207
      %p209 = scmp.ne.s32.totalorder %s200, %s201
      %p210 = scmp.eq.s32.totalorder %s26, 0
      %p211 = por %p209, %p210
      %p212 = scmp.ne.s32.totalorder %s200, %s201
      %p213 = scmp.eq.s32.totalorder %s27, 1
      %p214 = por %p212, %p213
      %p216 = scmp.ne.s32.totalorder %s201, %s215
      %p217 = scmp.eq.s32.totalorder %s27, 0
      %p218 = por %p216, %p217
      %s219 = ssub.s32 %s28, %s40
      %s220 = ssub.s32 %s29, %s36
      %s221 = sor.u32 %s219, %s220
      %p222 = scmp.eq.s32.totalorder %s221, 0
      %s224 = sadd.s32 %s223, 1
      %s225 = scalar_select %p222, %s223, %s224
      %p228 = pneg %p222
      %p229 = scmp.eq.s32.totalorder %s21, 1
      %p230 = por %p228, %p229
      %p231 = scmp.ne.s32.totalorder %s223, %s226
      %p232 = scmp.eq.s32.totalorder %s21, 0
      %p233 = por %p231, %p232
      %p234 = scmp.ne.s32.totalorder %s223, %s226
      %p235 = scmp.eq.s32.totalorder %s26, 1
      %p236 = por %p234, %p235
      %p237 = scmp.ne.s32.totalorder %s226, %s227
      %p238 = scmp.eq.s32.totalorder %s26, 0
      %p239 = por %p237, %p238
      %p240 = scmp.ne.s32.totalorder %s226, %s227
      %p241 = scmp.eq.s32.totalorder %s27, 1
      %p242 = por %p240, %p241
      %p244 = scmp.ne.s32.totalorder %s227, %s243
      %p245 = scmp.eq.s32.totalorder %s27, 0
      %p246 = por %p244, %p245
      %p247 = scmp.le.s32.totalorder 1, %s21
      %p248 = scmp.lt.s32.totalorder %s21, 3
      %p249 = pnand %p247, %p248
      %p250 = pneg %p249
      // Predicated region
      $region9: #{tpu_custom_call.1} parent=5 // pred_check
        _
      $region10: #{tpu_custom_call.1} parent=5 // pred_check_branch
        %252 = sbr.rel (%p249) target = $region12
      $region11: #{tpu_custom_call.1} parent=5 // pred_region
        %s253 = ssub.s32 %s21, 1
        // Predicated region
        $region13: #{tpu_custom_call.1} parent=11 // pred_check
          %p254 = pneg %p106
        $region14: #{tpu_custom_call.1} parent=11 // pred_check_branch
          %256 = sbr.rel (%p254) target = $region16
        $region15: #{tpu_custom_call.1} parent=11 // pred_region
          %s258 = ssub.s32 256, 256
          %259 = vsyncadd [#allocation10], %s258
          %s260 = sshll.u32 [#allocation9], 4
          %s261 = int_to_ptr.vmem [resolvable:$true] %s260
          %266 = dma.hbm_to_vmem [thread:$0]  %s2, 256, %s261, [#allocation10], 64, 64, 4
        $region16: #{tpu_custom_call.1} parent=11 // pred_fallthru
          _
        // Predicated region
        $region17: #{tpu_custom_call.1} parent=11 // pred_check
          %p267 = pneg %p127
        $region18: #{tpu_custom_call.1} parent=11 // pred_check_branch
          %269 = sbr.rel (%p267) target = $region20
        $region19: #{tpu_custom_call.1} parent=11 // pred_region
          _
        $region20: #{tpu_custom_call.1} parent=11 // pred_fallthru
          _
        // Predicated region
        $region21: #{tpu_custom_call.1} parent=11 // pred_check
          %p270 = pneg %p148
        $region22: #{tpu_custom_call.1} parent=11 // pred_check_branch
          %272 = sbr.rel (%p270) target = $region24
        $region23: #{tpu_custom_call.1} parent=11 // pred_region
          %s274 = ssub.s32 256, 256
          %275 = vsyncadd [#allocation10], %s274
          %s276 = sshll.u32 [#allocation11], 4
          %s277 = int_to_ptr.vmem [resolvable:$true] %s276
          %282 = dma.hbm_to_vmem [thread:$0]  %s4, 256, %s277, [#allocation10], 64, 64, 4
        $region24: #{tpu_custom_call.1} parent=11 // pred_fallthru
          _
        // Predicated region
        $region25: #{tpu_custom_call.1} parent=11 // pred_check
          %p283 = pneg %p169
        $region26: #{tpu_custom_call.1} parent=11 // pred_check_branch
          %285 = sbr.rel (%p283) target = $region28
        $region27: #{tpu_custom_call.1} parent=11 // pred_region
          _
        $region28: #{tpu_custom_call.1} parent=11 // pred_fallthru
          _
        // Predicated region
        $region29: #{tpu_custom_call.1} parent=11 // pred_check
          %p286 = pneg %p190
        $region30: #{tpu_custom_call.1} parent=11 // pred_check_branch
          %288 = sbr.rel (%p286) target = $region32
        $region31: #{tpu_custom_call.1} parent=11 // pred_region
          _
        $region32: #{tpu_custom_call.1} parent=11 // pred_fallthru
          _
        // Predicated region
        $region33: #{tpu_custom_call.1} parent=11 // pred_check
          %p289 = pneg %p211
        $region34: #{tpu_custom_call.1} parent=11 // pred_check_branch
          %291 = sbr.rel (%p289) target = $region36
        $region35: #{tpu_custom_call.1} parent=11 // pred_region
          _
        $region36: #{tpu_custom_call.1} parent=11 // pred_fallthru
          _
      $region12: #{tpu_custom_call.1} parent=5 // pred_fallthru
        _
      %p292 = scmp.lt.s32.totalorder %s21, 2
      // Predicated region
      $region37: #{tpu_custom_call.1} parent=5 // pred_check
        %p293 = pneg %p292
      $region38: #{tpu_custom_call.1} parent=5 // pred_check_branch
        %295 = sbr.rel (%p293) target = $region40
      $region39: #{tpu_custom_call.1} parent=5 // pred_region
        // Predicated region
        $region41: #{tpu_custom_call.1} parent=39 // pred_check
          %p296 = pneg %p53
        $region42: #{tpu_custom_call.1} parent=39 // pred_check_branch
          %298 = sbr.rel (%p296) target = $region44
        $region43: #{tpu_custom_call.1} parent=39 // pred_region
          %s299 = sand.u32 %s43, 1
          %s300 = scalar_lea.sflag [#allocation7], %s299
          %s301 = sand.u32 %s43, 1
          %s302 = smul.addr %s301, 8
          %s303 = scalar_lea.vmem [#allocation6], %s302
          %s305 = ssub.s32 128, 128
          %306 = vsyncadd %s300, %s305
          %s307 = smul.addr %s28, 128
          %s308 = scalar_lea.hbm %s0, %s307
          %s310 = sshll.u32 %s303, 4
          %s311 = int_to_ptr.vmem [resolvable:$true] %s310
          %313 = dma.hbm_to_vmem [thread:$0]  %s308, 128, %s311, %s300
        $region44: #{tpu_custom_call.1} parent=39 // pred_fallthru
          _
        // Predicated region
        $region45: #{tpu_custom_call.1} parent=39 // pred_check
          %p314 = pneg %p79
        $region46: #{tpu_custom_call.1} parent=39 // pred_check_branch
          %316 = sbr.rel (%p314) target = $region48
        $region47: #{tpu_custom_call.1} parent=39 // pred_region
          %p317 = scmp.lt.s32.totalorder %s28, 1
          %s318 = scalar_select %p317, %s28, 1
          %s319 = scalar_lea.vmem %s1, %s318
        $region48: #{tpu_custom_call.1} parent=39 // pred_fallthru
          _
      $region40: #{tpu_custom_call.1} parent=5 // pred_fallthru
        _
      %p320 = scmp.le.s32.totalorder 1, %s21
      %p321 = scmp.lt.s32.totalorder %s21, 3
      %p322 = pnand %p320, %p321
      %p323 = pneg %p322
      // Predicated region
      $region49: #{tpu_custom_call.1} parent=5 // pred_check
        _
      $region50: #{tpu_custom_call.1} parent=5 // pred_check_branch
        %325 = sbr.rel (%p322) target = $region52
      $region51: #{tpu_custom_call.1} parent=5 // pred_region
        %s326 = ssub.s32 %s21, 1
        %s327 = sand.u32 %s46, 1
        %s328 = scalar_lea.sflag [#allocation7], %s327
        %s329 = sand.u32 %s46, 1
        %s330 = smul.addr %s329, 8
        %s331 = scalar_lea.vmem [#allocation6], %s330
        // Predicated region
        $region53: #{tpu_custom_call.1} parent=51 // pred_check
          %p332 = pneg %p59
        $region54: #{tpu_custom_call.1} parent=51 // pred_check_branch
          %334 = sbr.rel (%p332) target = $region56
        $region55: #{tpu_custom_call.1} parent=51 // pred_region
          %335 = dma.done %s328, 128
        $region56: #{tpu_custom_call.1} parent=51 // pred_fallthru
          _
        // Predicated region
        $region57: #{tpu_custom_call.1} parent=51 // pred_check
          %p336 = pneg %p106
        $region58: #{tpu_custom_call.1} parent=51 // pred_check_branch
          %338 = sbr.rel (%p336) target = $region60
        $region59: #{tpu_custom_call.1} parent=51 // pred_region
          %339 = dma.done [#allocation10], 256
        $region60: #{tpu_custom_call.1} parent=51 // pred_fallthru
          _
        // Predicated region
        $region61: #{tpu_custom_call.1} parent=51 // pred_check
          %p340 = pneg %p148
        $region62: #{tpu_custom_call.1} parent=51 // pred_check_branch
          %342 = sbr.rel (%p340) target = $region64
        $region63: #{tpu_custom_call.1} parent=51 // pred_region
          %343 = dma.done [#allocation10], 256
        $region64: #{tpu_custom_call.1} parent=51 // pred_fallthru
          _
        %s344 = sand.u32 %s46, 1
        %s345 = scalar_lea.sflag [#allocation7], %s344
        %s346 = sand.u32 %s46, 1
        %s347 = smul.addr %s346, 8
        %s348 = scalar_lea.vmem [#allocation6], %s347
        %p349 = pneg %p59
        %p350 = pneg %p56
        %p351 = scmp.lt.s32.totalorder %s30, 1
        %s352 = scalar_select %p351, %s30, 1
        %s353 = scalar_lea.vmem %s1, %s352
        %p354 = pneg %p85
        %p355 = pneg %p82
        %p356 = pneg %p106
        %p357 = pneg %p103
        %p358 = pneg %p127
        %p359 = pneg %p124
        %p360 = pneg %p148
        %p361 = pneg %p145
        %p362 = pneg %p169
        %p363 = pneg %p166
        %p364 = pneg %p190
        %p365 = pneg %p187
        %p366 = pneg %p211
        %p367 = pneg %p208
        %p368 = pneg %p239
        %p369 = pneg %p236
        %s370 = sand.u32 %s226, 1
        %s371 = scalar_lea.sflag [#allocation8], %s370
        %s372 = sand.u32 %s226, 1
        %s373 = smul.addr %s372, 8
        %s374 = scalar_lea.vmem [#allocation12], %s373
        %p375 = scmp.lt.s32.totalorder %s30, 1
        %s376 = scalar_select %p375, %s30, 1
        %s377 = scalar_lea.vmem %s1, %s376
        %p379 = scmp.eq.s32.totalorder %s31, 0
        // Predicated region
        $region65: #{tpu_custom_call.1} parent=51 // pred_check
          %p380 = pneg %p379
        $region66: #{tpu_custom_call.1} parent=51 // pred_check_branch
          %382 = sbr.rel (%p380) target = $region68
        $region67: #{tpu_custom_call.1} parent=51 // pred_region
          %v383 = vld [vmem:[%s331] sm:$0xff]
          %v384 = vpack.c.bf16 %v383, %v383
          %v385 = vld [vmem:[#allocation9] sm:$0xf]
          %v386 = vld [vmem:[#allocation9 + $0x4] sm:$0xf]
          %v387 = vld [vmem:[#allocation9 + $0x8] sm:$0xf]
          %v388 = vld [vmem:[#allocation9 + $0xc] sm:$0xf]
          %v389 = vld [vmem:[%s3] sm:$0x1]
          %v391 = vlaneseq
          %v392 = vshrl.u32 %v391, 7
          %v393 = vsub.s32 0, %v392
          %v394 = vrot.slane %v389, %v393
          %v400 = vunpack.c.l.b16 %v385
          %v401 = vunpack.c.l.b16 %v386
          %v402 = vunpack.c.l.b16 %v387
          %v403 = vunpack.c.l.b16 %v388
          %v404 = vpack.c.b16 %v401, %v400
          %v405 = vpack.c.b16 %v403, %v402
          %vm408 = vcmask 261120
          %v410 = vsel %vm408, %v384, 0
          %412 = vmatprep.subr.bf16.mxu0 0
          %413 = vmatpush1.bf16.msra.mxu0 %v404
          %414 = vmatprep.subr.bf16.mxu0 0
          %415 = vmatpush1.bf16.msra.mxu0 %v405
          %416 = vmatprep.subr.bf16.mxu0 0
          %417 = vmatpush1.bf16.msra.mxu0 0
          %418 = vmatprep.subr.bf16.mxu0 0
          %419 = vmatpush1.bf16.msra.mxu0 0
          %420 = vmatprep.subr.bf16.mxu0 0
          %421 = vmatpush1.bf16.msra.mxu0 0
          %422 = vmatprep.subr.bf16.mxu0 0
          %423 = vmatpush1.bf16.msra.mxu0 0
          %424 = vmatprep.subr.bf16.mxu0 0
          %425 = vmatpush1.bf16.msra.mxu0 0
          %426 = vmatprep.subr.bf16.mxu0 0
          %427 = vmatpush1.bf16.msra.mxu0 0
          %428 = vmatprep.subr.bf16.mxu0 0
          %429 = vmatpush1.bf16.msra.mxu0 0
          %430 = vmatprep.subr.bf16.mxu0 0
          %431 = vmatpush1.bf16.msra.mxu0 0
          %432 = vmatprep.subr.bf16.mxu0 0
          %433 = vmatpush1.bf16.msra.mxu0 0
          %434 = vmatprep.subr.bf16.mxu0 0
          %435 = vmatpush1.bf16.msra.mxu0 0
          %436 = vmatprep.subr.bf16.mxu0 0
          %437 = vmatpush1.bf16.msra.mxu0 0
          %438 = vmatprep.subr.bf16.mxu0 0
          %439 = vmatpush1.bf16.msra.mxu0 0
          %440 = vmatprep.subr.bf16.mxu0 0
          %441 = vmatpush1.bf16.msra.mxu0 0
          %442 = vmatprep.subr.bf16.mxu0 0
          %443 = vmatpush1.bf16.msra.mxu0 0
          %444 = vmatprep.mubr.bf16.mxu0 0
          %445 = vmatmul.mubr.bf16.gmra.mrb[0].mxu0 %v410
          %v446 = vpop.f32.mrb[0].mxu0
          %v447 = vadd.f32 %v394, %v446
          %v448 = vpop.f32.mrb[0].mxu0
          %v449 = vpop.f32.mrb[0].mxu0
          %v450 = vpop.f32.mrb[0].mxu0
          %451 = vdwg.mxu0
          %v452 = vpack.c.bf16 %v447, %v447
          %vm453 = vcmask 60416
          %454 = vst.msk [vmem:[#allocation2] sm:$0xf] %vm453, %v452
          %v456 = vunpack.c.l.b16 %v452
          %v457 = vpack.c.b16 %v456, %v456
          %458 = vrot.lane.b32.xlu0 %v457, 96
          %v459 = vpop.permute.xlu0 %458
          %461 = vst.msk [vmem:[#allocation3] sm:$0xf] %vm453, %v459
          %462 = vrot.lane.b32.xlu0 %v457, 64
          %v463 = vpop.permute.xlu0 %462
          %465 = vst.msk [vmem:[#allocation4] sm:$0xf] %vm453, %v463
          %466 = vrot.lane.b32.xlu0 %v457, 120
          %v467 = vpop.permute.xlu0 %466
          %s469 = scalar_lea.vmem [#allocation2], 4
          %470 = vst.msk [vmem:[%s469] sm:$0xf] %vm453, %v467
          %471 = vrot.lane.b32.xlu0 %v457, 88
          %v472 = vpop.permute.xlu0 %471
          %s474 = scalar_lea.vmem [#allocation3], 4
          %475 = vst.msk [vmem:[%s474] sm:$0xf] %vm453, %v472
          %476 = vrot.lane.b32.xlu0 %v457, 56
          %v477 = vpop.permute.xlu0 %476
          %s479 = scalar_lea.vmem [#allocation4], 4
          %480 = vst.msk [vmem:[%s479] sm:$0xf] %vm453, %v477
          %481 = vrot.lane.b32.xlu0 %v457, 112
          %v482 = vpop.permute.xlu0 %481
          %s484 = scalar_lea.vmem [#allocation2], 8
          %485 = vst.msk [vmem:[%s484] sm:$0xf] %vm453, %v482
          %486 = vrot.lane.b32.xlu0 %v457, 80
          %v487 = vpop.permute.xlu0 %486
          %s489 = scalar_lea.vmem [#allocation3], 8
          %490 = vst.msk [vmem:[%s489] sm:$0xf] %vm453, %v487
          %491 = vrot.lane.b32.xlu0 %v457, 48
          %v492 = vpop.permute.xlu0 %491
          %s494 = scalar_lea.vmem [#allocation4], 8
          %495 = vst.msk [vmem:[%s494] sm:$0xf] %vm453, %v492
          %496 = vrot.lane.b32.xlu0 %v457, 104
          %v497 = vpop.permute.xlu0 %496
          %s499 = scalar_lea.vmem [#allocation2], 12
          %500 = vst.msk [vmem:[%s499] sm:$0xf] %vm453, %v497
          %501 = vrot.lane.b32.xlu0 %v457, 72
          %v502 = vpop.permute.xlu0 %501
          %s504 = scalar_lea.vmem [#allocation3], 12
          %505 = vst.msk [vmem:[%s504] sm:$0xf] %vm453, %v502
          %506 = vrot.lane.b32.xlu0 %v457, 40
          %v507 = vpop.permute.xlu0 %506
          %s509 = scalar_lea.vmem [#allocation4], 12
          %510 = vst.msk [vmem:[%s509] sm:$0xf] %vm453, %v507
        $region68: #{tpu_custom_call.1} parent=51 // pred_fallthru
          _
        %s511 = smul.u32 %s31, 8
        %v512 = vld [vmem:[%s377] sm:$0x1]
        %s513 = sshra.s32 %s511, 3
        %s514 = sand.u32 %s511, 7
        %s515 = smul.addr %s513, 4
        %s516 = scalar_lea.vmem [#allocation2], %s515
        %v517 = vld [vmem:[%s516] sm:$0xf]
        %v518 = vld [vmem:[%s516 + $0x4] sm:$0xf]
        %v519 = vld [vmem:[%s516 + $0x8] sm:$0xf]
        %v520 = vld [vmem:[%s516 + $0xc] sm:$0xf]
        %v521 = vld [vmem:[#allocation3] sm:$0xf]
        %v522 = vld [vmem:[#allocation3 + $0x4] sm:$0xf]
        %v523 = vld [vmem:[#allocation3 + $0x8] sm:$0xf]
        %v524 = vld [vmem:[#allocation3 + $0xc] sm:$0xf]
        %v525 = vld [vmem:[#allocation4] sm:$0xf]
        %v526 = vld [vmem:[#allocation4 + $0x4] sm:$0xf]
        %v527 = vld [vmem:[#allocation4 + $0x8] sm:$0xf]
        %v528 = vld [vmem:[#allocation4 + $0xc] sm:$0xf]
        %v530 = vlaneseq
        %v531 = vshrl.u32 %v530, 7
        %v532 = vsub.s32 0, %v531
        %v533 = vrot.slane %v512, %v532
        %vm535 = vcmask 64512
        %v537 = vsel %vm535, %v517, 0
        %v540 = vsel %vm535, %v521, 0
        %542 = vmatprep.subr.bf16.mxu0 0
        %543 = vmatpush1.bf16.xpose.msra.mxu0 %v540
        %544 = vmatprep.subr.bf16.mxu0 0
        %545 = vmatpush1.bf16.xpose.msra.mxu0 0
        %546 = vmatprep.subr.bf16.mxu0 0
        %547 = vmatpush1.bf16.xpose.msra.mxu0 0
        %548 = vmatprep.subr.bf16.mxu0 0
        %549 = vmatpush1.bf16.xpose.msra.mxu0 0
        %550 = vmatprep.subr.bf16.mxu0 0
        %551 = vmatpush1.bf16.xpose.msra.mxu0 0
        %552 = vmatprep.subr.bf16.mxu0 0
        %553 = vmatpush1.bf16.xpose.msra.mxu0 0
        %554 = vmatprep.subr.bf16.mxu0 0
        %555 = vmatpush1.bf16.xpose.msra.mxu0 0
        %556 = vmatprep.subr.bf16.mxu0 0
        %557 = vmatpush1.bf16.xpose.msra.mxu0 0
        %558 = vmatprep.subr.bf16.mxu0 0
        %559 = vmatpush1.bf16.xpose.msra.mxu0 0
        %560 = vmatprep.subr.bf16.mxu0 0
        %561 = vmatpush1.bf16.xpose.msra.mxu0 0
        %562 = vmatprep.subr.bf16.mxu0 0
        %563 = vmatpush1.bf16.xpose.msra.mxu0 0
        %564 = vmatprep.subr.bf16.mxu0 0
        %565 = vmatpush1.bf16.xpose.msra.mxu0 0
        %566 = vmatprep.subr.bf16.mxu0 0
        %567 = vmatpush1.bf16.xpose.msra.mxu0 0
        %568 = vmatprep.subr.bf16.mxu0 0
        %569 = vmatpush1.bf16.xpose.msra.mxu0 0
        %570 = vmatprep.subr.bf16.mxu0 0
        %571 = vmatpush1.bf16.xpose.msra.mxu0 0
        %572 = vmatprep.subr.bf16.mxu0 0
        %573 = vmatpush1.bf16.xpose.msra.mxu0 0
        %574 = vmatprep.mubr.bf16.mxu0 0
        %575 = vmatmul.mubr.bf16.gmra.mrb[0].mxu0 %v537
        %v576 = vpop.f32.mrb[0].mxu0
        %v577 = vadd.f32 %v533, %v576
        %v578 = vpop.f32.mrb[0].mxu0
        %v579 = vpop.f32.mrb[0].mxu0
        %v580 = vpop.f32.mrb[0].mxu0
        %581 = vdwg.mxu0
        %v583 = vsel %vm535, %v518, 0
        %v586 = vsel %vm535, %v522, 0
        %588 = vmatprep.subr.bf16.mxu0 0
        %589 = vmatpush1.bf16.xpose.msra.mxu0 %v586
        %590 = vmatprep.subr.bf16.mxu0 0
        %591 = vmatpush1.bf16.xpose.msra.mxu0 0
        %592 = vmatprep.subr.bf16.mxu0 0
        %593 = vmatpush1.bf16.xpose.msra.mxu0 0
        %594 = vmatprep.subr.bf16.mxu0 0
        %595 = vmatpush1.bf16.xpose.msra.mxu0 0
        %596 = vmatprep.subr.bf16.mxu0 0
        %597 = vmatpush1.bf16.xpose.msra.mxu0 0
        %598 = vmatprep.subr.bf16.mxu0 0
        %599 = vmatpush1.bf16.xpose.msra.mxu0 0
        %600 = vmatprep.subr.bf16.mxu0 0
        %601 = vmatpush1.bf16.xpose.msra.mxu0 0
        %602 = vmatprep.subr.bf16.mxu0 0
        %603 = vmatpush1.bf16.xpose.msra.mxu0 0
        %604 = vmatprep.subr.bf16.mxu0 0
        %605 = vmatpush1.bf16.xpose.msra.mxu0 0
        %606 = vmatprep.subr.bf16.mxu0 0
        %607 = vmatpush1.bf16.xpose.msra.mxu0 0
        %608 = vmatprep.subr.bf16.mxu0 0
        %609 = vmatpush1.bf16.xpose.msra.mxu0 0
        %610 = vmatprep.subr.bf16.mxu0 0
        %611 = vmatpush1.bf16.xpose.msra.mxu0 0
        %612 = vmatprep.subr.bf16.mxu0 0
        %613 = vmatpush1.bf16.xpose.msra.mxu0 0
        %614 = vmatprep.subr.bf16.mxu0 0
        %615 = vmatpush1.bf16.xpose.msra.mxu0 0
        %616 = vmatprep.subr.bf16.mxu0 0
        %617 = vmatpush1.bf16.xpose.msra.mxu0 0
        %618 = vmatprep.subr.bf16.mxu0 0
        %619 = vmatpush1.bf16.xpose.msra.mxu0 0
        %620 = vmatprep.mubr.bf16.mxu0 0
        %621 = vmatmul.mubr.bf16.gmra.mrb[0].mxu0 %v583
        %v622 = vpop.f32.mrb[0].mxu0
        %v623 = vadd.f32 %v533, %v622
        %v624 = vpop.f32.mrb[0].mxu0
        %v625 = vpop.f32.mrb[0].mxu0
        %v626 = vpop.f32.mrb[0].mxu0
        %627 = vdwg.mxu0
        %v629 = vsel %vm535, %v519, 0
        %v632 = vsel %vm535, %v523, 0
        %634 = vmatprep.subr.bf16.mxu0 0
        %635 = vmatpush1.bf16.xpose.msra.mxu0 %v632
        %636 = vmatprep.subr.bf16.mxu0 0
        %637 = vmatpush1.bf16.xpose.msra.mxu0 0
        %638 = vmatprep.subr.bf16.mxu0 0
        %639 = vmatpush1.bf16.xpose.msra.mxu0 0
        %640 = vmatprep.subr.bf16.mxu0 0
        %641 = vmatpush1.bf16.xpose.msra.mxu0 0
        %642 = vmatprep.subr.bf16.mxu0 0
        %643 = vmatpush1.bf16.xpose.msra.mxu0 0
        %644 = vmatprep.subr.bf16.mxu0 0
        %645 = vmatpush1.bf16.xpose.msra.mxu0 0
        %646 = vmatprep.subr.bf16.mxu0 0
        %647 = vmatpush1.bf16.xpose.msra.mxu0 0
        %648 = vmatprep.subr.bf16.mxu0 0
        %649 = vmatpush1.bf16.xpose.msra.mxu0 0
        %650 = vmatprep.subr.bf16.mxu0 0
        %651 = vmatpush1.bf16.xpose.msra.mxu0 0
        %652 = vmatprep.subr.bf16.mxu0 0
        %653 = vmatpush1.bf16.xpose.msra.mxu0 0
        %654 = vmatprep.subr.bf16.mxu0 0
        %655 = vmatpush1.bf16.xpose.msra.mxu0 0
        %656 = vmatprep.subr.bf16.mxu0 0
        %657 = vmatpush1.bf16.xpose.msra.mxu0 0
        %658 = vmatprep.subr.bf16.mxu0 0
        %659 = vmatpush1.bf16.xpose.msra.mxu0 0
        %660 = vmatprep.subr.bf16.mxu0 0
        %661 = vmatpush1.bf16.xpose.msra.mxu0 0
        %662 = vmatprep.subr.bf16.mxu0 0
        %663 = vmatpush1.bf16.xpose.msra.mxu0 0
        %664 = vmatprep.subr.bf16.mxu0 0
        %665 = vmatpush1.bf16.xpose.msra.mxu0 0
        %666 = vmatprep.mubr.bf16.mxu0 0
        %667 = vmatmul.mubr.bf16.gmra.mrb[0].mxu0 %v629
        %v668 = vpop.f32.mrb[0].mxu0
        %v669 = vadd.f32 %v533, %v668
        %v670 = vpop.f32.mrb[0].mxu0
        %v671 = vpop.f32.mrb[0].mxu0
        %v672 = vpop.f32.mrb[0].mxu0
        %673 = vdwg.mxu0
        %v675 = vsel %vm535, %v520, 0
        %v678 = vsel %vm535, %v524, 0
        %680 = vmatprep.subr.bf16.mxu0 0
        %681 = vmatpush1.bf16.xpose.msra.mxu0 %v678
        %682 = vmatprep.subr.bf16.mxu0 0
        %683 = vmatpush1.bf16.xpose.msra.mxu0 0
        %684 = vmatprep.subr.bf16.mxu0 0
        %685 = vmatpush1.bf16.xpose.msra.mxu0 0
        %686 = vmatprep.subr.bf16.mxu0 0
        %687 = vmatpush1.bf16.xpose.msra.mxu0 0
        %688 = vmatprep.subr.bf16.mxu0 0
        %689 = vmatpush1.bf16.xpose.msra.mxu0 0
        %690 = vmatprep.subr.bf16.mxu0 0
        %691 = vmatpush1.bf16.xpose.msra.mxu0 0
        %692 = vmatprep.subr.bf16.mxu0 0
        %693 = vmatpush1.bf16.xpose.msra.mxu0 0
        %694 = vmatprep.subr.bf16.mxu0 0
        %695 = vmatpush1.bf16.xpose.msra.mxu0 0
        %696 = vmatprep.subr.bf16.mxu0 0
        %697 = vmatpush1.bf16.xpose.msra.mxu0 0
        %698 = vmatprep.subr.bf16.mxu0 0
        %699 = vmatpush1.bf16.xpose.msra.mxu0 0
        %700 = vmatprep.subr.bf16.mxu0 0
        %701 = vmatpush1.bf16.xpose.msra.mxu0 0
        %702 = vmatprep.subr.bf16.mxu0 0
        %703 = vmatpush1.bf16.xpose.msra.mxu0 0
        %704 = vmatprep.subr.bf16.mxu0 0
        %705 = vmatpush1.bf16.xpose.msra.mxu0 0
        %706 = vmatprep.subr.bf16.mxu0 0
        %707 = vmatpush1.bf16.xpose.msra.mxu0 0
        %708 = vmatprep.subr.bf16.mxu0 0
        %709 = vmatpush1.bf16.xpose.msra.mxu0 0
        %710 = vmatprep.subr.bf16.mxu0 0
        %711 = vmatpush1.bf16.xpose.msra.mxu0 0
        %712 = vmatprep.mubr.bf16.mxu0 0
        %713 = vmatmul.mubr.bf16.gmra.mrb[0].mxu0 %v675
        %v714 = vpop.f32.mrb[0].mxu0
        %v715 = vadd.f32 %v533, %v714
        %v716 = vpop.f32.mrb[0].mxu0
        %v717 = vpop.f32.mrb[0].mxu0
        %v718 = vpop.f32.mrb[0].mxu0
        %719 = vdwg.mxu0
        %v720 = vsel %vm535, %v577, -inf
        %721 = vmax.xlane.f32.xlu0 %v720
        %v722 = vpop.xlane.xlu0 %721
        %v723 = vsel %vm535, %v623, -inf
        %724 = vmax.xlane.f32.xlu0 %v723
        %v725 = vpop.xlane.xlu0 %724
        %v726 = vsel %vm535, %v669, -inf
        %727 = vmax.xlane.f32.xlu0 %v726
        %v728 = vpop.xlane.xlu0 %727
        %v729 = vsel %vm535, %v715, -inf
        %730 = vmax.xlane.f32.xlu0 %v729
        %v731 = vpop.xlane.xlu0 %730
        %v732 = vsub.f32 %v577, %v722
        %v733 = vsub.f32 %v623, %v725
        %v734 = vsub.f32 %v669, %v728
        %v735 = vsub.f32 %v715, %v731
        %v736 = vmul.f32 %v732, 1.442695
        %v737 = vpow.pop %v736
        %v738 = vmul.f32 %v733, 1.442695
        %v739 = vpow.pop %v738
        %v740 = vmul.f32 %v734, 1.442695
        %v741 = vpow.pop %v740
        %v742 = vmul.f32 %v735, 1.442695
        %v743 = vpow.pop %v742
        %v744 = vsel %vm535, %v737, 0.0
        %745 = vadd.xlane.f32.xlu0 %v744
        %v746 = vpop.xlane.xlu0 %745
        %v747 = vsel %vm535, %v739, 0.0
        %748 = vadd.xlane.f32.xlu0 %v747
        %v749 = vpop.xlane.xlu0 %748
        %v750 = vsel %vm535, %v741, 0.0
        %751 = vadd.xlane.f32.xlu0 %v750
        %v752 = vpop.xlane.xlu0 %751
        %v753 = vsel %vm535, %v743, 0.0
        %754 = vadd.xlane.f32.xlu0 %v753
        %v755 = vpop.xlane.xlu0 %754
        %v756 = vrcp.pop %v746
        %v757 = vrcp.pop %v749
        %v758 = vrcp.pop %v752
        %v759 = vrcp.pop %v755
        %v760 = vmul.f32 %v737, %v756
        %v761 = vmul.f32 %v739, %v757
        %v762 = vmul.f32 %v741, %v758
        %v763 = vmul.f32 %v743, %v759
        %v764 = vpack.c.bf16 %v760, %v760
        %v765 = vpack.c.bf16 %v761, %v761
        %v766 = vpack.c.bf16 %v762, %v762
        %v767 = vpack.c.bf16 %v763, %v763
        %v769 = vsel %vm535, %v764, 0
        %vm771 = vcmask 1043456
        %v773 = vsel %vm771, %v525, 0
        %775 = vmatprep.subr.bf16.mxu0 0
        %776 = vmatpush1.bf16.msra.mxu0 %v773
        %777 = vmatprep.subr.bf16.mxu0 0
        %778 = vmatpush1.bf16.msra.mxu0 0
        %779 = vmatprep.subr.bf16.mxu0 0
        %780 = vmatpush1.bf16.msra.mxu0 0
        %781 = vmatprep.subr.bf16.mxu0 0
        %782 = vmatpush1.bf16.msra.mxu0 0
        %783 = vmatprep.subr.bf16.mxu0 0
        %784 = vmatpush1.bf16.msra.mxu0 0
        %785 = vmatprep.subr.bf16.mxu0 0
        %786 = vmatpush1.bf16.msra.mxu0 0
        %787 = vmatprep.subr.bf16.mxu0 0
        %788 = vmatpush1.bf16.msra.mxu0 0
        %789 = vmatprep.subr.bf16.mxu0 0
        %790 = vmatpush1.bf16.msra.mxu0 0
        %791 = vmatprep.subr.bf16.mxu0 0
        %792 = vmatpush1.bf16.msra.mxu0 0
        %793 = vmatprep.subr.bf16.mxu0 0
        %794 = vmatpush1.bf16.msra.mxu0 0
        %795 = vmatprep.subr.bf16.mxu0 0
        %796 = vmatpush1.bf16.msra.mxu0 0
        %797 = vmatprep.subr.bf16.mxu0 0
        %798 = vmatpush1.bf16.msra.mxu0 0
        %799 = vmatprep.subr.bf16.mxu0 0
        %800 = vmatpush1.bf16.msra.mxu0 0
        %801 = vmatprep.subr.bf16.mxu0 0
        %802 = vmatpush1.bf16.msra.mxu0 0
        %803 = vmatprep.subr.bf16.mxu0 0
        %804 = vmatpush1.bf16.msra.mxu0 0
        %805 = vmatprep.subr.bf16.mxu0 0
        %806 = vmatpush1.bf16.msra.mxu0 0
        %807 = vmatprep.mubr.bf16.mxu0 0
        %808 = vmatmul.mubr.bf16.gmra.mrb[0].mxu0 %v769
        %v809 = vpop.f32.mrb[0].mxu0
        %v810 = vadd.f32 0.0, %v809
        %v811 = vpop.f32.mrb[0].mxu0
        %v812 = vpop.f32.mrb[0].mxu0
        %v813 = vpop.f32.mrb[0].mxu0
        %814 = vdwg.mxu0
        %v816 = vsel %vm535, %v765, 0
        %v819 = vsel %vm771, %v526, 0
        %821 = vmatprep.subr.bf16.mxu0 0
        %822 = vmatpush1.bf16.msra.mxu0 %v819
        %823 = vmatprep.subr.bf16.mxu0 0
        %824 = vmatpush1.bf16.msra.mxu0 0
        %825 = vmatprep.subr.bf16.mxu0 0
        %826 = vmatpush1.bf16.msra.mxu0 0
        %827 = vmatprep.subr.bf16.mxu0 0
        %828 = vmatpush1.bf16.msra.mxu0 0
        %829 = vmatprep.subr.bf16.mxu0 0
        %830 = vmatpush1.bf16.msra.mxu0 0
        %831 = vmatprep.subr.bf16.mxu0 0
        %832 = vmatpush1.bf16.msra.mxu0 0
        %833 = vmatprep.subr.bf16.mxu0 0
        %834 = vmatpush1.bf16.msra.mxu0 0
        %835 = vmatprep.subr.bf16.mxu0 0
        %836 = vmatpush1.bf16.msra.mxu0 0
        %837 = vmatprep.subr.bf16.mxu0 0
        %838 = vmatpush1.bf16.msra.mxu0 0
        %839 = vmatprep.subr.bf16.mxu0 0
        %840 = vmatpush1.bf16.msra.mxu0 0
        %841 = vmatprep.subr.bf16.mxu0 0
        %842 = vmatpush1.bf16.msra.mxu0 0
        %843 = vmatprep.subr.bf16.mxu0 0
        %844 = vmatpush1.bf16.msra.mxu0 0
        %845 = vmatprep.subr.bf16.mxu0 0
        %846 = vmatpush1.bf16.msra.mxu0 0
        %847 = vmatprep.subr.bf16.mxu0 0
        %848 = vmatpush1.bf16.msra.mxu0 0
        %849 = vmatprep.subr.bf16.mxu0 0
        %850 = vmatpush1.bf16.msra.mxu0 0
        %851 = vmatprep.subr.bf16.mxu0 0
        %852 = vmatpush1.bf16.msra.mxu0 0
        %853 = vmatprep.mubr.bf16.mxu0 0
        %854 = vmatmul.mubr.bf16.gmra.mrb[0].mxu0 %v816
        %v855 = vpop.f32.mrb[0].mxu0
        %v856 = vadd.f32 0.0, %v855
        %v857 = vpop.f32.mrb[0].mxu0
        %v858 = vpop.f32.mrb[0].mxu0
        %v859 = vpop.f32.mrb[0].mxu0
        %860 = vdwg.mxu0
        %v862 = vsel %vm535, %v766, 0
        %v865 = vsel %vm771, %v527, 0
        %867 = vmatprep.subr.bf16.mxu0 0
        %868 = vmatpush1.bf16.msra.mxu0 %v865
        %869 = vmatprep.subr.bf16.mxu0 0
        %870 = vmatpush1.bf16.msra.mxu0 0
        %871 = vmatprep.subr.bf16.mxu0 0
        %872 = vmatpush1.bf16.msra.mxu0 0
        %873 = vmatprep.subr.bf16.mxu0 0
        %874 = vmatpush1.bf16.msra.mxu0 0
        %875 = vmatprep.subr.bf16.mxu0 0
        %876 = vmatpush1.bf16.msra.mxu0 0
        %877 = vmatprep.subr.bf16.mxu0 0
        %878 = vmatpush1.bf16.msra.mxu0 0
        %879 = vmatprep.subr.bf16.mxu0 0
        %880 = vmatpush1.bf16.msra.mxu0 0
        %881 = vmatprep.subr.bf16.mxu0 0
        %882 = vmatpush1.bf16.msra.mxu0 0
        %883 = vmatprep.subr.bf16.mxu0 0
        %884 = vmatpush1.bf16.msra.mxu0 0
        %885 = vmatprep.subr.bf16.mxu0 0
        %886 = vmatpush1.bf16.msra.mxu0 0
        %887 = vmatprep.subr.bf16.mxu0 0
        %888 = vmatpush1.bf16.msra.mxu0 0
        %889 = vmatprep.subr.bf16.mxu0 0
        %890 = vmatpush1.bf16.msra.mxu0 0
        %891 = vmatprep.subr.bf16.mxu0 0
        %892 = vmatpush1.bf16.msra.mxu0 0
        %893 = vmatprep.subr.bf16.mxu0 0
        %894 = vmatpush1.bf16.msra.mxu0 0
        %895 = vmatprep.subr.bf16.mxu0 0
        %896 = vmatpush1.bf16.msra.mxu0 0
        %897 = vmatprep.subr.bf16.mxu0 0
        %898 = vmatpush1.bf16.msra.mxu0 0
        %899 = vmatprep.mubr.bf16.mxu0 0
        %900 = vmatmul.mubr.bf16.gmra.mrb[0].mxu0 %v862
        %v901 = vpop.f32.mrb[0].mxu0
        %v902 = vadd.f32 0.0, %v901
        %v903 = vpop.f32.mrb[0].mxu0
        %v904 = vpop.f32.mrb[0].mxu0
        %v905 = vpop.f32.mrb[0].mxu0
        %906 = vdwg.mxu0
        %v908 = vsel %vm535, %v767, 0
        %v911 = vsel %vm771, %v528, 0
        %913 = vmatprep.subr.bf16.mxu0 0
        %914 = vmatpush1.bf16.msra.mxu0 %v911
        %915 = vmatprep.subr.bf16.mxu0 0
        %916 = vmatpush1.bf16.msra.mxu0 0
        %917 = vmatprep.subr.bf16.mxu0 0
        %918 = vmatpush1.bf16.msra.mxu0 0
        %919 = vmatprep.subr.bf16.mxu0 0
        %920 = vmatpush1.bf16.msra.mxu0 0
        %921 = vmatprep.subr.bf16.mxu0 0
        %922 = vmatpush1.bf16.msra.mxu0 0
        %923 = vmatprep.subr.bf16.mxu0 0
        %924 = vmatpush1.bf16.msra.mxu0 0
        %925 = vmatprep.subr.bf16.mxu0 0
        %926 = vmatpush1.bf16.msra.mxu0 0
        %927 = vmatprep.subr.bf16.mxu0 0
        %928 = vmatpush1.bf16.msra.mxu0 0
        %929 = vmatprep.subr.bf16.mxu0 0
        %930 = vmatpush1.bf16.msra.mxu0 0
        %931 = vmatprep.subr.bf16.mxu0 0
        %932 = vmatpush1.bf16.msra.mxu0 0
        %933 = vmatprep.subr.bf16.mxu0 0
        %934 = vmatpush1.bf16.msra.mxu0 0
        %935 = vmatprep.subr.bf16.mxu0 0
        %936 = vmatpush1.bf16.msra.mxu0 0
        %937 = vmatprep.subr.bf16.mxu0 0
        %938 = vmatpush1.bf16.msra.mxu0 0
        %939 = vmatprep.subr.bf16.mxu0 0
        %940 = vmatpush1.bf16.msra.mxu0 0
        %941 = vmatprep.subr.bf16.mxu0 0
        %942 = vmatpush1.bf16.msra.mxu0 0
        %943 = vmatprep.subr.bf16.mxu0 0
        %944 = vmatpush1.bf16.msra.mxu0 0
        %945 = vmatprep.mubr.bf16.mxu0 0
        %946 = vmatmul.mubr.bf16.gmra.mrb[0].mxu0 %v908
        %v947 = vpop.f32.mrb[0].mxu0
        %v948 = vadd.f32 0.0, %v947
        %v949 = vpop.f32.mrb[0].mxu0
        %v950 = vpop.f32.mrb[0].mxu0
        %v951 = vpop.f32.mrb[0].mxu0
        %952 = vdwg.mxu0
        %v953 = vpack.c.bf16 %v810, %v810
        %vm954 = vcmask 60416
        %955 = vst.msk [vmem:[#allocation5] sm:$0xf] %vm954, %v953
        %v956 = vpack.c.bf16 %v856, %v856
        %v958 = vunpack.c.l.b16 %v956
        %v959 = vpack.c.b16 %v958, %v958
        %960 = vrot.lane.b32.xlu0 %v959, 8
        %v961 = vpop.permute.xlu0 %960
        %vm963 = vcmask 126016
        %964 = vst.msk [vmem:[#allocation5] sm:$0xf] %vm963, %v961
        %v965 = vpack.c.bf16 %v902, %v902
        %v967 = vunpack.c.l.b16 %v965
        %v968 = vpack.c.b16 %v967, %v967
        %969 = vrot.lane.b32.xlu0 %v968, 16
        %v970 = vpop.permute.xlu0 %969
        %vm972 = vcmask 191616
        %973 = vst.msk [vmem:[#allocation5] sm:$0xf] %vm972, %v970
        %v974 = vpack.c.bf16 %v948, %v948
        %v976 = vunpack.c.l.b16 %v974
        %v977 = vpack.c.b16 %v976, %v976
        %978 = vrot.lane.b32.xlu0 %v977, 24
        %v979 = vpop.permute.xlu0 %978
        %vm981 = vcmask 257216
        %982 = vst.msk [vmem:[#allocation5] sm:$0xf] %vm981, %v979
        %v983 = vld [vmem:[#allocation5] sm:$0xf]
        %v984 = vld [vmem:[#allocation11] sm:$0xf]
        %v985 = vld [vmem:[#allocation11 + $0x4] sm:$0xf]
        %v986 = vld [vmem:[#allocation11 + $0x8] sm:$0xf]
        %v987 = vld [vmem:[#allocation11 + $0xc] sm:$0xf]
        %v988 = vld [vmem:[%s5] sm:$0x1]
        %v990 = vlaneseq
        %v991 = vshrl.u32 %v990, 7
        %v992 = vsub.s32 0, %v991
        %v993 = vrot.slane %v988, %v992
        %v999 = vunpack.c.l.b16 %v984
        %v1000 = vunpack.c.l.b16 %v985
        %v1001 = vunpack.c.l.b16 %v986
        %v1002 = vunpack.c.l.b16 %v987
        %v1003 = vpack.c.b16 %v1000, %v999
        %v1004 = vpack.c.b16 %v1002, %v1001
        %vm1007 = vcmask 261120
        %v1009 = vsel %vm1007, %v983, 0
        %1011 = vmatprep.subr.bf16.mxu0 0
        %1012 = vmatpush1.bf16.msra.mxu0 %v1003
        %1013 = vmatprep.subr.bf16.mxu0 0
        %1014 = vmatpush1.bf16.msra.mxu0 %v1004
        %1015 = vmatprep.subr.bf16.mxu0 0
        %1016 = vmatpush1.bf16.msra.mxu0 0
        %1017 = vmatprep.subr.bf16.mxu0 0
        %1018 = vmatpush1.bf16.msra.mxu0 0
        %1019 = vmatprep.subr.bf16.mxu0 0
        %1020 = vmatpush1.bf16.msra.mxu0 0
        %1021 = vmatprep.subr.bf16.mxu0 0
        %1022 = vmatpush1.bf16.msra.mxu0 0
        %1023 = vmatprep.subr.bf16.mxu0 0
        %1024 = vmatpush1.bf16.msra.mxu0 0
        %1025 = vmatprep.subr.bf16.mxu0 0
        %1026 = vmatpush1.bf16.msra.mxu0 0
        %1027 = vmatprep.subr.bf16.mxu0 0
        %1028 = vmatpush1.bf16.msra.mxu0 0
        %1029 = vmatprep.subr.bf16.mxu0 0
        %1030 = vmatpush1.bf16.msra.mxu0 0
        %1031 = vmatprep.subr.bf16.mxu0 0
        %1032 = vmatpush1.bf16.msra.mxu0 0
        %1033 = vmatprep.subr.bf16.mxu0 0
        %1034 = vmatpush1.bf16.msra.mxu0 0
        %1035 = vmatprep.subr.bf16.mxu0 0
        %1036 = vmatpush1.bf16.msra.mxu0 0
        %1037 = vmatprep.subr.bf16.mxu0 0
        %1038 = vmatpush1.bf16.msra.mxu0 0
        %1039 = vmatprep.subr.bf16.mxu0 0
        %1040 = vmatpush1.bf16.msra.mxu0 0
        %1041 = vmatprep.subr.bf16.mxu0 0
        %1042 = vmatpush1.bf16.msra.mxu0 0
        %1043 = vmatprep.mubr.bf16.mxu0 0
        %1044 = vmatmul.mubr.bf16.gmra.mrb[0].mxu0 %v1009
        %v1045 = vpop.f32.mrb[0].mxu0
        %v1046 = vadd.f32 %v993, %v1045
        %v1047 = vpop.f32.mrb[0].mxu0
        %v1048 = vpop.f32.mrb[0].mxu0
        %v1049 = vpop.f32.mrb[0].mxu0
        %1050 = vdwg.mxu0
        %s1051 = scalar_lea.vmem %s331, %s511 [#allocation6]
        %v1052 = vld [vmem:[%s1051] sm:$0xff]
        %v1053 = vadd.f32 %v1046, %v1052
        %v1054 = vsel %vm1007, %v1053, 0.0
        %1055 = vadd.xlane.f32.xlu0 %v1054
        %v1056 = vpop.xlane.xlu0 %1055
        %v1057 = vrcp.pop 32.0
        %v1058 = vmul.f32 %v1056, %v1057
        %v1059 = vsub.f32 %v1053, %v1058
        %v1060 = vmul.f32 %v1059, %v1059
        %v1061 = vsel %vm1007, %v1060, 0.0
        %1062 = vadd.xlane.f32.xlu0 %v1061
        %v1063 = vpop.xlane.xlu0 %1062
        %v1064 = vmul.f32 %v1063, %v1057
        %v1065 = vadd.f32 %v1064, 1e-12
        %v1066 = vrsqrt.pop %v1065
        %v1067 = vmul.f32 %v1059, %v1066
        %v1068 = vld [vmem:[%s6] sm:$0x1]
        %v1070 = vlaneseq
        %v1071 = vshrl.u32 %v1070, 7
        %v1072 = vsub.s32 0, %v1071
        %v1073 = vrot.slane %v1068, %v1072
        %v1075 = vmul.f32 %v1067, %v1073
        %v1076 = vld [vmem:[%s7] sm:$0x1]
        %v1078 = vlaneseq
        %v1079 = vshrl.u32 %v1078, 7
        %v1080 = vsub.s32 0, %v1079
        %v1081 = vrot.slane %v1076, %v1080
        %v1083 = vadd.f32 %v1075, %v1081
        %1084 = vst.msk [vmem:[%s374] sm:$0xff] %vm1007, %v1083
        %s1085 = sand.u32 %s226, 1
        %s1086 = scalar_lea.sflag [#allocation8], %s1085
        %s1087 = sand.u32 %s226, 1
        %s1088 = smul.addr %s1087, 8
        %s1089 = scalar_lea.vmem [#allocation12], %s1088
        // Predicated region
        $region69: #{tpu_custom_call.1} parent=51 // pred_check
          %p1090 = pneg %p236
        $region70: #{tpu_custom_call.1} parent=51 // pred_check_branch
          %1092 = sbr.rel (%p1090) target = $region72
        $region71: #{tpu_custom_call.1} parent=51 // pred_region
          %s1094 = ssub.s32 128, 128
          %1095 = vsyncadd %s1086, %s1094
          %s1096 = sadd.s32 %s31, %s30
          %s1097 = smul.addr %s1096, 128
          %s1098 = scalar_lea.hbm %s8, %s1097
          %s1100 = sshll.u32 %s1089, 4
          %s1101 = int_to_ptr.vmem [resolvable:$true] %s1100
          %1103 = dma.vmem_to_hbm [thread:$0]  %s1101, 128, %s1098, %s1086
        $region72: #{tpu_custom_call.1} parent=51 // pred_fallthru
          _
      $region52: #{tpu_custom_call.1} parent=5 // pred_fallthru
        _
      %p1104 = scmp.le.s32.totalorder 2, %s21
      // Predicated region
      $region73: #{tpu_custom_call.1} parent=5 // pred_check
        %p1105 = pneg %p1104
      $region74: #{tpu_custom_call.1} parent=5 // pred_check_branch
        %1107 = sbr.rel (%p1105) target = $region76
      $region75: #{tpu_custom_call.1} parent=5 // pred_region
        %s1108 = ssub.s32 %s21, 2
        // Predicated region
        $region77: #{tpu_custom_call.1} parent=75 // pred_check
          %p1109 = pneg %p242
        $region78: #{tpu_custom_call.1} parent=75 // pred_check_branch
          %1111 = sbr.rel (%p1109) target = $region80
        $region79: #{tpu_custom_call.1} parent=75 // pred_region
          %s1112 = sand.u32 %s227, 1
          %s1113 = scalar_lea.sflag [#allocation8], %s1112
          %s1114 = sand.u32 %s227, 1
          %s1115 = smul.addr %s1114, 8
          %s1116 = scalar_lea.vmem [#allocation12], %s1115
          %1117 = dma.done %s1113, 128
        $region80: #{tpu_custom_call.1} parent=75 // pred_fallthru
          _
      $region76: #{tpu_custom_call.1} parent=5 // pred_fallthru
        _
    $region6: #{tpu_custom_call.1} parent=1 // loop_footer
      %s25 = sadd.s32 1, %s21
    $region7: #{tpu_custom_call.1} parent=1 // loop_footer_branch
      %20 = sbr.rel target = $region3
    $region8: #{tpu_custom_call.1} parent=1 // loop_exit
      _
    %1118 = vsyncpa [#allocation7], 1
    %s1119 = scalar_lea.sflag [#allocation7], 1
    %1120 = vsyncpa %s1119, 1
    %1121 = vsyncpa [#allocation10], 1
    %1122 = vsyncpa [#allocation8], 1
    %s1123 = scalar_lea.sflag [#allocation8], 1
    %1124 = vsyncpa %s1123, 1

</llo_original>
